<compile_context>
chip_gen: v6e
topology: v6e:2x2x1
jax: 0.10.0
libtpu: 0.0.40
codegen_flags: <defaults>
</compile_context>

<pallas_src>
import functools

import jax
import jax.numpy as jnp
import numpy as np
from jax.experimental import pallas as pl
from jax.experimental.pallas import tpu as pltpu


def _stgcn_kernel(x_cl_ref, x_jl_ref, a_ref, wg_ref, zb_ref, wt_ref, wr_ref,
                  fb_ref, o_ref, x1_ref, z_ref, *, TT, Vp, Cip, C_out, K, kt, pad):
    f32 = jnp.float32
    bf16 = jnp.bfloat16
    Tz = TT + 2 * pad                                  # time window incl. halo rows
    ti = pl.program_id(1)
    nt = pl.num_programs(1)
    t0 = pl.multiple_of(ti * TT, TT)                   # window start in the time-padded input

    # ---- GCN, A-first: xa_k[t,w,ci] = sum_v x[t,ci,v] * A[k,v,w] (joints mixed first),
    #      then channels via one bf16 matmul per k, accumulated into a f32 VMEM scratch.
    xj = x_jl_ref[pl.ds(t0, Tz)]                       # (Tz, Cip, Vp)  bf16, joint-last
    xj2 = xj.reshape(Tz * Cip, Vp)                     # layout-preserving (Cip % 8 == 0)
    for k in range(K):
        xa = jnp.dot(xj2, a_ref[k], preferred_element_type=f32)      # (Tz*Cip, Vp)
        xa = jnp.swapaxes(xa.reshape(Tz, Cip, Vp), 1, 2)              # (Tz, Vp, Cip) small relayout
        xa = xa.reshape(Tz * Vp, Cip).astype(bf16)                    # channels-last rows
        contrib = jnp.dot(xa, wg_ref[k], preferred_element_type=f32)  # (Tz*Vp, C_out)
        if k == 0:
            x1_ref[...] = contrib
        else:
            x1_ref[...] += contrib

    # ---- BN1 (folded) bias + ReLU, channels-last / lane-dense; store z as bf16 ----
    z = x1_ref[...].reshape(Tz, Vp, C_out) + zb_ref[...][None, :, :]
    z_ref[...] = jnp.maximum(z, 0.0).astype(bf16)

    # temporal zero-padding of z at the global sequence boundaries only
    if pad > 0:
        @pl.when(ti == 0)
        def _():
            z_ref[0:pad] = jnp.zeros((pad, Vp, C_out), bf16)

        @pl.when(ti == nt - 1)
        def _():
            z_ref[TT + pad:TT + 2 * pad] = jnp.zeros((pad, Vp, C_out), bf16)

    # ---- residual 1x1 conv (+BNr folded) + all remaining biases -> init output block ----
    xr = x_cl_ref[pl.ds(t0 + pad, TT)]                 # (TT, Vp, Cip) bf16, no halo
    res = jnp.dot(xr.reshape(TT * Vp, Cip), wr_ref[...], preferred_element_type=f32)
    o_ref[...] = res + fb_ref[...]

    # ---- temporal (kt x 1) conv, BN2 folded: kt bf16 taps accumulated into the output ----
    for dt in range(kt):
        zs = z_ref[dt:dt + TT].reshape(TT * Vp, C_out)                # bf16 row-offset slice
        o_ref[...] += jnp.dot(zs, wt_ref[dt], preferred_element_type=f32)

    o_ref[...] = jnp.maximum(o_ref[...], 0.0)          # final ReLU


def _bn_fold(bn, eps):
    gamma, beta, mean, var = bn
    s = gamma / jnp.sqrt(var + eps)
    return s, beta - mean * s


def stgcn_block(x, A, params, *, eps=1e-5, tt_max=64):
    """Fused STGCNBlock forward (eval mode). x: (N,C_in,T,V), A: (K,V,V).

    Returns (out, A) with out: (N, C_out, T, V), like the PyTorch module."""
    N, C_in, T, V = x.shape
    K = A.shape[0]
    wg, bg = params["wg"], params["bg"]               # (K*C_out, C_in), (K*C_out,)
    wt, bt = params["wt"], params["bt"]               # (C_out, C_out, kt), (C_out,)
    wr, br = params["wr"], params["br"]               # (C_out, C_in), (C_out,)
    C_out = bt.shape[0]
    kt = wt.shape[2]
    pad = (kt - 1) // 2
    assert C_out % 8 == 0, "pad out_channels to a multiple of 8 for this kernel"

    f32, bf16 = jnp.float32, jnp.bfloat16
    bn1s, bn1b = _bn_fold(params["bn1"], eps)
    bn2s, bn2b = _bn_fold(params["bn2"], eps)
    bnrs, bnrb = _bn_fold(params["bnr"], eps)

    Vp = ((V + 7) // 8) * 8                           # joints padded to sublane multiple
    Cip = max(8, ((C_in + 7) // 8) * 8)               # in-channels padded to >= 8

    # time tile: largest divisor of T not exceeding tt_max
    TT = T
    for cand in range(min(T, tt_max), 0, -1):
        if T % cand == 0:
            TT = cand
            break
    n_t = T // TT
    T_pad = T + 2 * pad

    # ---- fold conv biases + BN into weights (host, f32 math) and cast MXU operands bf16 ----
    wgK = wg.reshape(K, C_out, C_in)
    wg_f = jnp.zeros((K, Cip, C_out), f32).at[:, :C_in, :].set(
        jnp.transpose(wgK, (0, 2, 1)) * bn1s[None, None, :]).astype(bf16)
    asum = jnp.sum(A, axis=1)                                       # (K, V)
    zb = jnp.einsum("kw,kc->wc", asum, bg.reshape(K, C_out))        # gcn bias routed through A
    zbias = jnp.zeros((Vp, C_out), f32).at[:V, :].set(zb * bn1s[None, :] + bn1b[None, :])
    wt_f = (jnp.transpose(wt, (2, 1, 0)) * bn2s[None, None, :]).astype(bf16)   # (kt, Ci, Co)
    wr_f = jnp.zeros((Cip, C_out), f32).at[:C_in, :].set(wr.T * bnrs[None, :]).astype(bf16)
    fbias = (bn2s * bt + bn2b + bnrs * br + bnrb).reshape(1, C_out)
    A_p = jnp.zeros((K, Vp, Vp), f32).at[:, :V, :V].set(A).astype(bf16)

    # ---- x in two layouts (channels-last / joint-last), time zero-padded, bf16 ----
    x32 = x.astype(f32)
    x_cl = jnp.pad(jnp.transpose(x32, (0, 2, 3, 1)),
                   ((0, 0), (pad, pad), (0, Vp - V), (0, Cip - C_in))).astype(bf16)
    x_jl = jnp.pad(jnp.transpose(x32, (0, 2, 1, 3)),
                   ((0, 0), (pad, pad), (0, Cip - C_in), (0, Vp - V))).astype(bf16)

    kernel = functools.partial(_stgcn_kernel, TT=TT, Vp=Vp, Cip=Cip, C_out=C_out,
                               K=K, kt=kt, pad=pad)

    out = pl.pallas_call(
        kernel,
        out_shape=jax.ShapeDtypeStruct((N, T * Vp, C_out), f32),
        grid=(N, n_t),
        in_specs=[
            pl.BlockSpec((None, T_pad, Vp, Cip), lambda n, t: (n, 0, 0, 0)),   # x channels-last (resident over T)
            pl.BlockSpec((None, T_pad, Cip, Vp), lambda n, t: (n, 0, 0, 0)),   # x joint-last   (resident over T)
            pl.BlockSpec((K, Vp, Vp), lambda n, t: (0, 0, 0)),                 # A (padded, bf16)
            pl.BlockSpec((K, Cip, C_out), lambda n, t: (0, 0, 0)),             # GCN weights (BN1 folded)
            pl.BlockSpec((Vp, C_out), lambda n, t: (0, 0)),                    # BN1 shift + gcn bias (channels-last)
            pl.BlockSpec((kt, C_out, C_out), lambda n, t: (0, 0, 0)),          # temporal weights (BN2 folded)
            pl.BlockSpec((Cip, C_out), lambda n, t: (0, 0)),                   # residual weights (BNr folded)
            pl.BlockSpec((1, C_out), lambda n, t: (0, 0)),                     # combined biases
        ],
        out_specs=pl.BlockSpec((None, TT * Vp, C_out), lambda n, t: (n, t, 0)),
        scratch_shapes=[
            pltpu.VMEM(((TT + 2 * pad) * Vp, C_out), f32),    # x1 accumulator (f32)
            pltpu.VMEM((TT + 2 * pad, Vp, C_out), bf16),      # z (post BN1+ReLU), time-leading
        ],
        compiler_params=pltpu.CompilerParams(
            dimension_semantics=("parallel", "parallel"),
            vmem_limit_bytes=64 * 1024 * 1024,
        ),
    )(x_cl, x_jl, A_p, wg_f, zbias, wt_f, wr_f, fbias)

    out = out.reshape(N, T, Vp, C_out).transpose(0, 3, 1, 2)[:, :, :, :V]
    return out, A


# ---------------- unfused float64 NumPy reference (for correctness check) ----------------
def _reference_f64(x, A, params, eps=1e-5):
    f8 = lambda a: np.asarray(a, np.float64)
    x, A = f8(x), f8(A)
    wg, bg = f8(params["wg"]), f8(params["bg"])
    wt, bt = f8(params["wt"]), f8(params["bt"])
    wr, br = f8(params["wr"]), f8(params["br"])
    N, C_in, T, V = x.shape
    K = A.shape[0]
    C_out = bt.shape[0]
    kt = wt.shape[2]
    pad = (kt - 1) // 2

    def bn(v, p):
        g, b, m, var = (f8(t) for t in p)
        s = g / np.sqrt(var + eps)
        return s[None, :, None, None] * v + (b - m * s)[None, :, None, None]

    y = np.einsum("oc,nctv->notv", wg, x) + bg[None, :, None, None]
    y = y.reshape(N, K, C_out, T, V)
    x1 = np.einsum("nkctv,kvw->nctw", y, A)
    z = np.maximum(bn(x1, params["bn1"]), 0.0)
    zp = np.pad(z, ((0, 0), (0, 0), (pad, pad), (0, 0)))
    t_out = np.zeros((N, C_out, T, V), np.float64)
    for dt in range(kt):
        t_out += np.einsum("oc,nctv->notv", wt[:, :, dt], zp[:, :, dt:dt + T, :])
    t_out = bn(t_out + bt[None, :, None, None], params["bn2"])
    res = bn(np.einsum("oc,nctv->notv", wr, x) + br[None, :, None, None], params["bnr"])
    return np.maximum(t_out + res, 0.0)


if __name__ == "__main__":
    # Small shapes consistent with the module: in_channels=2, out_channels=16,
    # 32 frames, 18 joints, kernel_size=(kt=3, K=3), stride=1.
    N, C_in, C_out = 2, 2, 16
    T, V = 32, 18
    K, kt = 3, 3

    key = jax.random.PRNGKey(0)
    ks = jax.random.split(key, 11)

    x = jax.random.normal(ks[0], (N, C_in, T, V), jnp.float32)
    A = jax.random.normal(ks[1], (K, V, V), jnp.float32) * 0.5

    wg = jax.random.normal(ks[2], (K * C_out, C_in), jnp.float32) * 0.4
    bg = jax.random.normal(ks[3], (K * C_out,), jnp.float32) * 0.1
    wt = jax.random.normal(ks[4], (C_out, C_out, kt), jnp.float32) * 0.2
    bt = jax.random.normal(ks[5], (C_out,), jnp.float32) * 0.1
    wr = jax.random.normal(ks[6], (C_out, C_in), jnp.float32) * 0.4
    br = jax.random.normal(ks[7], (C_out,), jnp.float32) * 0.1

    def make_bn(k):
        k1, k2, k3, k4 = jax.random.split(k, 4)
        gamma = 1.0 + 0.1 * jax.random.normal(k1, (C_out,), jnp.float32)
        beta = 0.1 * jax.random.normal(k2, (C_out,), jnp.float32)
        mean = 0.1 * jax.random.normal(k3, (C_out,), jnp.float32)
        var = jnp.abs(jax.random.normal(k4, (C_out,), jnp.float32)) + 0.5
        return gamma, beta, mean, var

    params = dict(wg=wg, bg=bg, wt=wt, bt=bt, wr=wr, br=br,
                  bn1=make_bn(ks[8]), bn2=make_bn(ks[9]), bnr=make_bn(ks[10]))

    # tt_max=8 -> 4 time tiles: exercises the halo recompute, the interior path and
    # the boundary zeroing on both ends.
    out, A_out = stgcn_block(x, A, params, tt_max=8)
    out = jax.block_until_ready(out)

    ref = _reference_f64(x, A, params)
    got = np.asarray(out, np.float64)
    assert got.shape == (N, C_out, T, V), got.shape

    abs_err = np.abs(got - ref)
    max_err = float(abs_err.max())
    mean_err = float(abs_err.mean())
    # bf16 MXU operands with f32 accumulation -> tolerance loosened vs the f32 kernel.
    assert mean_err < 5e-2, f"mean abs err {mean_err}"
    assert np.allclose(got, ref, rtol=5e-2, atol=2e-1), f"max abs err {max_err}"

    print("KERNEL_OK")
</pallas_src>

<mosaic_0001>
module attributes {stable_mosaic.version = 11 : i64} {
  func.func @_stgcn_kernel(%arg0: i32, %arg1: i32, %arg2: memref<1x34x24x8xbf16, #tpu.memory_space<vmem>>, %arg3: memref<1x34x8x24xbf16, #tpu.memory_space<vmem>>, %arg4: memref<3x24x24xbf16, #tpu.memory_space<vmem>>, %arg5: memref<3x8x16xbf16, #tpu.memory_space<vmem>>, %arg6: memref<24x16xf32, #tpu.memory_space<vmem>>, %arg7: memref<3x16x16xbf16, #tpu.memory_space<vmem>>, %arg8: memref<8x16xbf16, #tpu.memory_space<vmem>>, %arg9: memref<1x16xf32, #tpu.memory_space<vmem>>, %arg10: memref<1x192x16xf32, #tpu.memory_space<vmem>>, %arg11: memref<240x16xf32, #tpu.memory_space<vmem>>, %arg12: memref<10x24x16xbf16, #tpu.memory_space<vmem>>) attributes {dimension_semantics = [#tpu.dimension_semantics<parallel>, #tpu.dimension_semantics<parallel>], iteration_bounds = array<i64: 2, 4>, scalar_prefetch = 0 : i64, scratch_operands = 2 : i64, tpu.core_type = #tpu.core_type<tc>, window_params = [{transform_indices = @transform_0, window_bounds = array<i64: 1, 34, 24, 8>}, {transform_indices = @transform_1, window_bounds = array<i64: 1, 34, 8, 24>}, {pipeline_mode = #tpu.pipeline_mode<synchronous>, transform_indices = @transform_2, window_bounds = array<i64: 3, 24, 24>}, {pipeline_mode = #tpu.pipeline_mode<synchronous>, transform_indices = @transform_3, window_bounds = array<i64: 3, 8, 16>}, {pipeline_mode = #tpu.pipeline_mode<synchronous>, transform_indices = @transform_4, window_bounds = array<i64: 24, 16>}, {pipeline_mode = #tpu.pipeline_mode<synchronous>, transform_indices = @transform_5, window_bounds = array<i64: 3, 16, 16>}, {pipeline_mode = #tpu.pipeline_mode<synchronous>, transform_indices = @transform_6, window_bounds = array<i64: 8, 16>}, {pipeline_mode = #tpu.pipeline_mode<synchronous>, transform_indices = @transform_7, window_bounds = array<i64: 1, 16>}, {transform_indices = @transform_8, window_bounds = array<i64: 1, 192, 16>}]} {
    %c8_i32 = arith.constant 8 : i32
    %0 = arith.muli %arg1, %c8_i32 : i32
    %1 = tpu.assume_multiple %0, 8 : i32
    %c0 = arith.constant 0 : index
    %2 = arith.index_cast %1 : i32 to index
    %c0_0 = arith.constant 0 : index
    %c0_1 = arith.constant 0 : index
    %3 = vector.load %arg3[%c0, %2, %c0_0, %c0_1] : memref<1x34x8x24xbf16, #tpu.memory_space<vmem>>, vector<1x10x8x24xbf16>
    %4 = vector.shape_cast %3 : vector<1x10x8x24xbf16> to vector<10x8x24xbf16>
    %5 = vector.shape_cast %4 : vector<10x8x24xbf16> to vector<80x24xbf16>
    %c0_2 = arith.constant 0 : index
    %c0_3 = arith.constant 0 : index
    %c0_4 = arith.constant 0 : index
    %6 = vector.load %arg4[%c0_2, %c0_3, %c0_4] : memref<3x24x24xbf16, #tpu.memory_space<vmem>>, vector<1x24x24xbf16>
    %7 = vector.shape_cast %6 : vector<1x24x24xbf16> to vector<24x24xbf16>
    %cst = arith.constant dense<0.000000e+00> : vector<80x24xf32>
    %8 = tpu.matmul %5, %7, %cst {dimension_numbers = #tpu.dot_dimension_numbers<[1], [0], [0], [1], [0, 0, 1, 1], [], []>} : vector<80x24xbf16>, vector<24x24xbf16>, vector<80x24xf32> -> vector<80x24xf32>
    %9 = vector.shape_cast %8 : vector<80x24xf32> to vector<10x8x24xf32>
    %10 = tpu.transpose %9, [0, 2, 1] : vector<10x8x24xf32> -> vector<10x24x8xf32>
    %11 = vector.shape_cast %10 : vector<10x24x8xf32> to vector<240x8xf32>
    %12 = arith.truncf %11 : vector<240x8xf32> to vector<240x8xbf16>
    %c0_5 = arith.constant 0 : index
    %c0_6 = arith.constant 0 : index
    %c0_7 = arith.constant 0 : index
    %13 = vector.load %arg5[%c0_5, %c0_6, %c0_7] : memref<3x8x16xbf16, #tpu.memory_space<vmem>>, vector<1x8x16xbf16>
    %14 = vector.shape_cast %13 : vector<1x8x16xbf16> to vector<8x16xbf16>
    %cst_8 = arith.constant dense<0.000000e+00> : vector<240x16xf32>
    %15 = tpu.matmul %12, %14, %cst_8 {dimension_numbers = #tpu.dot_dimension_numbers<[1], [0], [0], [1], [0, 0, 1, 1], [], []>} : vector<240x8xbf16>, vector<8x16xbf16>, vector<240x16xf32> -> vector<240x16xf32>
    %c0_9 = arith.constant 0 : index
    %c0_10 = arith.constant 0 : index
    %16 = vector.load %arg11[%c0_9, %c0_10] : memref<240x16xf32, #tpu.memory_space<vmem>>, vector<240x16xf32>
    tpu.vector_store %arg11[%c0_9, %c0_10], %15 {strides = array<i32>} : memref<240x16xf32, #tpu.memory_space<vmem>>, vector<240x16xf32>,
    %c1 = arith.constant 1 : index
    %c0_11 = arith.constant 0 : index
    %c0_12 = arith.constant 0 : index
    %17 = vector.load %arg4[%c1, %c0_11, %c0_12] : memref<3x24x24xbf16, #tpu.memory_space<vmem>>, vector<1x24x24xbf16>
    %18 = vector.shape_cast %17 : vector<1x24x24xbf16> to vector<24x24xbf16>
    %cst_13 = arith.constant dense<0.000000e+00> : vector<80x24xf32>
    %19 = tpu.matmul %5, %18, %cst_13 {dimension_numbers = #tpu.dot_dimension_numbers<[1], [0], [0], [1], [0, 0, 1, 1], [], []>} : vector<80x24xbf16>, vector<24x24xbf16>, vector<80x24xf32> -> vector<80x24xf32>
    %20 = vector.shape_cast %19 : vector<80x24xf32> to vector<10x8x24xf32>
    %21 = tpu.transpose %20, [0, 2, 1] : vector<10x8x24xf32> -> vector<10x24x8xf32>
    %22 = vector.shape_cast %21 : vector<10x24x8xf32> to vector<240x8xf32>
    %23 = arith.truncf %22 : vector<240x8xf32> to vector<240x8xbf16>
    %c1_14 = arith.constant 1 : index
    %c0_15 = arith.constant 0 : index
    %c0_16 = arith.constant 0 : index
    %24 = vector.load %arg5[%c1_14, %c0_15, %c0_16] : memref<3x8x16xbf16, #tpu.memory_space<vmem>>, vector<1x8x16xbf16>
    %25 = vector.shape_cast %24 : vector<1x8x16xbf16> to vector<8x16xbf16>
    %cst_17 = arith.constant dense<0.000000e+00> : vector<240x16xf32>
    %26 = tpu.matmul %23, %25, %cst_17 {dimension_numbers = #tpu.dot_dimension_numbers<[1], [0], [0], [1], [0, 0, 1, 1], [], []>} : vector<240x8xbf16>, vector<8x16xbf16>, vector<240x16xf32> -> vector<240x16xf32>
    %c0_18 = arith.constant 0 : index
    %c0_19 = arith.constant 0 : index
    %27 = vector.load %arg11[%c0_18, %c0_19] : memref<240x16xf32, #tpu.memory_space<vmem>>, vector<240x16xf32>
    %28 = arith.addf %27, %26 : vector<240x16xf32>
    %c0_20 = arith.constant 0 : index
    %c0_21 = arith.constant 0 : index
    %29 = vector.load %arg11[%c0_20, %c0_21] : memref<240x16xf32, #tpu.memory_space<vmem>>, vector<240x16xf32>
    tpu.vector_store %arg11[%c0_20, %c0_21], %28 {strides = array<i32>} : memref<240x16xf32, #tpu.memory_space<vmem>>, vector<240x16xf32>,
    %c2 = arith.constant 2 : index
    %c0_22 = arith.constant 0 : index
    %c0_23 = arith.constant 0 : index
    %30 = vector.load %arg4[%c2, %c0_22, %c0_23] : memref<3x24x24xbf16, #tpu.memory_space<vmem>>, vector<1x24x24xbf16>
    %31 = vector.shape_cast %30 : vector<1x24x24xbf16> to vector<24x24xbf16>
    %cst_24 = arith.constant dense<0.000000e+00> : vector<80x24xf32>
    %32 = tpu.matmul %5, %31, %cst_24 {dimension_numbers = #tpu.dot_dimension_numbers<[1], [0], [0], [1], [0, 0, 1, 1], [], []>} : vector<80x24xbf16>, vector<24x24xbf16>, vector<80x24xf32> -> vector<80x24xf32>
    %33 = vector.shape_cast %32 : vector<80x24xf32> to vector<10x8x24xf32>
    %34 = tpu.transpose %33, [0, 2, 1] : vector<10x8x24xf32> -> vector<10x24x8xf32>
    %35 = vector.shape_cast %34 : vector<10x24x8xf32> to vector<240x8xf32>
    %36 = arith.truncf %35 : vector<240x8xf32> to vector<240x8xbf16>
    %c2_25 = arith.constant 2 : index
    %c0_26 = arith.constant 0 : index
    %c0_27 = arith.constant 0 : index
    %37 = vector.load %arg5[%c2_25, %c0_26, %c0_27] : memref<3x8x16xbf16, #tpu.memory_space<vmem>>, vector<1x8x16xbf16>
    %38 = vector.shape_cast %37 : vector<1x8x16xbf16> to vector<8x16xbf16>
    %cst_28 = arith.constant dense<0.000000e+00> : vector<240x16xf32>
    %39 = tpu.matmul %36, %38, %cst_28 {dimension_numbers = #tpu.dot_dimension_numbers<[1], [0], [0], [1], [0, 0, 1, 1], [], []>} : vector<240x8xbf16>, vector<8x16xbf16>, vector<240x16xf32> -> vector<240x16xf32>
    %c0_29 = arith.constant 0 : index
    %c0_30 = arith.constant 0 : index
    %40 = vector.load %arg11[%c0_29, %c0_30] : memref<240x16xf32, #tpu.memory_space<vmem>>, vector<240x16xf32>
    %41 = arith.addf %40, %39 : vector<240x16xf32>
    %c0_31 = arith.constant 0 : index
    %c0_32 = arith.constant 0 : index
    %42 = vector.load %arg11[%c0_31, %c0_32] : memref<240x16xf32, #tpu.memory_space<vmem>>, vector<240x16xf32>
    tpu.vector_store %arg11[%c0_31, %c0_32], %41 {strides = array<i32>} : memref<240x16xf32, #tpu.memory_space<vmem>>, vector<240x16xf32>,
    %c0_33 = arith.constant 0 : index
    %c0_34 = arith.constant 0 : index
    %43 = vector.load %arg11[%c0_33, %c0_34] : memref<240x16xf32, #tpu.memory_space<vmem>>, vector<240x16xf32>
    %44 = vector.shape_cast %43 : vector<240x16xf32> to vector<10x24x16xf32>
    %c0_35 = arith.constant 0 : index
    %c0_36 = arith.constant 0 : index
    %45 = vector.load %arg6[%c0_35, %c0_36] : memref<24x16xf32, #tpu.memory_space<vmem>>, vector<24x16xf32>
    %46 = vector.shape_cast %45 : vector<24x16xf32> to vector<1x24x16xf32>
    %47 = vector.broadcast %46 : vector<1x24x16xf32> to vector<10x24x16xf32>
    %48 = arith.addf %44, %47 : vector<10x24x16xf32>
    %cst_37 = arith.constant 0.000000e+00 : f32
    %49 = vector.broadcast %cst_37 : f32 to vector<10x24x16xf32>
    %50 = arith.maximumf %48, %49 : vector<10x24x16xf32>
    %51 = arith.truncf %50 : vector<10x24x16xf32> to vector<10x24x16xbf16>
    %c0_38 = arith.constant 0 : index
    %c0_39 = arith.constant 0 : index
    %c0_40 = arith.constant 0 : index
    %52 = vector.load %arg12[%c0_38, %c0_39, %c0_40] : memref<10x24x16xbf16, #tpu.memory_space<vmem>>, vector<10x24x16xbf16>
    tpu.vector_store %arg12[%c0_38, %c0_39, %c0_40], %51 {strides = array<i32>} : memref<10x24x16xbf16, #tpu.memory_space<vmem>>, vector<10x24x16xbf16>,
    %c0_i32 = arith.constant 0 : i32
    %53 = arith.cmpi eq, %arg1, %c0_i32 : i32
    %54 = arith.extui %53 : i1 to i32
    %c0_i32_41 = arith.constant 0 : i32
    %55 = arith.cmpi ne, %54, %c0_i32_41 : i32
    scf.if %55 {
      %cst_100 = arith.constant 0.000000e+00 : bf16
      %112 = vector.broadcast %cst_100 : bf16 to vector<1x24x16xbf16>
      %c0_101 = arith.constant 0 : index
      %c0_102 = arith.constant 0 : index
      %c0_103 = arith.constant 0 : index
      %113 = vector.load %arg12[%c0_101, %c0_102, %c0_103] : memref<10x24x16xbf16, #tpu.memory_space<vmem>>, vector<1x24x16xbf16>
      tpu.vector_store %arg12[%c0_101, %c0_102, %c0_103], %112 {strides = array<i32>} : memref<10x24x16xbf16, #tpu.memory_space<vmem>>, vector<1x24x16xbf16>,
    } else {
    }
    %c3_i32 = arith.constant 3 : i32
    %56 = arith.cmpi eq, %arg1, %c3_i32 : i32
    %57 = arith.extui %56 : i1 to i32
    %c0_i32_42 = arith.constant 0 : i32
    %58 = arith.cmpi ne, %57, %c0_i32_42 : i32
    scf.if %58 {
      %cst_100 = arith.constant 0.000000e+00 : bf16
      %112 = vector.broadcast %cst_100 : bf16 to vector<1x24x16xbf16>
      %c9 = arith.constant 9 : index
      %c0_101 = arith.constant 0 : index
      %c0_102 = arith.constant 0 : index
      %113 = vector.load %arg12[%c9, %c0_101, %c0_102] : memref<10x24x16xbf16, #tpu.memory_space<vmem>>, vector<1x24x16xbf16>
      tpu.vector_store %arg12[%c9, %c0_101, %c0_102], %112 {strides = array<i32>} : memref<10x24x16xbf16, #tpu.memory_space<vmem>>, vector<1x24x16xbf16>,
    } else {
    }
    %c1_i32 = arith.constant 1 : i32
    %59 = arith.addi %1, %c1_i32 : i32
    %c0_43 = arith.constant 0 : index
    %60 = arith.index_cast %59 : i32 to index
    %c0_44 = arith.constant 0 : index
    %c0_45 = arith.constant 0 : index
    %61 = vector.load %arg2[%c0_43, %60, %c0_44, %c0_45] : memref<1x34x24x8xbf16, #tpu.memory_space<vmem>>, vector<1x8x24x8xbf16>
    %62 = vector.shape_cast %61 : vector<1x8x24x8xbf16> to vector<8x24x8xbf16>
    %63 = vector.shape_cast %62 : vector<8x24x8xbf16> to vector<192x8xbf16>
    %c0_46 = arith.constant 0 : index
    %c0_47 = arith.constant 0 : index
    %64 = vector.load %arg8[%c0_46, %c0_47] : memref<8x16xbf16, #tpu.memory_space<vmem>>, vector<8x16xbf16>
    %cst_48 = arith.constant dense<0.000000e+00> : vector<192x16xf32>
    %65 = tpu.matmul %63, %64, %cst_48 {dimension_numbers = #tpu.dot_dimension_numbers<[1], [0], [0], [1], [0, 0, 1, 1], [], []>} : vector<192x8xbf16>, vector<8x16xbf16>, vector<192x16xf32> -> vector<192x16xf32>
    %c0_49 = arith.constant 0 : index
    %c0_50 = arith.constant 0 : index
    %66 = vector.load %arg9[%c0_49, %c0_50] : memref<1x16xf32, #tpu.memory_space<vmem>>, vector<1x16xf32>
    %67 = vector.broadcast %66 : vector<1x16xf32> to vector<192x16xf32>
    %68 = arith.addf %65, %67 : vector<192x16xf32>
    %c0_51 = arith.constant 0 : index
    %c0_52 = arith.constant 0 : index
    %c0_53 = arith.constant 0 : index
    %69 = vector.load %arg10[%c0_51, %c0_52, %c0_53] : memref<1x192x16xf32, #tpu.memory_space<vmem>>, vector<1x192x16xf32>
    %70 = vector.shape_cast %69 : vector<1x192x16xf32> to vector<192x16xf32>
    %71 = vector.shape_cast %68 : vector<192x16xf32> to vector<1x192x16xf32>
    tpu.vector_store %arg10[%c0_51, %c0_52, %c0_53], %71 {strides = array<i32>} : memref<1x192x16xf32, #tpu.memory_space<vmem>>, vector<1x192x16xf32>,
    %c0_54 = arith.constant 0 : index
    %c0_55 = arith.constant 0 : index
    %c0_56 = arith.constant 0 : index
    %72 = vector.load %arg12[%c0_54, %c0_55, %c0_56] : memref<10x24x16xbf16, #tpu.memory_space<vmem>>, vector<8x24x16xbf16>
    %73 = vector.shape_cast %72 : vector<8x24x16xbf16> to vector<192x16xbf16>
    %c0_57 = arith.constant 0 : index
    %c0_58 = arith.constant 0 : index
    %c0_59 = arith.constant 0 : index
    %74 = vector.load %arg10[%c0_57, %c0_58, %c0_59] : memref<1x192x16xf32, #tpu.memory_space<vmem>>, vector<1x192x16xf32>
    %75 = vector.shape_cast %74 : vector<1x192x16xf32> to vector<192x16xf32>
    %c0_60 = arith.constant 0 : index
    %c0_61 = arith.constant 0 : index
    %c0_62 = arith.constant 0 : index
    %76 = vector.load %arg7[%c0_60, %c0_61, %c0_62] : memref<3x16x16xbf16, #tpu.memory_space<vmem>>, vector<1x16x16xbf16>
    %77 = vector.shape_cast %76 : vector<1x16x16xbf16> to vector<16x16xbf16>
    %cst_63 = arith.constant dense<0.000000e+00> : vector<192x16xf32>
    %78 = tpu.matmul %73, %77, %cst_63 {dimension_numbers = #tpu.dot_dimension_numbers<[1], [0], [0], [1], [0, 0, 1, 1], [], []>} : vector<192x16xbf16>, vector<16x16xbf16>, vector<192x16xf32> -> vector<192x16xf32>
    %79 = arith.addf %75, %78 : vector<192x16xf32>
    %c0_64 = arith.constant 0 : index
    %c0_65 = arith.constant 0 : index
    %c0_66 = arith.constant 0 : index
    %80 = vector.load %arg10[%c0_64, %c0_65, %c0_66] : memref<1x192x16xf32, #tpu.memory_space<vmem>>, vector<1x192x16xf32>
    %81 = vector.shape_cast %80 : vector<1x192x16xf32> to vector<192x16xf32>
    %82 = vector.shape_cast %79 : vector<192x16xf32> to vector<1x192x16xf32>
    tpu.vector_store %arg10[%c0_64, %c0_65, %c0_66], %82 {strides = array<i32>} : memref<1x192x16xf32, #tpu.memory_space<vmem>>, vector<1x192x16xf32>,
    %c1_67 = arith.constant 1 : index
    %c0_68 = arith.constant 0 : index
    %c0_69 = arith.constant 0 : index
    %83 = vector.load %arg12[%c1_67, %c0_68, %c0_69] : memref<10x24x16xbf16, #tpu.memory_space<vmem>>, vector<8x24x16xbf16>
    %84 = vector.shape_cast %83 : vector<8x24x16xbf16> to vector<192x16xbf16>
    %c0_70 = arith.constant 0 : index
    %c0_71 = arith.constant 0 : index
    %c0_72 = arith.constant 0 : index
    %85 = vector.load %arg10[%c0_70, %c0_71, %c0_72] : memref<1x192x16xf32, #tpu.memory_space<vmem>>, vector<1x192x16xf32>
    %86 = vector.shape_cast %85 : vector<1x192x16xf32> to vector<192x16xf32>
    %c1_73 = arith.constant 1 : index
    %c0_74 = arith.constant 0 : index
    %c0_75 = arith.constant 0 : index
    %87 = vector.load %arg7[%c1_73, %c0_74, %c0_75] : memref<3x16x16xbf16, #tpu.memory_space<vmem>>, vector<1x16x16xbf16>
    %88 = vector.shape_cast %87 : vector<1x16x16xbf16> to vector<16x16xbf16>
    %cst_76 = arith.constant dense<0.000000e+00> : vector<192x16xf32>
    %89 = tpu.matmul %84, %88, %cst_76 {dimension_numbers = #tpu.dot_dimension_numbers<[1], [0], [0], [1], [0, 0, 1, 1], [], []>} : vector<192x16xbf16>, vector<16x16xbf16>, vector<192x16xf32> -> vector<192x16xf32>
    %90 = arith.addf %86, %89 : vector<192x16xf32>
    %c0_77 = arith.constant 0 : index
    %c0_78 = arith.constant 0 : index
    %c0_79 = arith.constant 0 : index
    %91 = vector.load %arg10[%c0_77, %c0_78, %c0_79] : memref<1x192x16xf32, #tpu.memory_space<vmem>>, vector<1x192x16xf32>
    %92 = vector.shape_cast %91 : vector<1x192x16xf32> to vector<192x16xf32>
    %93 = vector.shape_cast %90 : vector<192x16xf32> to vector<1x192x16xf32>
    tpu.vector_store %arg10[%c0_77, %c0_78, %c0_79], %93 {strides = array<i32>} : memref<1x192x16xf32, #tpu.memory_space<vmem>>, vector<1x192x16xf32>,
    %c2_80 = arith.constant 2 : index
    %c0_81 = arith.constant 0 : index
    %c0_82 = arith.constant 0 : index
    %94 = vector.load %arg12[%c2_80, %c0_81, %c0_82] : memref<10x24x16xbf16, #tpu.memory_space<vmem>>, vector<8x24x16xbf16>
    %95 = vector.shape_cast %94 : vector<8x24x16xbf16> to vector<192x16xbf16>
    %c0_83 = arith.constant 0 : index
    %c0_84 = arith.constant 0 : index
    %c0_85 = arith.constant 0 : index
    %96 = vector.load %arg10[%c0_83, %c0_84, %c0_85] : memref<1x192x16xf32, #tpu.memory_space<vmem>>, vector<1x192x16xf32>
    %97 = vector.shape_cast %96 : vector<1x192x16xf32> to vector<192x16xf32>
    %c2_86 = arith.constant 2 : index
    %c0_87 = arith.constant 0 : index
    %c0_88 = arith.constant 0 : index
    %98 = vector.load %arg7[%c2_86, %c0_87, %c0_88] : memref<3x16x16xbf16, #tpu.memory_space<vmem>>, vector<1x16x16xbf16>
    %99 = vector.shape_cast %98 : vector<1x16x16xbf16> to vector<16x16xbf16>
    %cst_89 = arith.constant dense<0.000000e+00> : vector<192x16xf32>
    %100 = tpu.matmul %95, %99, %cst_89 {dimension_numbers = #tpu.dot_dimension_numbers<[1], [0], [0], [1], [0, 0, 1, 1], [], []>} : vector<192x16xbf16>, vector<16x16xbf16>, vector<192x16xf32> -> vector<192x16xf32>
    %101 = arith.addf %97, %100 : vector<192x16xf32>
    %c0_90 = arith.constant 0 : index
    %c0_91 = arith.constant 0 : index
    %c0_92 = arith.constant 0 : index
    %102 = vector.load %arg10[%c0_90, %c0_91, %c0_92] : memref<1x192x16xf32, #tpu.memory_space<vmem>>, vector<1x192x16xf32>
    %103 = vector.shape_cast %102 : vector<1x192x16xf32> to vector<192x16xf32>
    %104 = vector.shape_cast %101 : vector<192x16xf32> to vector<1x192x16xf32>
    tpu.vector_store %arg10[%c0_90, %c0_91, %c0_92], %104 {strides = array<i32>} : memref<1x192x16xf32, #tpu.memory_space<vmem>>, vector<1x192x16xf32>,
    %c0_93 = arith.constant 0 : index
    %c0_94 = arith.constant 0 : index
    %c0_95 = arith.constant 0 : index
    %105 = vector.load %arg10[%c0_93, %c0_94, %c0_95] : memref<1x192x16xf32, #tpu.memory_space<vmem>>, vector<1x192x16xf32>
    %106 = vector.shape_cast %105 : vector<1x192x16xf32> to vector<192x16xf32>
    %cst_96 = arith.constant 0.000000e+00 : f32
    %107 = vector.broadcast %cst_96 : f32 to vector<192x16xf32>
    %108 = arith.maximumf %106, %107 : vector<192x16xf32>
    %c0_97 = arith.constant 0 : index
    %c0_98 = arith.constant 0 : index
    %c0_99 = arith.constant 0 : index
    %109 = vector.load %arg10[%c0_97, %c0_98, %c0_99] : memref<1x192x16xf32, #tpu.memory_space<vmem>>, vector<1x192x16xf32>
    %110 = vector.shape_cast %109 : vector<1x192x16xf32> to vector<192x16xf32>
    %111 = vector.shape_cast %108 : vector<192x16xf32> to vector<1x192x16xf32>
    tpu.vector_store %arg10[%c0_97, %c0_98, %c0_99], %111 {strides = array<i32>} : memref<1x192x16xf32, #tpu.memory_space<vmem>>, vector<1x192x16xf32>,
    return
  }
  func.func @transform_0(%arg0: i32, %arg1: i32) -> (i32, i32, i32, i32) {
    %c0_i32 = arith.constant 0 : i32
    %c0_i32_0 = arith.constant 0 : i32
    %c0_i32_1 = arith.constant 0 : i32
    %c0_i32_2 = arith.constant 0 : i32
    return %arg0, %c0_i32, %c0_i32_0, %c0_i32_1 : i32, i32, i32, i32
  }
  func.func @transform_1(%arg0: i32, %arg1: i32) -> (i32, i32, i32, i32) {
    %c0_i32 = arith.constant 0 : i32
    %c0_i32_0 = arith.constant 0 : i32
    %c0_i32_1 = arith.constant 0 : i32
    %c0_i32_2 = arith.constant 0 : i32
    return %arg0, %c0_i32, %c0_i32_0, %c0_i32_1 : i32, i32, i32, i32
  }
  func.func @transform_2(%arg0: i32, %arg1: i32) -> (i32, i32, i32) {
    %c0_i32 = arith.constant 0 : i32
    %c0_i32_0 = arith.constant 0 : i32
    %c0_i32_1 = arith.constant 0 : i32
    %c0_i32_2 = arith.constant 0 : i32
    return %c0_i32, %c0_i32_0, %c0_i32_1 : i32, i32, i32
  }
  func.func @transform_3(%arg0: i32, %arg1: i32) -> (i32, i32, i32) {
    %c0_i32 = arith.constant 0 : i32
    %c0_i32_0 = arith.constant 0 : i32
    %c0_i32_1 = arith.constant 0 : i32
    %c0_i32_2 = arith.constant 0 : i32
    return %c0_i32, %c0_i32_0, %c0_i32_1 : i32, i32, i32
  }
  func.func @transform_4(%arg0: i32, %arg1: i32) -> (i32, i32) {
    %c0_i32 = arith.constant 0 : i32
    %c0_i32_0 = arith.constant 0 : i32
    %c0_i32_1 = arith.constant 0 : i32
    return %c0_i32, %c0_i32_0 : i32, i32
  }
  func.func @transform_5(%arg0: i32, %arg1: i32) -> (i32, i32, i32) {
    %c0_i32 = arith.constant 0 : i32
    %c0_i32_0 = arith.constant 0 : i32
    %c0_i32_1 = arith.constant 0 : i32
    %c0_i32_2 = arith.constant 0 : i32
    return %c0_i32, %c0_i32_0, %c0_i32_1 : i32, i32, i32
  }
  func.func @transform_6(%arg0: i32, %arg1: i32) -> (i32, i32) {
    %c0_i32 = arith.constant 0 : i32
    %c0_i32_0 = arith.constant 0 : i32
    %c0_i32_1 = arith.constant 0 : i32
    return %c0_i32, %c0_i32_0 : i32, i32
  }
  func.func @transform_7(%arg0: i32, %arg1: i32) -> (i32, i32) {
    %c0_i32 = arith.constant 0 : i32
    %c0_i32_0 = arith.constant 0 : i32
    %c0_i32_1 = arith.constant 0 : i32
    return %c0_i32, %c0_i32_0 : i32, i32
  }
  func.func @transform_8(%arg0: i32, %arg1: i32) -> (i32, i32, i32) {
    %c0_i32 = arith.constant 0 : i32
    %c0_i32_0 = arith.constant 0 : i32
    return %arg0, %arg1, %c0_i32 : i32, i32, i32
  }
}

</mosaic_0001>

<llo_original>
// kernel: tpu_custom_call.1
$region0: #{tpu_custom_call.1}
  #allocation0 [shape = 'u32[]', space=smem, size = 0x4, offset = 0x4, fixed_abs, tag = 'smem constant byte address 0x4 - core index']
  #allocation1 [shape = 'u32[144,128]{1,0:T(1,128)}', space=vmem, size = 0x12000, scoped, tag = 'internal scratch']
  #allocation2 [shape = 'f32[240,16]{1,0:T(8,128)}', space=vmem, size = 0x1e000, scoped, tag = 'scratch operand']
  #allocation3 [shape = 'bf16[10,24,16]{2,1,0:T(8,128)(2,1)}', space=vmem, size = 0xf000, scoped, tag = 'scratch operand']
  %s0 = inlined_call_operand.vmem [shape: bf16[2,34,24,8], index: 0, kind: input, shape index: {}]
  %s1 = inlined_call_operand.vmem [shape: bf16[2,34,8,24], index: 1, kind: input, shape index: {}]
  %s2 = inlined_call_operand.vmem [shape: bf16[3,24,24], index: 2, kind: input, shape index: {}]
  %s3 = inlined_call_operand.vmem [shape: bf16[3,8,16], index: 3, kind: input, shape index: {}]
  %s4 = inlined_call_operand.vmem [shape: f32[24,16], index: 4, kind: input, shape index: {}]
  %s5 = inlined_call_operand.vmem [shape: bf16[3,16,16], index: 5, kind: input, shape index: {}]
  %s6 = inlined_call_operand.vmem [shape: bf16[8,16], index: 6, kind: input, shape index: {}]
  %s7 = inlined_call_operand.vmem [shape: f32[1,16], index: 7, kind: input, shape index: {}]
  %s8 = inlined_call_operand.vmem [shape: f32[2,768,16], index: 8, kind: output, shape index: {}]
  %s9 = sld [smem:[#allocation0]]
  $region73: #{tpu_custom_call.1} parent=0
    _
  %s11 = ssub.s32 1, %s9
  %s12 = scalar_select 0, %s11, %s9
  loop: start=0, step=1, limit=10
  $region2: #{tpu_custom_call.1} parent=0 // loop_pre_header
    _
  $region3: #{tpu_custom_call.1} parent=0 // loop_header
    %s14 = sphi 0, %s18
    %p15 = scmp.ge.s32.totalorder %s14, 10
    %s21 = sphi 0, %s33
    %s22 = sphi 0, %s29
    %s23 = sphi 0, %s21
    %s24 = sphi 0, %s22
    %s25 = sphi 0, %s23
    %s26 = sphi 0, %s24
    %s36 = sphi 0, %s38
    %s39 = sphi 0, %s36
    %s40 = sphi 0, %s39
    %s56 = sphi 0, %s40
    %s62 = sphi 0, %s64
    %s65 = sphi 0, %s62
    %s66 = sphi 0, %s65
    %s82 = sphi 0, %s66
    %s86 = sphi 0, %s86
    %s88 = sphi 0, %s86
    %s89 = sphi 0, %s88
    %s103 = sphi 0, %s89
    %s107 = sphi 0, %s107
    %s109 = sphi 0, %s107
    %s110 = sphi 0, %s109
    %s124 = sphi 0, %s110
    %s128 = sphi 0, %s128
    %s130 = sphi 0, %s128
    %s131 = sphi 0, %s130
    %s145 = sphi 0, %s131
    %s149 = sphi 0, %s149
    %s151 = sphi 0, %s149
    %s152 = sphi 0, %s151
    %s166 = sphi 0, %s152
    %s170 = sphi 0, %s170
    %s172 = sphi 0, %s170
    %s173 = sphi 0, %s172
    %s187 = sphi 0, %s173
    %s191 = sphi 0, %s191
    %s193 = sphi 0, %s191
    %s194 = sphi 0, %s193
    %s208 = sphi 0, %s194
    %s216 = sphi 0, %s218
    %s219 = sphi 0, %s216
    %s220 = sphi 0, %s219
    %s236 = sphi 0, %s220
  $region4: #{tpu_custom_call.1} parent=0 // loop_header_branch
    %17 = sbr.rel (%p15) target = $region8
  $region5: #{tpu_custom_call.1} parent=0 // loop_body
    %s19 = ssub.s32 %s14, 1
    %s20 = ssub.s32 %s14, 2
    %s27 = sadd.s32 1, %s22
    %p28 = scmp.ge.s32.totalorder %s27, 4
    %s29 = scalar_select %p28, 0, %s27
    %s30 = sadd.s32 1, %s21
    %s31 = scalar_select %p28, %s30, %s21
    %p32 = scmp.ge.s32.totalorder %s31, 2
    %s33 = scalar_select %p32, 0, %s31
    %s34 = ssub.s32 %s21, %s33
    %p35 = scmp.eq.s32.totalorder %s34, 0
    %s37 = sadd.s32 %s36, 1
    %s38 = scalar_select %p35, %s36, %s37
    %p41 = pneg %p35
    %p42 = scmp.eq.s32.totalorder %s14, 7
    %p43 = por %p41, %p42
    %p44 = scmp.ne.s32.totalorder %s36, %s39
    %p45 = scmp.eq.s32.totalorder %s14, 0
    %p46 = por %p44, %p45
    %p47 = scmp.ne.s32.totalorder %s36, %s39
    %p48 = scmp.eq.s32.totalorder %s19, 7
    %p49 = por %p47, %p48
    %p50 = scmp.ne.s32.totalorder %s39, %s40
    %p51 = scmp.eq.s32.totalorder %s19, 0
    %p52 = por %p50, %p51
    %p53 = scmp.ne.s32.totalorder %s39, %s40
    %p54 = scmp.eq.s32.totalorder %s20, 7
    %p55 = por %p53, %p54
    %p57 = scmp.ne.s32.totalorder %s40, %s56
    %p58 = scmp.eq.s32.totalorder %s20, 0
    %p59 = por %p57, %p58
    %s60 = ssub.s32 %s21, %s33
    %p61 = scmp.eq.s32.totalorder %s60, 0
    %s63 = sadd.s32 %s62, 1
    %s64 = scalar_select %p61, %s62, %s63
    %p67 = pneg %p61
    %p68 = scmp.eq.s32.totalorder %s14, 7
    %p69 = por %p67, %p68
    %p70 = scmp.ne.s32.totalorder %s62, %s65
    %p71 = scmp.eq.s32.totalorder %s14, 0
    %p72 = por %p70, %p71
    %p73 = scmp.ne.s32.totalorder %s62, %s65
    %p74 = scmp.eq.s32.totalorder %s19, 7
    %p75 = por %p73, %p74
    %p76 = scmp.ne.s32.totalorder %s65, %s66
    %p77 = scmp.eq.s32.totalorder %s19, 0
    %p78 = por %p76, %p77
    %p79 = scmp.ne.s32.totalorder %s65, %s66
    %p80 = scmp.eq.s32.totalorder %s20, 7
    %p81 = por %p79, %p80
    %p83 = scmp.ne.s32.totalorder %s66, %s82
    %p84 = scmp.eq.s32.totalorder %s20, 0
    %p85 = por %p83, %p84
    %s87 = sadd.s32 %s86, 1
    %p90 = scmp.eq.s32.totalorder %s14, 7
    %p91 = scmp.ne.s32.totalorder %s86, %s88
    %p92 = scmp.eq.s32.totalorder %s14, 0
    %p93 = por %p91, %p92
    %p94 = scmp.ne.s32.totalorder %s86, %s88
    %p95 = scmp.eq.s32.totalorder %s19, 7
    %p96 = por %p94, %p95
    %p97 = scmp.ne.s32.totalorder %s88, %s89
    %p98 = scmp.eq.s32.totalorder %s19, 0
    %p99 = por %p97, %p98
    %p100 = scmp.ne.s32.totalorder %s88, %s89
    %p101 = scmp.eq.s32.totalorder %s20, 7
    %p102 = por %p100, %p101
    %p104 = scmp.ne.s32.totalorder %s89, %s103
    %p105 = scmp.eq.s32.totalorder %s20, 0
    %p106 = por %p104, %p105
    %s108 = sadd.s32 %s107, 1
    %p111 = scmp.eq.s32.totalorder %s14, 7
    %p112 = scmp.ne.s32.totalorder %s107, %s109
    %p113 = scmp.eq.s32.totalorder %s14, 0
    %p114 = por %p112, %p113
    %p115 = scmp.ne.s32.totalorder %s107, %s109
    %p116 = scmp.eq.s32.totalorder %s19, 7
    %p117 = por %p115, %p116
    %p118 = scmp.ne.s32.totalorder %s109, %s110
    %p119 = scmp.eq.s32.totalorder %s19, 0
    %p120 = por %p118, %p119
    %p121 = scmp.ne.s32.totalorder %s109, %s110
    %p122 = scmp.eq.s32.totalorder %s20, 7
    %p123 = por %p121, %p122
    %p125 = scmp.ne.s32.totalorder %s110, %s124
    %p126 = scmp.eq.s32.totalorder %s20, 0
    %p127 = por %p125, %p126
    %s129 = sadd.s32 %s128, 1
    %p132 = scmp.eq.s32.totalorder %s14, 7
    %p133 = scmp.ne.s32.totalorder %s128, %s130
    %p134 = scmp.eq.s32.totalorder %s14, 0
    %p135 = por %p133, %p134
    %p136 = scmp.ne.s32.totalorder %s128, %s130
    %p137 = scmp.eq.s32.totalorder %s19, 7
    %p138 = por %p136, %p137
    %p139 = scmp.ne.s32.totalorder %s130, %s131
    %p140 = scmp.eq.s32.totalorder %s19, 0
    %p141 = por %p139, %p140
    %p142 = scmp.ne.s32.totalorder %s130, %s131
    %p143 = scmp.eq.s32.totalorder %s20, 7
    %p144 = por %p142, %p143
    %p146 = scmp.ne.s32.totalorder %s131, %s145
    %p147 = scmp.eq.s32.totalorder %s20, 0
    %p148 = por %p146, %p147
    %s150 = sadd.s32 %s149, 1
    %p153 = scmp.eq.s32.totalorder %s14, 7
    %p154 = scmp.ne.s32.totalorder %s149, %s151
    %p155 = scmp.eq.s32.totalorder %s14, 0
    %p156 = por %p154, %p155
    %p157 = scmp.ne.s32.totalorder %s149, %s151
    %p158 = scmp.eq.s32.totalorder %s19, 7
    %p159 = por %p157, %p158
    %p160 = scmp.ne.s32.totalorder %s151, %s152
    %p161 = scmp.eq.s32.totalorder %s19, 0
    %p162 = por %p160, %p161
    %p163 = scmp.ne.s32.totalorder %s151, %s152
    %p164 = scmp.eq.s32.totalorder %s20, 7
    %p165 = por %p163, %p164
    %p167 = scmp.ne.s32.totalorder %s152, %s166
    %p168 = scmp.eq.s32.totalorder %s20, 0
    %p169 = por %p167, %p168
    %s171 = sadd.s32 %s170, 1
    %p174 = scmp.eq.s32.totalorder %s14, 7
    %p175 = scmp.ne.s32.totalorder %s170, %s172
    %p176 = scmp.eq.s32.totalorder %s14, 0
    %p177 = por %p175, %p176
    %p178 = scmp.ne.s32.totalorder %s170, %s172
    %p179 = scmp.eq.s32.totalorder %s19, 7
    %p180 = por %p178, %p179
    %p181 = scmp.ne.s32.totalorder %s172, %s173
    %p182 = scmp.eq.s32.totalorder %s19, 0
    %p183 = por %p181, %p182
    %p184 = scmp.ne.s32.totalorder %s172, %s173
    %p185 = scmp.eq.s32.totalorder %s20, 7
    %p186 = por %p184, %p185
    %p188 = scmp.ne.s32.totalorder %s173, %s187
    %p189 = scmp.eq.s32.totalorder %s20, 0
    %p190 = por %p188, %p189
    %s192 = sadd.s32 %s191, 1
    %p195 = scmp.eq.s32.totalorder %s14, 7
    %p196 = scmp.ne.s32.totalorder %s191, %s193
    %p197 = scmp.eq.s32.totalorder %s14, 0
    %p198 = por %p196, %p197
    %p199 = scmp.ne.s32.totalorder %s191, %s193
    %p200 = scmp.eq.s32.totalorder %s19, 7
    %p201 = por %p199, %p200
    %p202 = scmp.ne.s32.totalorder %s193, %s194
    %p203 = scmp.eq.s32.totalorder %s19, 0
    %p204 = por %p202, %p203
    %p205 = scmp.ne.s32.totalorder %s193, %s194
    %p206 = scmp.eq.s32.totalorder %s20, 7
    %p207 = por %p205, %p206
    %p209 = scmp.ne.s32.totalorder %s194, %s208
    %p210 = scmp.eq.s32.totalorder %s20, 0
    %p211 = por %p209, %p210
    %s212 = ssub.s32 %s21, %s33
    %s213 = ssub.s32 %s22, %s29
    %s214 = sor.u32 %s212, %s213
    %p215 = scmp.eq.s32.totalorder %s214, 0
    %s217 = sadd.s32 %s216, 1
    %s218 = scalar_select %p215, %s216, %s217
    %p221 = pneg %p215
    %p222 = scmp.eq.s32.totalorder %s14, 7
    %p223 = por %p221, %p222
    %p224 = scmp.ne.s32.totalorder %s216, %s219
    %p225 = scmp.eq.s32.totalorder %s14, 0
    %p226 = por %p224, %p225
    %p227 = scmp.ne.s32.totalorder %s216, %s219
    %p228 = scmp.eq.s32.totalorder %s19, 7
    %p229 = por %p227, %p228
    %p230 = scmp.ne.s32.totalorder %s219, %s220
    %p231 = scmp.eq.s32.totalorder %s19, 0
    %p232 = por %p230, %p231
    %p233 = scmp.ne.s32.totalorder %s219, %s220
    %p234 = scmp.eq.s32.totalorder %s20, 7
    %p235 = por %p233, %p234
    %p237 = scmp.ne.s32.totalorder %s220, %s236
    %p238 = scmp.eq.s32.totalorder %s20, 0
    %p239 = por %p237, %p238
    %p240 = scmp.le.s32.totalorder 1, %s14
    %p241 = scmp.lt.s32.totalorder %s14, 9
    %p242 = pnand %p240, %p241
    %p243 = pneg %p242
    // Predicated region
    $region9: #{tpu_custom_call.1} parent=5 // pred_check
      _
    $region10: #{tpu_custom_call.1} parent=5 // pred_check_branch
      %245 = sbr.rel (%p242) target = $region12
    $region11: #{tpu_custom_call.1} parent=5 // pred_region
      %s246 = ssub.s32 %s14, 1
      // Predicated region
      $region13: #{tpu_custom_call.1} parent=11 // pred_check
        %p247 = pneg %p99
      $region14: #{tpu_custom_call.1} parent=11 // pred_check_branch
        %249 = sbr.rel (%p247) target = $region16
      $region15: #{tpu_custom_call.1} parent=11 // pred_region
        _
      $region16: #{tpu_custom_call.1} parent=11 // pred_fallthru
        _
      // Predicated region
      $region17: #{tpu_custom_call.1} parent=11 // pred_check
        %p250 = pneg %p120
      $region18: #{tpu_custom_call.1} parent=11 // pred_check_branch
        %252 = sbr.rel (%p250) target = $region20
      $region19: #{tpu_custom_call.1} parent=11 // pred_region
        _
      $region20: #{tpu_custom_call.1} parent=11 // pred_fallthru
        _
      // Predicated region
      $region21: #{tpu_custom_call.1} parent=11 // pred_check
        %p253 = pneg %p141
      $region22: #{tpu_custom_call.1} parent=11 // pred_check_branch
        %255 = sbr.rel (%p253) target = $region24
      $region23: #{tpu_custom_call.1} parent=11 // pred_region
        _
      $region24: #{tpu_custom_call.1} parent=11 // pred_fallthru
        _
      // Predicated region
      $region25: #{tpu_custom_call.1} parent=11 // pred_check
        %p256 = pneg %p162
      $region26: #{tpu_custom_call.1} parent=11 // pred_check_branch
        %258 = sbr.rel (%p256) target = $region28
      $region27: #{tpu_custom_call.1} parent=11 // pred_region
        _
      $region28: #{tpu_custom_call.1} parent=11 // pred_fallthru
        _
      // Predicated region
      $region29: #{tpu_custom_call.1} parent=11 // pred_check
        %p259 = pneg %p183
      $region30: #{tpu_custom_call.1} parent=11 // pred_check_branch
        %261 = sbr.rel (%p259) target = $region32
      $region31: #{tpu_custom_call.1} parent=11 // pred_region
        _
      $region32: #{tpu_custom_call.1} parent=11 // pred_fallthru
        _
      // Predicated region
      $region33: #{tpu_custom_call.1} parent=11 // pred_check
        %p262 = pneg %p204
      $region34: #{tpu_custom_call.1} parent=11 // pred_check_branch
        %264 = sbr.rel (%p262) target = $region36
      $region35: #{tpu_custom_call.1} parent=11 // pred_region
        _
      $region36: #{tpu_custom_call.1} parent=11 // pred_fallthru
        _
    $region12: #{tpu_custom_call.1} parent=5 // pred_fallthru
      _
    %p265 = scmp.lt.s32.totalorder %s14, 8
    // Predicated region
    $region37: #{tpu_custom_call.1} parent=5 // pred_check
      %p266 = pneg %p265
    $region38: #{tpu_custom_call.1} parent=5 // pred_check_branch
      %268 = sbr.rel (%p266) target = $region40
    $region39: #{tpu_custom_call.1} parent=5 // pred_region
      // Predicated region
      $region41: #{tpu_custom_call.1} parent=39 // pred_check
        %p269 = pneg %p46
      $region42: #{tpu_custom_call.1} parent=39 // pred_check_branch
        %271 = sbr.rel (%p269) target = $region44
      $region43: #{tpu_custom_call.1} parent=39 // pred_region
        %p272 = scmp.lt.s32.totalorder %s21, 1
        %s273 = scalar_select %p272, %s21, 1
        %s274 = smul.addr %s273, 102
        %s275 = smul.addr %s274, 4
        %s276 = scalar_lea.vmem %s0, %s275
      $region44: #{tpu_custom_call.1} parent=39 // pred_fallthru
        _
      // Predicated region
      $region45: #{tpu_custom_call.1} parent=39 // pred_check
        %p277 = pneg %p72
      $region46: #{tpu_custom_call.1} parent=39 // pred_check_branch
        %279 = sbr.rel (%p277) target = $region48
      $region47: #{tpu_custom_call.1} parent=39 // pred_region
        %p280 = scmp.lt.s32.totalorder %s21, 1
        %s281 = scalar_select %p280, %s21, 1
        %s282 = smul.addr %s281, 34
        %s283 = smul.addr %s282, 4
        %s284 = scalar_lea.vmem %s1, %s283
      $region48: #{tpu_custom_call.1} parent=39 // pred_fallthru
        _
    $region40: #{tpu_custom_call.1} parent=5 // pred_fallthru
      _
    %p285 = scmp.le.s32.totalorder 1, %s14
    %p286 = scmp.lt.s32.totalorder %s14, 9
    %p287 = pnand %p285, %p286
    %p288 = pneg %p287
    // Predicated region
    $region49: #{tpu_custom_call.1} parent=5 // pred_check
      _
    $region50: #{tpu_custom_call.1} parent=5 // pred_check_branch
      %290 = sbr.rel (%p287) target = $region52
    $region51: #{tpu_custom_call.1} parent=5 // pred_region
      %s291 = ssub.s32 %s14, 1
      %p292 = scmp.lt.s32.totalorder %s23, 1
      %s293 = scalar_select %p292, %s23, 1
      %s294 = smul.addr %s293, 102
      %s295 = smul.addr %s294, 4
      %s296 = scalar_lea.vmem %s0, %s295
      %p297 = pneg %p52
      %p298 = pneg %p49
      %p299 = scmp.lt.s32.totalorder %s23, 1
      %s300 = scalar_select %p299, %s23, 1
      %s301 = smul.addr %s300, 34
      %s302 = smul.addr %s301, 4
      %s303 = scalar_lea.vmem %s1, %s302
      %p304 = pneg %p78
      %p305 = pneg %p75
      %p306 = pneg %p99
      %p307 = pneg %p96
      %p308 = pneg %p120
      %p309 = pneg %p117
      %p310 = pneg %p141
      %p311 = pneg %p138
      %p312 = pneg %p162
      %p313 = pneg %p159
      %p314 = pneg %p183
      %p315 = pneg %p180
      %p316 = pneg %p204
      %p317 = pneg %p201
      %p318 = pneg %p232
      %p319 = pneg %p229
      %s320 = smul.u32 24, %s24
      %p321 = scmp.lt.s32.totalorder %s23, 1
      %s322 = scalar_select %p321, %s23, 1
      %p323 = scmp.lt.s32.totalorder %s320, 95
      %s324 = scalar_select %p323, %s320, 95
      %s325 = smul.addr %s322, 96
      %s326 = sadd.s32 %s324, %s325
      %s327 = smul.addr %s326, 8
      %s328 = scalar_lea.vmem %s8, %s327
      %p329 = scmp.lt.s32.totalorder %s23, 1
      %s330 = scalar_select %p329, %s23, 1
      %s331 = smul.addr %s330, 102
      %s332 = smul.addr %s331, 4
      %s333 = scalar_lea.vmem %s0, %s332
      %p334 = scmp.lt.s32.totalorder %s23, 1
      %s335 = scalar_select %p334, %s23, 1
      %s336 = smul.addr %s335, 34
      %s337 = smul.addr %s336, 4
      %s338 = scalar_lea.vmem %s1, %s337
      %s339 = smul.u32 24, %s24
      %p340 = scmp.lt.s32.totalorder %s23, 1
      %s341 = scalar_select %p340, %s23, 1
      %p342 = scmp.lt.s32.totalorder %s339, 95
      %s343 = scalar_select %p342, %s339, 95
      %s344 = smul.addr %s341, 96
      %s345 = sadd.s32 %s343, %s344
      %s346 = smul.addr %s345, 8
      %s347 = scalar_lea.vmem %s8, %s346
      %s348 = smul.u32 24, %s24
      %s350 = smul.u32 %s24, 8
      %s351 = smul.addr %s350, 4
      %s352 = scalar_lea.vmem %s338, %s351
      %v353 = vld [vmem:[%s352] sm:$0xf]
      %v354 = vld [vmem:[%s352 + $0x4] sm:$0xf]
      %v355 = vld [vmem:[%s352 + $0x8] sm:$0xf]
      %v356 = vld [vmem:[%s352 + $0xc] sm:$0xf]
      %v357 = vld [vmem:[%s352 + $0x10] sm:$0xf]
      %v358 = vld [vmem:[%s352 + $0x14] sm:$0xf]
      %v359 = vld [vmem:[%s352 + $0x18] sm:$0xf]
      %v360 = vld [vmem:[%s352 + $0x1c] sm:$0xf]
      %v361 = vld [vmem:[%s352 + $0x20] sm:$0xf]
      %v362 = vld [vmem:[%s352 + $0x24] sm:$0xf]
      %v363 = vld [vmem:[%s2] sm:$0xf]
      %v364 = vld [vmem:[%s2 + $0x4] sm:$0xf]
      %v365 = vld [vmem:[%s2 + $0x8] sm:$0xf]
      %v376 = vunpack.c.l.b16 %v353
      %v377 = vunpack.c.l.b16 %v354
      %v378 = vunpack.c.l.b16 %v355
      %v379 = vunpack.c.l.b16 %v356
      %v380 = vunpack.c.l.b16 %v357
      %v381 = vunpack.c.l.b16 %v358
      %v382 = vunpack.c.l.b16 %v359
      %v383 = vunpack.c.l.b16 %v360
      %v384 = vunpack.c.l.b16 %v361
      %v385 = vunpack.c.l.b16 %v362
      %v386 = vpack.c.b16 %v377, %v376
      %v387 = vpack.c.b16 %v379, %v378
      %v388 = vpack.c.b16 %v381, %v380
      %v389 = vpack.c.b16 %v383, %v382
      %v390 = vpack.c.b16 %v385, %v384
      %v394 = vunpack.c.l.b16 %v363
      %v395 = vunpack.c.l.b16 %v364
      %v396 = vunpack.c.l.b16 %v365
      %v397 = vpack.c.b16 %v395, %v394
      %v398 = vpack.c.b16 %v396, %v396
      %vm400 = vcmask 195584
      %v402 = vsel %vm400, %v386, 0
      %v405 = vsel %vm400, %v387, 0
      %v408 = vsel %vm400, %v388, 0
      %v411 = vsel %vm400, %v389, 0
      %v414 = vsel %vm400, %v390, 0
      %vm416 = vcmask 1043456
      %v418 = vsel %vm416, %v398, 0
      %420 = vmatprep.subr.bf16.mxu0 0
      %421 = vmatpush1.bf16.msra.mxu0 0
      %422 = vmatprep.subr.bf16.mxu0 0
      %423 = vmatpush1.bf16.msra.mxu0 0
      %424 = vmatprep.subr.bf16.mxu0 0
      %425 = vmatpush1.bf16.msra.mxu0 0
      %426 = vmatprep.subr.bf16.mxu0 0
      %427 = vmatpush1.bf16.msra.mxu0 0
      %428 = vmatprep.subr.bf16.mxu0 0
      %429 = vmatpush1.bf16.msra.mxu0 0
      %430 = vmatprep.subr.bf16.mxu0 0
      %431 = vmatpush1.bf16.msra.mxu0 0
      %432 = vmatprep.subr.bf16.mxu0 0
      %433 = vmatpush1.bf16.msra.mxu0 %v418
      %434 = vmatprep.subr.bf16.mxu0 0
      %435 = vmatpush1.bf16.msra.mxu0 %v397
      %436 = vmatprep.subr.bf16.mxu0 0
      %437 = vmatpush2.bf16.msra.mxu0 0
      %438 = vmatprep.subr.bf16.mxu0 0
      %439 = vmatpush2.bf16.msra.mxu0 0
      %440 = vmatprep.subr.bf16.mxu0 0
      %441 = vmatpush2.bf16.msra.mxu0 0
      %442 = vmatprep.subr.bf16.mxu0 0
      %443 = vmatpush2.bf16.msra.mxu0 0
      %444 = vmatprep.subr.bf16.mxu0 0
      %445 = vmatpush2.bf16.msra.mxu0 0
      %446 = vmatprep.subr.bf16.mxu0 0
      %447 = vmatpush2.bf16.msra.mxu0 0
      %448 = vmatprep.subr.bf16.mxu0 0
      %449 = vmatpush2.bf16.msra.mxu0 0
      %450 = vmatprep.subr.bf16.mxu0 0
      %451 = vmatpush2.bf16.msra.mxu0 0
      %452 = vmatprep.mubr.bf16.mxu0 0
      %453 = vmatmul.mubr.bf16.gmra.mxu0 %v402
      %v454 = vpop.f32.mrf.mxu0
      %v455 = vadd.f32 0.0, %v454
      %v456 = vpop.f32.mrf.mxu0
      %v457 = vpop.f32.mrf.mxu0
      %v458 = vadd.f32 0.0, %v457
      %v459 = vpop.f32.mrf.mxu0
      %460 = vmatprep.mubr.bf16.mxu0 0
      %461 = vmatmul.mubr.bf16.gmra.mxu0 %v405
      %v462 = vpop.f32.mrf.mxu0
      %v463 = vadd.f32 0.0, %v462
      %v464 = vpop.f32.mrf.mxu0
      %v465 = vpop.f32.mrf.mxu0
      %v466 = vadd.f32 0.0, %v465
      %v467 = vpop.f32.mrf.mxu0
      %468 = vmatprep.mubr.bf16.mxu0 0
      %469 = vmatmul.mubr.bf16.gmra.mxu0 %v408
      %v470 = vpop.f32.mrf.mxu0
      %v471 = vadd.f32 0.0, %v470
      %v472 = vpop.f32.mrf.mxu0
      %v473 = vpop.f32.mrf.mxu0
      %v474 = vadd.f32 0.0, %v473
      %v475 = vpop.f32.mrf.mxu0
      %476 = vmatprep.mubr.bf16.mxu0 0
      %477 = vmatmul.mubr.bf16.gmra.mxu0 %v411
      %v478 = vpop.f32.mrf.mxu0
      %v479 = vadd.f32 0.0, %v478
      %v480 = vpop.f32.mrf.mxu0
      %v481 = vpop.f32.mrf.mxu0
      %v482 = vadd.f32 0.0, %v481
      %v483 = vpop.f32.mrf.mxu0
      %484 = vmatprep.mubr.bf16.mxu0 0
      %485 = vmatmul.mubr.bf16.gmra.mxu0 %v414
      %v486 = vpop.f32.mrf.mxu0
      %v487 = vadd.f32 0.0, %v486
      %v488 = vpop.f32.mrf.mxu0
      %v489 = vpop.f32.mrf.mxu0
      %v490 = vadd.f32 0.0, %v489
      %v491 = vpop.f32.mrf.mxu0
      %492 = vdwg.mxu0
      %493 = vxpose.xlu0.b32.start [1/16] %v455, 128
      %494 = vxpose.xlu0.b32.cont [2/16] 0.0, 128
      %495 = vxpose.xlu0.b32.cont [3/16] 0.0, 128
      %496 = vxpose.xlu0.b32.cont [4/16] 0.0, 128
      %497 = vxpose.xlu0.b32.cont [5/16] 0.0, 128
      %498 = vxpose.xlu0.b32.cont [6/16] 0.0, 128
      %499 = vxpose.xlu0.b32.cont [7/16] 0.0, 128
      %500 = vxpose.xlu0.b32.cont [8/16] 0.0, 128
      %501 = vxpose.xlu0.b32.cont [9/16] 0.0, 128
      %502 = vxpose.xlu0.b32.cont [10/16] 0.0, 128
      %503 = vxpose.xlu0.b32.cont [11/16] 0.0, 128
      %504 = vxpose.xlu0.b32.cont [12/16] 0.0, 128
      %505 = vxpose.xlu0.b32.cont [13/16] 0.0, 128
      %506 = vxpose.xlu0.b32.cont [14/16] 0.0, 128
      %507 = vxpose.xlu0.b32.cont [15/16] 0.0, 128
      %508 = vxpose.xlu0.b32.end [16/16] 0.0, 128
      %v509 = vpop.trf.xlu0
      %v510 = vpop.trf.xlu0
      %v511 = vpop.trf.xlu0
      %v512 = vpop.trf.xlu0
      %v513 = vpop.trf.xlu0
      %v514 = vpop.trf.xlu0
      %v515 = vpop.trf.xlu0
      %v516 = vpop.trf.xlu0
      %v517 = vpop.trf.xlu0
      %v518 = vpop.trf.xlu0
      %v519 = vpop.trf.xlu0
      %v520 = vpop.trf.xlu0
      %v521 = vpop.trf.xlu0
      %v522 = vpop.trf.xlu0
      %v523 = vpop.trf.xlu0
      %v524 = vpop.trf.xlu0
      %525 = vxpose.xlu0.b32.start [1/16] %v458, 128
      %526 = vxpose.xlu0.b32.cont [2/16] 0.0, 128
      %527 = vxpose.xlu0.b32.cont [3/16] 0.0, 128
      %528 = vxpose.xlu0.b32.cont [4/16] 0.0, 128
      %529 = vxpose.xlu0.b32.cont [5/16] 0.0, 128
      %530 = vxpose.xlu0.b32.cont [6/16] 0.0, 128
      %531 = vxpose.xlu0.b32.cont [7/16] 0.0, 128
      %532 = vxpose.xlu0.b32.cont [8/16] 0.0, 128
      %533 = vxpose.xlu0.b32.cont [9/16] 0.0, 128
      %534 = vxpose.xlu0.b32.cont [10/16] 0.0, 128
      %535 = vxpose.xlu0.b32.cont [11/16] 0.0, 128
      %536 = vxpose.xlu0.b32.cont [12/16] 0.0, 128
      %537 = vxpose.xlu0.b32.cont [13/16] 0.0, 128
      %538 = vxpose.xlu0.b32.cont [14/16] 0.0, 128
      %539 = vxpose.xlu0.b32.cont [15/16] 0.0, 128
      %540 = vxpose.xlu0.b32.end [16/16] 0.0, 128
      %v541 = vpop.trf.xlu0
      %v542 = vpop.trf.xlu0
      %v543 = vpop.trf.xlu0
      %v544 = vpop.trf.xlu0
      %v545 = vpop.trf.xlu0
      %v546 = vpop.trf.xlu0
      %v547 = vpop.trf.xlu0
      %v548 = vpop.trf.xlu0
      %v549 = vpop.trf.xlu0
      %v550 = vpop.trf.xlu0
      %v551 = vpop.trf.xlu0
      %v552 = vpop.trf.xlu0
      %v553 = vpop.trf.xlu0
      %v554 = vpop.trf.xlu0
      %v555 = vpop.trf.xlu0
      %v556 = vpop.trf.xlu0
      %557 = vxpose.xlu0.b32.start [1/16] %v463, 128
      %558 = vxpose.xlu0.b32.cont [2/16] 0.0, 128
      %559 = vxpose.xlu0.b32.cont [3/16] 0.0, 128
      %560 = vxpose.xlu0.b32.cont [4/16] 0.0, 128
      %561 = vxpose.xlu0.b32.cont [5/16] 0.0, 128
      %562 = vxpose.xlu0.b32.cont [6/16] 0.0, 128
      %563 = vxpose.xlu0.b32.cont [7/16] 0.0, 128
      %564 = vxpose.xlu0.b32.cont [8/16] 0.0, 128
      %565 = vxpose.xlu0.b32.cont [9/16] 0.0, 128
      %566 = vxpose.xlu0.b32.cont [10/16] 0.0, 128
      %567 = vxpose.xlu0.b32.cont [11/16] 0.0, 128
      %568 = vxpose.xlu0.b32.cont [12/16] 0.0, 128
      %569 = vxpose.xlu0.b32.cont [13/16] 0.0, 128
      %570 = vxpose.xlu0.b32.cont [14/16] 0.0, 128
      %571 = vxpose.xlu0.b32.cont [15/16] 0.0, 128
      %572 = vxpose.xlu0.b32.end [16/16] 0.0, 128
      %v573 = vpop.trf.xlu0
      %v574 = vpop.trf.xlu0
      %v575 = vpop.trf.xlu0
      %v576 = vpop.trf.xlu0
      %v577 = vpop.trf.xlu0
      %v578 = vpop.trf.xlu0
      %v579 = vpop.trf.xlu0
      %v580 = vpop.trf.xlu0
      %v581 = vpop.trf.xlu0
      %v582 = vpop.trf.xlu0
      %v583 = vpop.trf.xlu0
      %v584 = vpop.trf.xlu0
      %v585 = vpop.trf.xlu0
      %v586 = vpop.trf.xlu0
      %v587 = vpop.trf.xlu0
      %v588 = vpop.trf.xlu0
      %589 = vxpose.xlu0.b32.start [1/16] %v466, 128
      %590 = vxpose.xlu0.b32.cont [2/16] 0.0, 128
      %591 = vxpose.xlu0.b32.cont [3/16] 0.0, 128
      %592 = vxpose.xlu0.b32.cont [4/16] 0.0, 128
      %593 = vxpose.xlu0.b32.cont [5/16] 0.0, 128
      %594 = vxpose.xlu0.b32.cont [6/16] 0.0, 128
      %595 = vxpose.xlu0.b32.cont [7/16] 0.0, 128
      %596 = vxpose.xlu0.b32.cont [8/16] 0.0, 128
      %597 = vxpose.xlu0.b32.cont [9/16] 0.0, 128
      %598 = vxpose.xlu0.b32.cont [10/16] 0.0, 128
      %599 = vxpose.xlu0.b32.cont [11/16] 0.0, 128
      %600 = vxpose.xlu0.b32.cont [12/16] 0.0, 128
      %601 = vxpose.xlu0.b32.cont [13/16] 0.0, 128
      %602 = vxpose.xlu0.b32.cont [14/16] 0.0, 128
      %603 = vxpose.xlu0.b32.cont [15/16] 0.0, 128
      %604 = vxpose.xlu0.b32.end [16/16] 0.0, 128
      %v605 = vpop.trf.xlu0
      %v606 = vpop.trf.xlu0
      %v607 = vpop.trf.xlu0
      %v608 = vpop.trf.xlu0
      %v609 = vpop.trf.xlu0
      %v610 = vpop.trf.xlu0
      %v611 = vpop.trf.xlu0
      %v612 = vpop.trf.xlu0
      %v613 = vpop.trf.xlu0
      %v614 = vpop.trf.xlu0
      %v615 = vpop.trf.xlu0
      %v616 = vpop.trf.xlu0
      %v617 = vpop.trf.xlu0
      %v618 = vpop.trf.xlu0
      %v619 = vpop.trf.xlu0
      %v620 = vpop.trf.xlu0
      %621 = vxpose.xlu0.b32.start [1/16] %v471, 128
      %622 = vxpose.xlu0.b32.cont [2/16] 0.0, 128
      %623 = vxpose.xlu0.b32.cont [3/16] 0.0, 128
      %624 = vxpose.xlu0.b32.cont [4/16] 0.0, 128
      %625 = vxpose.xlu0.b32.cont [5/16] 0.0, 128
      %626 = vxpose.xlu0.b32.cont [6/16] 0.0, 128
      %627 = vxpose.xlu0.b32.cont [7/16] 0.0, 128
      %628 = vxpose.xlu0.b32.cont [8/16] 0.0, 128
      %629 = vxpose.xlu0.b32.cont [9/16] 0.0, 128
      %630 = vxpose.xlu0.b32.cont [10/16] 0.0, 128
      %631 = vxpose.xlu0.b32.cont [11/16] 0.0, 128
      %632 = vxpose.xlu0.b32.cont [12/16] 0.0, 128
      %633 = vxpose.xlu0.b32.cont [13/16] 0.0, 128
      %634 = vxpose.xlu0.b32.cont [14/16] 0.0, 128
      %635 = vxpose.xlu0.b32.cont [15/16] 0.0, 128
      %636 = vxpose.xlu0.b32.end [16/16] 0.0, 128
      %v637 = vpop.trf.xlu0
      %v638 = vpop.trf.xlu0
      %v639 = vpop.trf.xlu0
      %v640 = vpop.trf.xlu0
      %v641 = vpop.trf.xlu0
      %v642 = vpop.trf.xlu0
      %v643 = vpop.trf.xlu0
      %v644 = vpop.trf.xlu0
      %v645 = vpop.trf.xlu0
      %v646 = vpop.trf.xlu0
      %v647 = vpop.trf.xlu0
      %v648 = vpop.trf.xlu0
      %v649 = vpop.trf.xlu0
      %v650 = vpop.trf.xlu0
      %v651 = vpop.trf.xlu0
      %v652 = vpop.trf.xlu0
      %653 = vxpose.xlu0.b32.start [1/16] %v474, 128
      %654 = vxpose.xlu0.b32.cont [2/16] 0.0, 128
      %655 = vxpose.xlu0.b32.cont [3/16] 0.0, 128
      %656 = vxpose.xlu0.b32.cont [4/16] 0.0, 128
      %657 = vxpose.xlu0.b32.cont [5/16] 0.0, 128
      %658 = vxpose.xlu0.b32.cont [6/16] 0.0, 128
      %659 = vxpose.xlu0.b32.cont [7/16] 0.0, 128
      %660 = vxpose.xlu0.b32.cont [8/16] 0.0, 128
      %661 = vxpose.xlu0.b32.cont [9/16] 0.0, 128
      %662 = vxpose.xlu0.b32.cont [10/16] 0.0, 128
      %663 = vxpose.xlu0.b32.cont [11/16] 0.0, 128
      %664 = vxpose.xlu0.b32.cont [12/16] 0.0, 128
      %665 = vxpose.xlu0.b32.cont [13/16] 0.0, 128
      %666 = vxpose.xlu0.b32.cont [14/16] 0.0, 128
      %667 = vxpose.xlu0.b32.cont [15/16] 0.0, 128
      %668 = vxpose.xlu0.b32.end [16/16] 0.0, 128
      %v669 = vpop.trf.xlu0
      %v670 = vpop.trf.xlu0
      %v671 = vpop.trf.xlu0
      %v672 = vpop.trf.xlu0
      %v673 = vpop.trf.xlu0
      %v674 = vpop.trf.xlu0
      %v675 = vpop.trf.xlu0
      %v676 = vpop.trf.xlu0
      %v677 = vpop.trf.xlu0
      %v678 = vpop.trf.xlu0
      %v679 = vpop.trf.xlu0
      %v680 = vpop.trf.xlu0
      %v681 = vpop.trf.xlu0
      %v682 = vpop.trf.xlu0
      %v683 = vpop.trf.xlu0
      %v684 = vpop.trf.xlu0
      %685 = vxpose.xlu0.b32.start [1/16] %v479, 128
      %686 = vxpose.xlu0.b32.cont [2/16] 0.0, 128
      %687 = vxpose.xlu0.b32.cont [3/16] 0.0, 128
      %688 = vxpose.xlu0.b32.cont [4/16] 0.0, 128
      %689 = vxpose.xlu0.b32.cont [5/16] 0.0, 128
      %690 = vxpose.xlu0.b32.cont [6/16] 0.0, 128
      %691 = vxpose.xlu0.b32.cont [7/16] 0.0, 128
      %692 = vxpose.xlu0.b32.cont [8/16] 0.0, 128
      %693 = vxpose.xlu0.b32.cont [9/16] 0.0, 128
      %694 = vxpose.xlu0.b32.cont [10/16] 0.0, 128
      %695 = vxpose.xlu0.b32.cont [11/16] 0.0, 128
      %696 = vxpose.xlu0.b32.cont [12/16] 0.0, 128
      %697 = vxpose.xlu0.b32.cont [13/16] 0.0, 128
      %698 = vxpose.xlu0.b32.cont [14/16] 0.0, 128
      %699 = vxpose.xlu0.b32.cont [15/16] 0.0, 128
      %700 = vxpose.xlu0.b32.end [16/16] 0.0, 128
      %v701 = vpop.trf.xlu0
      %v702 = vpop.trf.xlu0
      %v703 = vpop.trf.xlu0
      %v704 = vpop.trf.xlu0
      %v705 = vpop.trf.xlu0
      %v706 = vpop.trf.xlu0
      %v707 = vpop.trf.xlu0
      %v708 = vpop.trf.xlu0
      %v709 = vpop.trf.xlu0
      %v710 = vpop.trf.xlu0
      %v711 = vpop.trf.xlu0
      %v712 = vpop.trf.xlu0
      %v713 = vpop.trf.xlu0
      %v714 = vpop.trf.xlu0
      %v715 = vpop.trf.xlu0
      %v716 = vpop.trf.xlu0
      %717 = vxpose.xlu0.b32.start [1/16] %v482, 128
      %718 = vxpose.xlu0.b32.cont [2/16] 0.0, 128
      %719 = vxpose.xlu0.b32.cont [3/16] 0.0, 128
      %720 = vxpose.xlu0.b32.cont [4/16] 0.0, 128
      %721 = vxpose.xlu0.b32.cont [5/16] 0.0, 128
      %722 = vxpose.xlu0.b32.cont [6/16] 0.0, 128
      %723 = vxpose.xlu0.b32.cont [7/16] 0.0, 128
      %724 = vxpose.xlu0.b32.cont [8/16] 0.0, 128
      %725 = vxpose.xlu0.b32.cont [9/16] 0.0, 128
      %726 = vxpose.xlu0.b32.cont [10/16] 0.0, 128
      %727 = vxpose.xlu0.b32.cont [11/16] 0.0, 128
      %728 = vxpose.xlu0.b32.cont [12/16] 0.0, 128
      %729 = vxpose.xlu0.b32.cont [13/16] 0.0, 128
      %730 = vxpose.xlu0.b32.cont [14/16] 0.0, 128
      %731 = vxpose.xlu0.b32.cont [15/16] 0.0, 128
      %732 = vxpose.xlu0.b32.end [16/16] 0.0, 128
      %v733 = vpop.trf.xlu0
      %v734 = vpop.trf.xlu0
      %v735 = vpop.trf.xlu0
      %v736 = vpop.trf.xlu0
      %v737 = vpop.trf.xlu0
      %v738 = vpop.trf.xlu0
      %v739 = vpop.trf.xlu0
      %v740 = vpop.trf.xlu0
      %v741 = vpop.trf.xlu0
      %v742 = vpop.trf.xlu0
      %v743 = vpop.trf.xlu0
      %v744 = vpop.trf.xlu0
      %v745 = vpop.trf.xlu0
      %v746 = vpop.trf.xlu0
      %v747 = vpop.trf.xlu0
      %v748 = vpop.trf.xlu0
      %749 = vxpose.xlu0.b32.start [1/16] %v487, 128
      %750 = vxpose.xlu0.b32.cont [2/16] 0.0, 128
      %751 = vxpose.xlu0.b32.cont [3/16] 0.0, 128
      %752 = vxpose.xlu0.b32.cont [4/16] 0.0, 128
      %753 = vxpose.xlu0.b32.cont [5/16] 0.0, 128
      %754 = vxpose.xlu0.b32.cont [6/16] 0.0, 128
      %755 = vxpose.xlu0.b32.cont [7/16] 0.0, 128
      %756 = vxpose.xlu0.b32.cont [8/16] 0.0, 128
      %757 = vxpose.xlu0.b32.cont [9/16] 0.0, 128
      %758 = vxpose.xlu0.b32.cont [10/16] 0.0, 128
      %759 = vxpose.xlu0.b32.cont [11/16] 0.0, 128
      %760 = vxpose.xlu0.b32.cont [12/16] 0.0, 128
      %761 = vxpose.xlu0.b32.cont [13/16] 0.0, 128
      %762 = vxpose.xlu0.b32.cont [14/16] 0.0, 128
      %763 = vxpose.xlu0.b32.cont [15/16] 0.0, 128
      %764 = vxpose.xlu0.b32.end [16/16] 0.0, 128
      %v765 = vpop.trf.xlu0
      %v766 = vpop.trf.xlu0
      %v767 = vpop.trf.xlu0
      %v768 = vpop.trf.xlu0
      %v769 = vpop.trf.xlu0
      %v770 = vpop.trf.xlu0
      %v771 = vpop.trf.xlu0
      %v772 = vpop.trf.xlu0
      %v773 = vpop.trf.xlu0
      %v774 = vpop.trf.xlu0
      %v775 = vpop.trf.xlu0
      %v776 = vpop.trf.xlu0
      %v777 = vpop.trf.xlu0
      %v778 = vpop.trf.xlu0
      %v779 = vpop.trf.xlu0
      %v780 = vpop.trf.xlu0
      %781 = vxpose.xlu0.b32.start [1/16] %v490, 128
      %782 = vxpose.xlu0.b32.cont [2/16] 0.0, 128
      %783 = vxpose.xlu0.b32.cont [3/16] 0.0, 128
      %784 = vxpose.xlu0.b32.cont [4/16] 0.0, 128
      %785 = vxpose.xlu0.b32.cont [5/16] 0.0, 128
      %786 = vxpose.xlu0.b32.cont [6/16] 0.0, 128
      %787 = vxpose.xlu0.b32.cont [7/16] 0.0, 128
      %788 = vxpose.xlu0.b32.cont [8/16] 0.0, 128
      %789 = vxpose.xlu0.b32.cont [9/16] 0.0, 128
      %790 = vxpose.xlu0.b32.cont [10/16] 0.0, 128
      %791 = vxpose.xlu0.b32.cont [11/16] 0.0, 128
      %792 = vxpose.xlu0.b32.cont [12/16] 0.0, 128
      %793 = vxpose.xlu0.b32.cont [13/16] 0.0, 128
      %794 = vxpose.xlu0.b32.cont [14/16] 0.0, 128
      %795 = vxpose.xlu0.b32.cont [15/16] 0.0, 128
      %796 = vxpose.xlu0.b32.end [16/16] 0.0, 128
      %v797 = vpop.trf.xlu0
      %v798 = vpop.trf.xlu0
      %v799 = vpop.trf.xlu0
      %v800 = vpop.trf.xlu0
      %v801 = vpop.trf.xlu0
      %v802 = vpop.trf.xlu0
      %v803 = vpop.trf.xlu0
      %v804 = vpop.trf.xlu0
      %v805 = vpop.trf.xlu0
      %v806 = vpop.trf.xlu0
      %v807 = vpop.trf.xlu0
      %v808 = vpop.trf.xlu0
      %v809 = vpop.trf.xlu0
      %v810 = vpop.trf.xlu0
      %v811 = vpop.trf.xlu0
      %v812 = vpop.trf.xlu0
      %v813 = vpack.c.bf16 %v510, %v509
      %v814 = vpack.c.bf16 %v541, %v511
      %v815 = vpack.c.bf16 %v543, %v542
      %v816 = vpack.c.bf16 %v574, %v573
      %v817 = vpack.c.bf16 %v605, %v575
      %v818 = vpack.c.bf16 %v607, %v606
      %v819 = vpack.c.bf16 %v638, %v637
      %v820 = vpack.c.bf16 %v669, %v639
      %v821 = vpack.c.bf16 %v671, %v670
      %v822 = vpack.c.bf16 %v702, %v701
      %v823 = vpack.c.bf16 %v733, %v703
      %v824 = vpack.c.bf16 %v735, %v734
      %v825 = vpack.c.bf16 %v766, %v765
      %v826 = vpack.c.bf16 %v797, %v767
      %v827 = vpack.c.bf16 %v799, %v798
      %v828 = vld [vmem:[%s3] sm:$0xf]
      %vm829 = vcmask 64512
      %v831 = vsel %vm829, %v813, 0
      %v834 = vsel %vm829, %v814, 0
      %v837 = vsel %vm829, %v815, 0
      %v840 = vsel %vm829, %v816, 0
      %v843 = vsel %vm829, %v817, 0
      %v846 = vsel %vm829, %v818, 0
      %v849 = vsel %vm829, %v819, 0
      %v852 = vsel %vm829, %v820, 0
      %v855 = vsel %vm829, %v821, 0
      %v858 = vsel %vm829, %v822, 0
      %v861 = vsel %vm829, %v823, 0
      %v864 = vsel %vm829, %v824, 0
      %v867 = vsel %vm829, %v825, 0
      %v870 = vsel %vm829, %v826, 0
      %v873 = vsel %vm829, %v827, 0
      %v876 = vsel %vm416, %v828, 0
      %878 = vmatprep.subr.bf16.mxu0 0
      %879 = vmatpush1.bf16.msra.mxu0 0
      %880 = vmatprep.subr.bf16.mxu0 0
      %881 = vmatpush1.bf16.msra.mxu0 0
      %882 = vmatprep.subr.bf16.mxu0 0
      %883 = vmatpush1.bf16.msra.mxu0 0
      %884 = vmatprep.subr.bf16.mxu0 0
      %885 = vmatpush1.bf16.msra.mxu0 0
      %886 = vmatprep.subr.bf16.mxu0 0
      %887 = vmatpush1.bf16.msra.mxu0 0
      %888 = vmatprep.subr.bf16.mxu0 0
      %889 = vmatpush1.bf16.msra.mxu0 0
      %890 = vmatprep.subr.bf16.mxu0 0
      %891 = vmatpush1.bf16.msra.mxu0 0
      %892 = vmatprep.subr.bf16.mxu0 0
      %893 = vmatpush1.bf16.msra.mxu0 %v876
      %894 = vmatprep.subr.bf16.mxu0 0
      %895 = vmatpush2.bf16.msra.mxu0 0
      %896 = vmatprep.subr.bf16.mxu0 0
      %897 = vmatpush2.bf16.msra.mxu0 0
      %898 = vmatprep.subr.bf16.mxu0 0
      %899 = vmatpush2.bf16.msra.mxu0 0
      %900 = vmatprep.subr.bf16.mxu0 0
      %901 = vmatpush2.bf16.msra.mxu0 0
      %902 = vmatprep.subr.bf16.mxu0 0
      %903 = vmatpush2.bf16.msra.mxu0 0
      %904 = vmatprep.subr.bf16.mxu0 0
      %905 = vmatpush2.bf16.msra.mxu0 0
      %906 = vmatprep.subr.bf16.mxu0 0
      %907 = vmatpush2.bf16.msra.mxu0 0
      %908 = vmatprep.subr.bf16.mxu0 0
      %909 = vmatpush2.bf16.msra.mxu0 0
      %910 = vmatprep.mubr.bf16.mxu0 0
      %911 = vmatmul.mubr.bf16.gmra.mxu0 %v831
      %v912 = vpop.f32.mrf.mxu0
      %v913 = vadd.f32 0.0, %v912
      %v914 = vpop.f32.mrf.mxu0
      %v915 = vpop.f32.mrf.mxu0
      %v916 = vadd.f32 0.0, %v915
      %v917 = vpop.f32.mrf.mxu0
      %918 = vmatprep.mubr.bf16.mxu0 0
      %919 = vmatmul.mubr.bf16.gmra.mxu0 %v834
      %v920 = vpop.f32.mrf.mxu0
      %v921 = vadd.f32 0.0, %v920
      %v922 = vpop.f32.mrf.mxu0
      %v923 = vpop.f32.mrf.mxu0
      %v924 = vadd.f32 0.0, %v923
      %v925 = vpop.f32.mrf.mxu0
      %926 = vmatprep.mubr.bf16.mxu0 0
      %927 = vmatmul.mubr.bf16.gmra.mxu0 %v837
      %v928 = vpop.f32.mrf.mxu0
      %v929 = vadd.f32 0.0, %v928
      %v930 = vpop.f32.mrf.mxu0
      %v931 = vpop.f32.mrf.mxu0
      %v932 = vadd.f32 0.0, %v931
      %v933 = vpop.f32.mrf.mxu0
      %934 = vmatprep.mubr.bf16.mxu0 0
      %935 = vmatmul.mubr.bf16.gmra.mxu0 %v840
      %v936 = vpop.f32.mrf.mxu0
      %v937 = vadd.f32 0.0, %v936
      %v938 = vpop.f32.mrf.mxu0
      %v939 = vpop.f32.mrf.mxu0
      %v940 = vadd.f32 0.0, %v939
      %v941 = vpop.f32.mrf.mxu0
      %942 = vmatprep.mubr.bf16.mxu0 0
      %943 = vmatmul.mubr.bf16.gmra.mxu0 %v843
      %v944 = vpop.f32.mrf.mxu0
      %v945 = vadd.f32 0.0, %v944
      %v946 = vpop.f32.mrf.mxu0
      %v947 = vpop.f32.mrf.mxu0
      %v948 = vadd.f32 0.0, %v947
      %v949 = vpop.f32.mrf.mxu0
      %950 = vmatprep.mubr.bf16.mxu0 0
      %951 = vmatmul.mubr.bf16.gmra.mxu0 %v846
      %v952 = vpop.f32.mrf.mxu0
      %v953 = vadd.f32 0.0, %v952
      %v954 = vpop.f32.mrf.mxu0
      %v955 = vpop.f32.mrf.mxu0
      %v956 = vadd.f32 0.0, %v955
      %v957 = vpop.f32.mrf.mxu0
      %958 = vmatprep.mubr.bf16.mxu0 0
      %959 = vmatmul.mubr.bf16.gmra.mxu0 %v849
      %v960 = vpop.f32.mrf.mxu0
      %v961 = vadd.f32 0.0, %v960
      %v962 = vpop.f32.mrf.mxu0
      %v963 = vpop.f32.mrf.mxu0
      %v964 = vadd.f32 0.0, %v963
      %v965 = vpop.f32.mrf.mxu0
      %966 = vmatprep.mubr.bf16.mxu0 0
      %967 = vmatmul.mubr.bf16.gmra.mxu0 %v852
      %v968 = vpop.f32.mrf.mxu0
      %v969 = vadd.f32 0.0, %v968
      %v970 = vpop.f32.mrf.mxu0
      %v971 = vpop.f32.mrf.mxu0
      %v972 = vadd.f32 0.0, %v971
      %v973 = vpop.f32.mrf.mxu0
      %974 = vmatprep.mubr.bf16.mxu0 0
      %975 = vmatmul.mubr.bf16.gmra.mxu0 %v855
      %v976 = vpop.f32.mrf.mxu0
      %v977 = vadd.f32 0.0, %v976
      %v978 = vpop.f32.mrf.mxu0
      %v979 = vpop.f32.mrf.mxu0
      %v980 = vadd.f32 0.0, %v979
      %v981 = vpop.f32.mrf.mxu0
      %982 = vmatprep.mubr.bf16.mxu0 0
      %983 = vmatmul.mubr.bf16.gmra.mxu0 %v858
      %v984 = vpop.f32.mrf.mxu0
      %v985 = vadd.f32 0.0, %v984
      %v986 = vpop.f32.mrf.mxu0
      %v987 = vpop.f32.mrf.mxu0
      %v988 = vadd.f32 0.0, %v987
      %v989 = vpop.f32.mrf.mxu0
      %990 = vmatprep.mubr.bf16.mxu0 0
      %991 = vmatmul.mubr.bf16.gmra.mxu0 %v861
      %v992 = vpop.f32.mrf.mxu0
      %v993 = vadd.f32 0.0, %v992
      %v994 = vpop.f32.mrf.mxu0
      %v995 = vpop.f32.mrf.mxu0
      %v996 = vadd.f32 0.0, %v995
      %v997 = vpop.f32.mrf.mxu0
      %998 = vmatprep.mubr.bf16.mxu0 0
      %999 = vmatmul.mubr.bf16.gmra.mxu0 %v864
      %v1000 = vpop.f32.mrf.mxu0
      %v1001 = vadd.f32 0.0, %v1000
      %v1002 = vpop.f32.mrf.mxu0
      %v1003 = vpop.f32.mrf.mxu0
      %v1004 = vadd.f32 0.0, %v1003
      %v1005 = vpop.f32.mrf.mxu0
      %1006 = vmatprep.mubr.bf16.mxu0 0
      %1007 = vmatmul.mubr.bf16.gmra.mxu0 %v867
      %v1008 = vpop.f32.mrf.mxu0
      %v1009 = vadd.f32 0.0, %v1008
      %v1010 = vpop.f32.mrf.mxu0
      %v1011 = vpop.f32.mrf.mxu0
      %v1012 = vadd.f32 0.0, %v1011
      %v1013 = vpop.f32.mrf.mxu0
      %1014 = vmatprep.mubr.bf16.mxu0 0
      %1015 = vmatmul.mubr.bf16.gmra.mxu0 %v870
      %v1016 = vpop.f32.mrf.mxu0
      %v1017 = vadd.f32 0.0, %v1016
      %v1018 = vpop.f32.mrf.mxu0
      %v1019 = vpop.f32.mrf.mxu0
      %v1020 = vadd.f32 0.0, %v1019
      %v1021 = vpop.f32.mrf.mxu0
      %1022 = vmatprep.mubr.bf16.mxu0 0
      %1023 = vmatmul.mubr.bf16.gmra.mxu0 %v873
      %v1024 = vpop.f32.mrf.mxu0
      %v1025 = vadd.f32 0.0, %v1024
      %v1026 = vpop.f32.mrf.mxu0
      %v1027 = vpop.f32.mrf.mxu0
      %v1028 = vadd.f32 0.0, %v1027
      %v1029 = vpop.f32.mrf.mxu0
      %1030 = vdwg.mxu0
      %vm1031 = vcmask 130048
      %1032 = vst.msk [vmem:[#allocation2] sm:$0xff] %vm1031, %v913
      %1033 = vst.msk [vmem:[#allocation2 + $0x8] sm:$0xff] %vm1031, %v916
      %1034 = vst.msk [vmem:[#allocation2 + $0x10] sm:$0xff] %vm1031, %v921
      %1035 = vst.msk [vmem:[#allocation2 + $0x18] sm:$0xff] %vm1031, %v924
      %1036 = vst.msk [vmem:[#allocation2 + $0x20] sm:$0xff] %vm1031, %v929
      %1037 = vst.msk [vmem:[#allocation2 + $0x28] sm:$0xff] %vm1031, %v932
      %1038 = vst.msk [vmem:[#allocation2 + $0x30] sm:$0xff] %vm1031, %v937
      %1039 = vst.msk [vmem:[#allocation2 + $0x38] sm:$0xff] %vm1031, %v940
      %1040 = vst.msk [vmem:[#allocation2 + $0x40] sm:$0xff] %vm1031, %v945
      %1041 = vst.msk [vmem:[#allocation2 + $0x48] sm:$0xff] %vm1031, %v948
      %1042 = vst.msk [vmem:[#allocation2 + $0x50] sm:$0xff] %vm1031, %v953
      %1043 = vst.msk [vmem:[#allocation2 + $0x58] sm:$0xff] %vm1031, %v956
      %1044 = vst.msk [vmem:[#allocation2 + $0x60] sm:$0xff] %vm1031, %v961
      %1045 = vst.msk [vmem:[#allocation2 + $0x68] sm:$0xff] %vm1031, %v964
      %1046 = vst.msk [vmem:[#allocation2 + $0x70] sm:$0xff] %vm1031, %v969
      %1047 = vst.msk [vmem:[#allocation2 + $0x78] sm:$0xff] %vm1031, %v972
      %1048 = vst.msk [vmem:[#allocation2 + $0x80] sm:$0xff] %vm1031, %v977
      %1049 = vst.msk [vmem:[#allocation2 + $0x88] sm:$0xff] %vm1031, %v980
      %1050 = vst.msk [vmem:[#allocation2 + $0x90] sm:$0xff] %vm1031, %v985
      %1051 = vst.msk [vmem:[#allocation2 + $0x98] sm:$0xff] %vm1031, %v988
      %1052 = vst.msk [vmem:[#allocation2 + $0xa0] sm:$0xff] %vm1031, %v993
      %1053 = vst.msk [vmem:[#allocation2 + $0xa8] sm:$0xff] %vm1031, %v996
      %1054 = vst.msk [vmem:[#allocation2 + $0xb0] sm:$0xff] %vm1031, %v1001
      %1055 = vst.msk [vmem:[#allocation2 + $0xb8] sm:$0xff] %vm1031, %v1004
      %1056 = vst.msk [vmem:[#allocation2 + $0xc0] sm:$0xff] %vm1031, %v1009
      %1057 = vst.msk [vmem:[#allocation2 + $0xc8] sm:$0xff] %vm1031, %v1012
      %1058 = vst.msk [vmem:[#allocation2 + $0xd0] sm:$0xff] %vm1031, %v1017
      %1059 = vst.msk [vmem:[#allocation2 + $0xd8] sm:$0xff] %vm1031, %v1020
      %1060 = vst.msk [vmem:[#allocation2 + $0xe0] sm:$0xff] %vm1031, %v1025
      %1061 = vst.msk [vmem:[#allocation2 + $0xe8] sm:$0xff] %vm1031, %v1028
      %s1062 = scalar_lea.vmem %s2, 12
      %v1063 = vld [vmem:[%s1062] sm:$0xf]
      %v1064 = vld [vmem:[%s1062 + $0x4] sm:$0xf]
      %v1065 = vld [vmem:[%s1062 + $0x8] sm:$0xf]
      %v1069 = vunpack.c.l.b16 %v1063
      %v1070 = vunpack.c.l.b16 %v1064
      %v1071 = vunpack.c.l.b16 %v1065
      %v1072 = vpack.c.b16 %v1070, %v1069
      %v1073 = vpack.c.b16 %v1071, %v1071
      %v1076 = vsel %vm416, %v1073, 0
      %1078 = vmatprep.subr.bf16.mxu0 0
      %1079 = vmatpush1.bf16.msra.mxu0 0
      %1080 = vmatprep.subr.bf16.mxu0 0
      %1081 = vmatpush1.bf16.msra.mxu0 0
      %1082 = vmatprep.subr.bf16.mxu0 0
      %1083 = vmatpush1.bf16.msra.mxu0 0
      %1084 = vmatprep.subr.bf16.mxu0 0
      %1085 = vmatpush1.bf16.msra.mxu0 0
      %1086 = vmatprep.subr.bf16.mxu0 0
      %1087 = vmatpush1.bf16.msra.mxu0 0
      %1088 = vmatprep.subr.bf16.mxu0 0
      %1089 = vmatpush1.bf16.msra.mxu0 0
      %1090 = vmatprep.subr.bf16.mxu0 0
      %1091 = vmatpush1.bf16.msra.mxu0 %v1076
      %1092 = vmatprep.subr.bf16.mxu0 0
      %1093 = vmatpush1.bf16.msra.mxu0 %v1072
      %1094 = vmatprep.subr.bf16.mxu0 0
      %1095 = vmatpush2.bf16.msra.mxu0 0
      %1096 = vmatprep.subr.bf16.mxu0 0
      %1097 = vmatpush2.bf16.msra.mxu0 0
      %1098 = vmatprep.subr.bf16.mxu0 0
      %1099 = vmatpush2.bf16.msra.mxu0 0
      %1100 = vmatprep.subr.bf16.mxu0 0
      %1101 = vmatpush2.bf16.msra.mxu0 0
      %1102 = vmatprep.subr.bf16.mxu0 0
      %1103 = vmatpush2.bf16.msra.mxu0 0
      %1104 = vmatprep.subr.bf16.mxu0 0
      %1105 = vmatpush2.bf16.msra.mxu0 0
      %1106 = vmatprep.subr.bf16.mxu0 0
      %1107 = vmatpush2.bf16.msra.mxu0 0
      %1108 = vmatprep.subr.bf16.mxu0 0
      %1109 = vmatpush2.bf16.msra.mxu0 0
      %1110 = vmatprep.mubr.bf16.mxu0 0
      %1111 = vmatmul.mubr.bf16.gmra.mxu0 %v402
      %v1112 = vpop.f32.mrf.mxu0
      %v1113 = vadd.f32 0.0, %v1112
      %v1114 = vpop.f32.mrf.mxu0
      %v1115 = vpop.f32.mrf.mxu0
      %v1116 = vadd.f32 0.0, %v1115
      %v1117 = vpop.f32.mrf.mxu0
      %1118 = vmatprep.mubr.bf16.mxu0 0
      %1119 = vmatmul.mubr.bf16.gmra.mxu0 %v405
      %v1120 = vpop.f32.mrf.mxu0
      %v1121 = vadd.f32 0.0, %v1120
      %v1122 = vpop.f32.mrf.mxu0
      %v1123 = vpop.f32.mrf.mxu0
      %v1124 = vadd.f32 0.0, %v1123
      %v1125 = vpop.f32.mrf.mxu0
      %1126 = vmatprep.mubr.bf16.mxu0 0
      %1127 = vmatmul.mubr.bf16.gmra.mxu0 %v408
      %v1128 = vpop.f32.mrf.mxu0
      %v1129 = vadd.f32 0.0, %v1128
      %v1130 = vpop.f32.mrf.mxu0
      %v1131 = vpop.f32.mrf.mxu0
      %v1132 = vadd.f32 0.0, %v1131
      %v1133 = vpop.f32.mrf.mxu0
      %1134 = vmatprep.mubr.bf16.mxu0 0
      %1135 = vmatmul.mubr.bf16.gmra.mxu0 %v411
      %v1136 = vpop.f32.mrf.mxu0
      %v1137 = vadd.f32 0.0, %v1136
      %v1138 = vpop.f32.mrf.mxu0
      %v1139 = vpop.f32.mrf.mxu0
      %v1140 = vadd.f32 0.0, %v1139
      %v1141 = vpop.f32.mrf.mxu0
      %1142 = vmatprep.mubr.bf16.mxu0 0
      %1143 = vmatmul.mubr.bf16.gmra.mxu0 %v414
      %v1144 = vpop.f32.mrf.mxu0
      %v1145 = vadd.f32 0.0, %v1144
      %v1146 = vpop.f32.mrf.mxu0
      %v1147 = vpop.f32.mrf.mxu0
      %v1148 = vadd.f32 0.0, %v1147
      %v1149 = vpop.f32.mrf.mxu0
      %1150 = vdwg.mxu0
      %1151 = vxpose.xlu0.b32.start [1/16] %v1113, 128
      %1152 = vxpose.xlu0.b32.cont [2/16] 0.0, 128
      %1153 = vxpose.xlu0.b32.cont [3/16] 0.0, 128
      %1154 = vxpose.xlu0.b32.cont [4/16] 0.0, 128
      %1155 = vxpose.xlu0.b32.cont [5/16] 0.0, 128
      %1156 = vxpose.xlu0.b32.cont [6/16] 0.0, 128
      %1157 = vxpose.xlu0.b32.cont [7/16] 0.0, 128
      %1158 = vxpose.xlu0.b32.cont [8/16] 0.0, 128
      %1159 = vxpose.xlu0.b32.cont [9/16] 0.0, 128
      %1160 = vxpose.xlu0.b32.cont [10/16] 0.0, 128
      %1161 = vxpose.xlu0.b32.cont [11/16] 0.0, 128
      %1162 = vxpose.xlu0.b32.cont [12/16] 0.0, 128
      %1163 = vxpose.xlu0.b32.cont [13/16] 0.0, 128
      %1164 = vxpose.xlu0.b32.cont [14/16] 0.0, 128
      %1165 = vxpose.xlu0.b32.cont [15/16] 0.0, 128
      %1166 = vxpose.xlu0.b32.end [16/16] 0.0, 128
      %v1167 = vpop.trf.xlu0
      %v1168 = vpop.trf.xlu0
      %v1169 = vpop.trf.xlu0
      %v1170 = vpop.trf.xlu0
      %v1171 = vpop.trf.xlu0
      %v1172 = vpop.trf.xlu0
      %v1173 = vpop.trf.xlu0
      %v1174 = vpop.trf.xlu0
      %v1175 = vpop.trf.xlu0
      %v1176 = vpop.trf.xlu0
      %v1177 = vpop.trf.xlu0
      %v1178 = vpop.trf.xlu0
      %v1179 = vpop.trf.xlu0
      %v1180 = vpop.trf.xlu0
      %v1181 = vpop.trf.xlu0
      %v1182 = vpop.trf.xlu0
      %1183 = vxpose.xlu0.b32.start [1/16] %v1116, 128
      %1184 = vxpose.xlu0.b32.cont [2/16] 0.0, 128
      %1185 = vxpose.xlu0.b32.cont [3/16] 0.0, 128
      %1186 = vxpose.xlu0.b32.cont [4/16] 0.0, 128
      %1187 = vxpose.xlu0.b32.cont [5/16] 0.0, 128
      %1188 = vxpose.xlu0.b32.cont [6/16] 0.0, 128
      %1189 = vxpose.xlu0.b32.cont [7/16] 0.0, 128
      %1190 = vxpose.xlu0.b32.cont [8/16] 0.0, 128
      %1191 = vxpose.xlu0.b32.cont [9/16] 0.0, 128
      %1192 = vxpose.xlu0.b32.cont [10/16] 0.0, 128
      %1193 = vxpose.xlu0.b32.cont [11/16] 0.0, 128
      %1194 = vxpose.xlu0.b32.cont [12/16] 0.0, 128
      %1195 = vxpose.xlu0.b32.cont [13/16] 0.0, 128
      %1196 = vxpose.xlu0.b32.cont [14/16] 0.0, 128
      %1197 = vxpose.xlu0.b32.cont [15/16] 0.0, 128
      %1198 = vxpose.xlu0.b32.end [16/16] 0.0, 128
      %v1199 = vpop.trf.xlu0
      %v1200 = vpop.trf.xlu0
      %v1201 = vpop.trf.xlu0
      %v1202 = vpop.trf.xlu0
      %v1203 = vpop.trf.xlu0
      %v1204 = vpop.trf.xlu0
      %v1205 = vpop.trf.xlu0
      %v1206 = vpop.trf.xlu0
      %v1207 = vpop.trf.xlu0
      %v1208 = vpop.trf.xlu0
      %v1209 = vpop.trf.xlu0
      %v1210 = vpop.trf.xlu0
      %v1211 = vpop.trf.xlu0
      %v1212 = vpop.trf.xlu0
      %v1213 = vpop.trf.xlu0
      %v1214 = vpop.trf.xlu0
      %1215 = vxpose.xlu0.b32.start [1/16] %v1121, 128
      %1216 = vxpose.xlu0.b32.cont [2/16] 0.0, 128
      %1217 = vxpose.xlu0.b32.cont [3/16] 0.0, 128
      %1218 = vxpose.xlu0.b32.cont [4/16] 0.0, 128
      %1219 = vxpose.xlu0.b32.cont [5/16] 0.0, 128
      %1220 = vxpose.xlu0.b32.cont [6/16] 0.0, 128
      %1221 = vxpose.xlu0.b32.cont [7/16] 0.0, 128
      %1222 = vxpose.xlu0.b32.cont [8/16] 0.0, 128
      %1223 = vxpose.xlu0.b32.cont [9/16] 0.0, 128
      %1224 = vxpose.xlu0.b32.cont [10/16] 0.0, 128
      %1225 = vxpose.xlu0.b32.cont [11/16] 0.0, 128
      %1226 = vxpose.xlu0.b32.cont [12/16] 0.0, 128
      %1227 = vxpose.xlu0.b32.cont [13/16] 0.0, 128
      %1228 = vxpose.xlu0.b32.cont [14/16] 0.0, 128
      %1229 = vxpose.xlu0.b32.cont [15/16] 0.0, 128
      %1230 = vxpose.xlu0.b32.end [16/16] 0.0, 128
      %v1231 = vpop.trf.xlu0
      %v1232 = vpop.trf.xlu0
      %v1233 = vpop.trf.xlu0
      %v1234 = vpop.trf.xlu0
      %v1235 = vpop.trf.xlu0
      %v1236 = vpop.trf.xlu0
      %v1237 = vpop.trf.xlu0
      %v1238 = vpop.trf.xlu0
      %v1239 = vpop.trf.xlu0
      %v1240 = vpop.trf.xlu0
      %v1241 = vpop.trf.xlu0
      %v1242 = vpop.trf.xlu0
      %v1243 = vpop.trf.xlu0
      %v1244 = vpop.trf.xlu0
      %v1245 = vpop.trf.xlu0
      %v1246 = vpop.trf.xlu0
      %1247 = vxpose.xlu0.b32.start [1/16] %v1124, 128
      %1248 = vxpose.xlu0.b32.cont [2/16] 0.0, 128
      %1249 = vxpose.xlu0.b32.cont [3/16] 0.0, 128
      %1250 = vxpose.xlu0.b32.cont [4/16] 0.0, 128
      %1251 = vxpose.xlu0.b32.cont [5/16] 0.0, 128
      %1252 = vxpose.xlu0.b32.cont [6/16] 0.0, 128
      %1253 = vxpose.xlu0.b32.cont [7/16] 0.0, 128
      %1254 = vxpose.xlu0.b32.cont [8/16] 0.0, 128
      %1255 = vxpose.xlu0.b32.cont [9/16] 0.0, 128
      %1256 = vxpose.xlu0.b32.cont [10/16] 0.0, 128
      %1257 = vxpose.xlu0.b32.cont [11/16] 0.0, 128
      %1258 = vxpose.xlu0.b32.cont [12/16] 0.0, 128
      %1259 = vxpose.xlu0.b32.cont [13/16] 0.0, 128
      %1260 = vxpose.xlu0.b32.cont [14/16] 0.0, 128
      %1261 = vxpose.xlu0.b32.cont [15/16] 0.0, 128
      %1262 = vxpose.xlu0.b32.end [16/16] 0.0, 128
      %v1263 = vpop.trf.xlu0
      %v1264 = vpop.trf.xlu0
      %v1265 = vpop.trf.xlu0
      %v1266 = vpop.trf.xlu0
      %v1267 = vpop.trf.xlu0
      %v1268 = vpop.trf.xlu0
      %v1269 = vpop.trf.xlu0
      %v1270 = vpop.trf.xlu0
      %v1271 = vpop.trf.xlu0
      %v1272 = vpop.trf.xlu0
      %v1273 = vpop.trf.xlu0
      %v1274 = vpop.trf.xlu0
      %v1275 = vpop.trf.xlu0
      %v1276 = vpop.trf.xlu0
      %v1277 = vpop.trf.xlu0
      %v1278 = vpop.trf.xlu0
      %1279 = vxpose.xlu0.b32.start [1/16] %v1129, 128
      %1280 = vxpose.xlu0.b32.cont [2/16] 0.0, 128
      %1281 = vxpose.xlu0.b32.cont [3/16] 0.0, 128
      %1282 = vxpose.xlu0.b32.cont [4/16] 0.0, 128
      %1283 = vxpose.xlu0.b32.cont [5/16] 0.0, 128
      %1284 = vxpose.xlu0.b32.cont [6/16] 0.0, 128
      %1285 = vxpose.xlu0.b32.cont [7/16] 0.0, 128
      %1286 = vxpose.xlu0.b32.cont [8/16] 0.0, 128
      %1287 = vxpose.xlu0.b32.cont [9/16] 0.0, 128
      %1288 = vxpose.xlu0.b32.cont [10/16] 0.0, 128
      %1289 = vxpose.xlu0.b32.cont [11/16] 0.0, 128
      %1290 = vxpose.xlu0.b32.cont [12/16] 0.0, 128
      %1291 = vxpose.xlu0.b32.cont [13/16] 0.0, 128
      %1292 = vxpose.xlu0.b32.cont [14/16] 0.0, 128
      %1293 = vxpose.xlu0.b32.cont [15/16] 0.0, 128
      %1294 = vxpose.xlu0.b32.end [16/16] 0.0, 128
      %v1295 = vpop.trf.xlu0
      %v1296 = vpop.trf.xlu0
      %v1297 = vpop.trf.xlu0
      %v1298 = vpop.trf.xlu0
      %v1299 = vpop.trf.xlu0
      %v1300 = vpop.trf.xlu0
      %v1301 = vpop.trf.xlu0
      %v1302 = vpop.trf.xlu0
      %v1303 = vpop.trf.xlu0
      %v1304 = vpop.trf.xlu0
      %v1305 = vpop.trf.xlu0
      %v1306 = vpop.trf.xlu0
      %v1307 = vpop.trf.xlu0
      %v1308 = vpop.trf.xlu0
      %v1309 = vpop.trf.xlu0
      %v1310 = vpop.trf.xlu0
      %1311 = vxpose.xlu0.b32.start [1/16] %v1132, 128
      %1312 = vxpose.xlu0.b32.cont [2/16] 0.0, 128
      %1313 = vxpose.xlu0.b32.cont [3/16] 0.0, 128
      %1314 = vxpose.xlu0.b32.cont [4/16] 0.0, 128
      %1315 = vxpose.xlu0.b32.cont [5/16] 0.0, 128
      %1316 = vxpose.xlu0.b32.cont [6/16] 0.0, 128
      %1317 = vxpose.xlu0.b32.cont [7/16] 0.0, 128
      %1318 = vxpose.xlu0.b32.cont [8/16] 0.0, 128
      %1319 = vxpose.xlu0.b32.cont [9/16] 0.0, 128
      %1320 = vxpose.xlu0.b32.cont [10/16] 0.0, 128
      %1321 = vxpose.xlu0.b32.cont [11/16] 0.0, 128
      %1322 = vxpose.xlu0.b32.cont [12/16] 0.0, 128
      %1323 = vxpose.xlu0.b32.cont [13/16] 0.0, 128
      %1324 = vxpose.xlu0.b32.cont [14/16] 0.0, 128
      %1325 = vxpose.xlu0.b32.cont [15/16] 0.0, 128
      %1326 = vxpose.xlu0.b32.end [16/16] 0.0, 128
      %v1327 = vpop.trf.xlu0
      %v1328 = vpop.trf.xlu0
      %v1329 = vpop.trf.xlu0
      %v1330 = vpop.trf.xlu0
      %v1331 = vpop.trf.xlu0
      %v1332 = vpop.trf.xlu0
      %v1333 = vpop.trf.xlu0
      %v1334 = vpop.trf.xlu0
      %v1335 = vpop.trf.xlu0
      %v1336 = vpop.trf.xlu0
      %v1337 = vpop.trf.xlu0
      %v1338 = vpop.trf.xlu0
      %v1339 = vpop.trf.xlu0
      %v1340 = vpop.trf.xlu0
      %v1341 = vpop.trf.xlu0
      %v1342 = vpop.trf.xlu0
      %1343 = vxpose.xlu0.b32.start [1/16] %v1137, 128
      %1344 = vxpose.xlu0.b32.cont [2/16] 0.0, 128
      %1345 = vxpose.xlu0.b32.cont [3/16] 0.0, 128
      %1346 = vxpose.xlu0.b32.cont [4/16] 0.0, 128
      %1347 = vxpose.xlu0.b32.cont [5/16] 0.0, 128
      %1348 = vxpose.xlu0.b32.cont [6/16] 0.0, 128
      %1349 = vxpose.xlu0.b32.cont [7/16] 0.0, 128
      %1350 = vxpose.xlu0.b32.cont [8/16] 0.0, 128
      %1351 = vxpose.xlu0.b32.cont [9/16] 0.0, 128
      %1352 = vxpose.xlu0.b32.cont [10/16] 0.0, 128
      %1353 = vxpose.xlu0.b32.cont [11/16] 0.0, 128
      %1354 = vxpose.xlu0.b32.cont [12/16] 0.0, 128
      %1355 = vxpose.xlu0.b32.cont [13/16] 0.0, 128
      %1356 = vxpose.xlu0.b32.cont [14/16] 0.0, 128
      %1357 = vxpose.xlu0.b32.cont [15/16] 0.0, 128
      %1358 = vxpose.xlu0.b32.end [16/16] 0.0, 128
      %v1359 = vpop.trf.xlu0
      %v1360 = vpop.trf.xlu0
      %v1361 = vpop.trf.xlu0
      %v1362 = vpop.trf.xlu0
      %v1363 = vpop.trf.xlu0
      %v1364 = vpop.trf.xlu0
      %v1365 = vpop.trf.xlu0
      %v1366 = vpop.trf.xlu0
      %v1367 = vpop.trf.xlu0
      %v1368 = vpop.trf.xlu0
      %v1369 = vpop.trf.xlu0
      %v1370 = vpop.trf.xlu0
      %v1371 = vpop.trf.xlu0
      %v1372 = vpop.trf.xlu0
      %v1373 = vpop.trf.xlu0
      %v1374 = vpop.trf.xlu0
      %1375 = vxpose.xlu0.b32.start [1/16] %v1140, 128
      %1376 = vxpose.xlu0.b32.cont [2/16] 0.0, 128
      %1377 = vxpose.xlu0.b32.cont [3/16] 0.0, 128
      %1378 = vxpose.xlu0.b32.cont [4/16] 0.0, 128
      %1379 = vxpose.xlu0.b32.cont [5/16] 0.0, 128
      %1380 = vxpose.xlu0.b32.cont [6/16] 0.0, 128
      %1381 = vxpose.xlu0.b32.cont [7/16] 0.0, 128
      %1382 = vxpose.xlu0.b32.cont [8/16] 0.0, 128
      %1383 = vxpose.xlu0.b32.cont [9/16] 0.0, 128
      %1384 = vxpose.xlu0.b32.cont [10/16] 0.0, 128
      %1385 = vxpose.xlu0.b32.cont [11/16] 0.0, 128
      %1386 = vxpose.xlu0.b32.cont [12/16] 0.0, 128
      %1387 = vxpose.xlu0.b32.cont [13/16] 0.0, 128
      %1388 = vxpose.xlu0.b32.cont [14/16] 0.0, 128
      %1389 = vxpose.xlu0.b32.cont [15/16] 0.0, 128
      %1390 = vxpose.xlu0.b32.end [16/16] 0.0, 128
      %v1391 = vpop.trf.xlu0
      %v1392 = vpop.trf.xlu0
      %v1393 = vpop.trf.xlu0
      %v1394 = vpop.trf.xlu0
      %v1395 = vpop.trf.xlu0
      %v1396 = vpop.trf.xlu0
      %v1397 = vpop.trf.xlu0
      %v1398 = vpop.trf.xlu0
      %v1399 = vpop.trf.xlu0
      %v1400 = vpop.trf.xlu0
      %v1401 = vpop.trf.xlu0
      %v1402 = vpop.trf.xlu0
      %v1403 = vpop.trf.xlu0
      %v1404 = vpop.trf.xlu0
      %v1405 = vpop.trf.xlu0
      %v1406 = vpop.trf.xlu0
      %1407 = vxpose.xlu0.b32.start [1/16] %v1145, 128
      %1408 = vxpose.xlu0.b32.cont [2/16] 0.0, 128
      %1409 = vxpose.xlu0.b32.cont [3/16] 0.0, 128
      %1410 = vxpose.xlu0.b32.cont [4/16] 0.0, 128
      %1411 = vxpose.xlu0.b32.cont [5/16] 0.0, 128
      %1412 = vxpose.xlu0.b32.cont [6/16] 0.0, 128
      %1413 = vxpose.xlu0.b32.cont [7/16] 0.0, 128
      %1414 = vxpose.xlu0.b32.cont [8/16] 0.0, 128
      %1415 = vxpose.xlu0.b32.cont [9/16] 0.0, 128
      %1416 = vxpose.xlu0.b32.cont [10/16] 0.0, 128
      %1417 = vxpose.xlu0.b32.cont [11/16] 0.0, 128
      %1418 = vxpose.xlu0.b32.cont [12/16] 0.0, 128
      %1419 = vxpose.xlu0.b32.cont [13/16] 0.0, 128
      %1420 = vxpose.xlu0.b32.cont [14/16] 0.0, 128
      %1421 = vxpose.xlu0.b32.cont [15/16] 0.0, 128
      %1422 = vxpose.xlu0.b32.end [16/16] 0.0, 128
      %v1423 = vpop.trf.xlu0
      %v1424 = vpop.trf.xlu0
      %v1425 = vpop.trf.xlu0
      %v1426 = vpop.trf.xlu0
      %v1427 = vpop.trf.xlu0
      %v1428 = vpop.trf.xlu0
      %v1429 = vpop.trf.xlu0
      %v1430 = vpop.trf.xlu0
      %v1431 = vpop.trf.xlu0
      %v1432 = vpop.trf.xlu0
      %v1433 = vpop.trf.xlu0
      %v1434 = vpop.trf.xlu0
      %v1435 = vpop.trf.xlu0
      %v1436 = vpop.trf.xlu0
      %v1437 = vpop.trf.xlu0
      %v1438 = vpop.trf.xlu0
      %1439 = vxpose.xlu0.b32.start [1/16] %v1148, 128
      %1440 = vxpose.xlu0.b32.cont [2/16] 0.0, 128
      %1441 = vxpose.xlu0.b32.cont [3/16] 0.0, 128
      %1442 = vxpose.xlu0.b32.cont [4/16] 0.0, 128
      %1443 = vxpose.xlu0.b32.cont [5/16] 0.0, 128
      %1444 = vxpose.xlu0.b32.cont [6/16] 0.0, 128
      %1445 = vxpose.xlu0.b32.cont [7/16] 0.0, 128
      %1446 = vxpose.xlu0.b32.cont [8/16] 0.0, 128
      %1447 = vxpose.xlu0.b32.cont [9/16] 0.0, 128
      %1448 = vxpose.xlu0.b32.cont [10/16] 0.0, 128
      %1449 = vxpose.xlu0.b32.cont [11/16] 0.0, 128
      %1450 = vxpose.xlu0.b32.cont [12/16] 0.0, 128
      %1451 = vxpose.xlu0.b32.cont [13/16] 0.0, 128
      %1452 = vxpose.xlu0.b32.cont [14/16] 0.0, 128
      %1453 = vxpose.xlu0.b32.cont [15/16] 0.0, 128
      %1454 = vxpose.xlu0.b32.end [16/16] 0.0, 128
      %v1455 = vpop.trf.xlu0
      %v1456 = vpop.trf.xlu0
      %v1457 = vpop.trf.xlu0
      %v1458 = vpop.trf.xlu0
      %v1459 = vpop.trf.xlu0
      %v1460 = vpop.trf.xlu0
      %v1461 = vpop.trf.xlu0
      %v1462 = vpop.trf.xlu0
      %v1463 = vpop.trf.xlu0
      %v1464 = vpop.trf.xlu0
      %v1465 = vpop.trf.xlu0
      %v1466 = vpop.trf.xlu0
      %v1467 = vpop.trf.xlu0
      %v1468 = vpop.trf.xlu0
      %v1469 = vpop.trf.xlu0
      %v1470 = vpop.trf.xlu0
      %v1471 = vpack.c.bf16 %v1168, %v1167
      %v1472 = vpack.c.bf16 %v1199, %v1169
      %v1473 = vpack.c.bf16 %v1201, %v1200
      %v1474 = vpack.c.bf16 %v1232, %v1231
      %v1475 = vpack.c.bf16 %v1263, %v1233
      %v1476 = vpack.c.bf16 %v1265, %v1264
      %v1477 = vpack.c.bf16 %v1296, %v1295
      %v1478 = vpack.c.bf16 %v1327, %v1297
      %v1479 = vpack.c.bf16 %v1329, %v1328
      %v1480 = vpack.c.bf16 %v1360, %v1359
      %v1481 = vpack.c.bf16 %v1391, %v1361
      %v1482 = vpack.c.bf16 %v1393, %v1392
      %v1483 = vpack.c.bf16 %v1424, %v1423
      %v1484 = vpack.c.bf16 %v1455, %v1425
      %v1485 = vpack.c.bf16 %v1457, %v1456
      %s1486 = scalar_lea.vmem %s3, 4
      %v1487 = vld [vmem:[%s1486] sm:$0xf]
      %v1489 = vsel %vm829, %v1471, 0
      %v1492 = vsel %vm829, %v1472, 0
      %v1495 = vsel %vm829, %v1473, 0
      %v1498 = vsel %vm829, %v1474, 0
      %v1501 = vsel %vm829, %v1475, 0
      %v1504 = vsel %vm829, %v1476, 0
      %v1507 = vsel %vm829, %v1477, 0
      %v1510 = vsel %vm829, %v1478, 0
      %v1513 = vsel %vm829, %v1479, 0
      %v1516 = vsel %vm829, %v1480, 0
      %v1519 = vsel %vm829, %v1481, 0
      %v1522 = vsel %vm829, %v1482, 0
      %v1525 = vsel %vm829, %v1483, 0
      %v1528 = vsel %vm829, %v1484, 0
      %v1531 = vsel %vm829, %v1485, 0
      %v1534 = vsel %vm416, %v1487, 0
      %1536 = vmatprep.subr.bf16.mxu0 0
      %1537 = vmatpush1.bf16.msra.mxu0 0
      %1538 = vmatprep.subr.bf16.mxu0 0
      %1539 = vmatpush1.bf16.msra.mxu0 0
      %1540 = vmatprep.subr.bf16.mxu0 0
      %1541 = vmatpush1.bf16.msra.mxu0 0
      %1542 = vmatprep.subr.bf16.mxu0 0
      %1543 = vmatpush1.bf16.msra.mxu0 0
      %1544 = vmatprep.subr.bf16.mxu0 0
      %1545 = vmatpush1.bf16.msra.mxu0 0
      %1546 = vmatprep.subr.bf16.mxu0 0
      %1547 = vmatpush1.bf16.msra.mxu0 0
      %1548 = vmatprep.subr.bf16.mxu0 0
      %1549 = vmatpush1.bf16.msra.mxu0 0
      %1550 = vmatprep.subr.bf16.mxu0 0
      %1551 = vmatpush1.bf16.msra.mxu0 %v1534
      %1552 = vmatprep.subr.bf16.mxu0 0
      %1553 = vmatpush2.bf16.msra.mxu0 0
      %1554 = vmatprep.subr.bf16.mxu0 0
      %1555 = vmatpush2.bf16.msra.mxu0 0
      %1556 = vmatprep.subr.bf16.mxu0 0
      %1557 = vmatpush2.bf16.msra.mxu0 0
      %1558 = vmatprep.subr.bf16.mxu0 0
      %1559 = vmatpush2.bf16.msra.mxu0 0
      %1560 = vmatprep.subr.bf16.mxu0 0
      %1561 = vmatpush2.bf16.msra.mxu0 0
      %1562 = vmatprep.subr.bf16.mxu0 0
      %1563 = vmatpush2.bf16.msra.mxu0 0
      %1564 = vmatprep.subr.bf16.mxu0 0
      %1565 = vmatpush2.bf16.msra.mxu0 0
      %1566 = vmatprep.subr.bf16.mxu0 0
      %1567 = vmatpush2.bf16.msra.mxu0 0
      %1568 = vmatprep.mubr.bf16.mxu0 0
      %1569 = vmatmul.mubr.bf16.gmra.mxu0 %v1489
      %v1570 = vpop.f32.mrf.mxu0
      %v1571 = vadd.f32 0.0, %v1570
      %v1572 = vpop.f32.mrf.mxu0
      %v1573 = vpop.f32.mrf.mxu0
      %v1574 = vadd.f32 0.0, %v1573
      %v1575 = vpop.f32.mrf.mxu0
      %1576 = vmatprep.mubr.bf16.mxu0 0
      %1577 = vmatmul.mubr.bf16.gmra.mxu0 %v1492
      %v1578 = vpop.f32.mrf.mxu0
      %v1579 = vadd.f32 0.0, %v1578
      %v1580 = vpop.f32.mrf.mxu0
      %v1581 = vpop.f32.mrf.mxu0
      %v1582 = vadd.f32 0.0, %v1581
      %v1583 = vpop.f32.mrf.mxu0
      %1584 = vmatprep.mubr.bf16.mxu0 0
      %1585 = vmatmul.mubr.bf16.gmra.mxu0 %v1495
      %v1586 = vpop.f32.mrf.mxu0
      %v1587 = vadd.f32 0.0, %v1586
      %v1588 = vpop.f32.mrf.mxu0
      %v1589 = vpop.f32.mrf.mxu0
      %v1590 = vadd.f32 0.0, %v1589
      %v1591 = vpop.f32.mrf.mxu0
      %1592 = vmatprep.mubr.bf16.mxu0 0
      %1593 = vmatmul.mubr.bf16.gmra.mxu0 %v1498
      %v1594 = vpop.f32.mrf.mxu0
      %v1595 = vadd.f32 0.0, %v1594
      %v1596 = vpop.f32.mrf.mxu0
      %v1597 = vpop.f32.mrf.mxu0
      %v1598 = vadd.f32 0.0, %v1597
      %v1599 = vpop.f32.mrf.mxu0
      %1600 = vmatprep.mubr.bf16.mxu0 0
      %1601 = vmatmul.mubr.bf16.gmra.mxu0 %v1501
      %v1602 = vpop.f32.mrf.mxu0
      %v1603 = vadd.f32 0.0, %v1602
      %v1604 = vpop.f32.mrf.mxu0
      %v1605 = vpop.f32.mrf.mxu0
      %v1606 = vadd.f32 0.0, %v1605
      %v1607 = vpop.f32.mrf.mxu0
      %1608 = vmatprep.mubr.bf16.mxu0 0
      %1609 = vmatmul.mubr.bf16.gmra.mxu0 %v1504
      %v1610 = vpop.f32.mrf.mxu0
      %v1611 = vadd.f32 0.0, %v1610
      %v1612 = vpop.f32.mrf.mxu0
      %v1613 = vpop.f32.mrf.mxu0
      %v1614 = vadd.f32 0.0, %v1613
      %v1615 = vpop.f32.mrf.mxu0
      %1616 = vmatprep.mubr.bf16.mxu0 0
      %1617 = vmatmul.mubr.bf16.gmra.mxu0 %v1507
      %v1618 = vpop.f32.mrf.mxu0
      %v1619 = vadd.f32 0.0, %v1618
      %v1620 = vpop.f32.mrf.mxu0
      %v1621 = vpop.f32.mrf.mxu0
      %v1622 = vadd.f32 0.0, %v1621
      %v1623 = vpop.f32.mrf.mxu0
      %1624 = vmatprep.mubr.bf16.mxu0 0
      %1625 = vmatmul.mubr.bf16.gmra.mxu0 %v1510
      %v1626 = vpop.f32.mrf.mxu0
      %v1627 = vadd.f32 0.0, %v1626
      %v1628 = vpop.f32.mrf.mxu0
      %v1629 = vpop.f32.mrf.mxu0
      %v1630 = vadd.f32 0.0, %v1629
      %v1631 = vpop.f32.mrf.mxu0
      %1632 = vmatprep.mubr.bf16.mxu0 0
      %1633 = vmatmul.mubr.bf16.gmra.mxu0 %v1513
      %v1634 = vpop.f32.mrf.mxu0
      %v1635 = vadd.f32 0.0, %v1634
      %v1636 = vpop.f32.mrf.mxu0
      %v1637 = vpop.f32.mrf.mxu0
      %v1638 = vadd.f32 0.0, %v1637
      %v1639 = vpop.f32.mrf.mxu0
      %1640 = vmatprep.mubr.bf16.mxu0 0
      %1641 = vmatmul.mubr.bf16.gmra.mxu0 %v1516
      %v1642 = vpop.f32.mrf.mxu0
      %v1643 = vadd.f32 0.0, %v1642
      %v1644 = vpop.f32.mrf.mxu0
      %v1645 = vpop.f32.mrf.mxu0
      %v1646 = vadd.f32 0.0, %v1645
      %v1647 = vpop.f32.mrf.mxu0
      %1648 = vmatprep.mubr.bf16.mxu0 0
      %1649 = vmatmul.mubr.bf16.gmra.mxu0 %v1519
      %v1650 = vpop.f32.mrf.mxu0
      %v1651 = vadd.f32 0.0, %v1650
      %v1652 = vpop.f32.mrf.mxu0
      %v1653 = vpop.f32.mrf.mxu0
      %v1654 = vadd.f32 0.0, %v1653
      %v1655 = vpop.f32.mrf.mxu0
      %1656 = vmatprep.mubr.bf16.mxu0 0
      %1657 = vmatmul.mubr.bf16.gmra.mxu0 %v1522
      %v1658 = vpop.f32.mrf.mxu0
      %v1659 = vadd.f32 0.0, %v1658
      %v1660 = vpop.f32.mrf.mxu0
      %v1661 = vpop.f32.mrf.mxu0
      %v1662 = vadd.f32 0.0, %v1661
      %v1663 = vpop.f32.mrf.mxu0
      %1664 = vmatprep.mubr.bf16.mxu0 0
      %1665 = vmatmul.mubr.bf16.gmra.mxu0 %v1525
      %v1666 = vpop.f32.mrf.mxu0
      %v1667 = vadd.f32 0.0, %v1666
      %v1668 = vpop.f32.mrf.mxu0
      %v1669 = vpop.f32.mrf.mxu0
      %v1670 = vadd.f32 0.0, %v1669
      %v1671 = vpop.f32.mrf.mxu0
      %1672 = vmatprep.mubr.bf16.mxu0 0
      %1673 = vmatmul.mubr.bf16.gmra.mxu0 %v1528
      %v1674 = vpop.f32.mrf.mxu0
      %v1675 = vadd.f32 0.0, %v1674
      %v1676 = vpop.f32.mrf.mxu0
      %v1677 = vpop.f32.mrf.mxu0
      %v1678 = vadd.f32 0.0, %v1677
      %v1679 = vpop.f32.mrf.mxu0
      %1680 = vmatprep.mubr.bf16.mxu0 0
      %1681 = vmatmul.mubr.bf16.gmra.mxu0 %v1531
      %v1682 = vpop.f32.mrf.mxu0
      %v1683 = vadd.f32 0.0, %v1682
      %v1684 = vpop.f32.mrf.mxu0
      %v1685 = vpop.f32.mrf.mxu0
      %v1686 = vadd.f32 0.0, %v1685
      %v1687 = vpop.f32.mrf.mxu0
      %1688 = vdwg.mxu0
      %v1689 = vld [vmem:[#allocation2] sm:$0xff]
      %v1690 = vld [vmem:[#allocation2 + $0x8] sm:$0xff]
      %v1691 = vld [vmem:[#allocation2 + $0x10] sm:$0xff]
      %v1692 = vld [vmem:[#allocation2 + $0x18] sm:$0xff]
      %v1693 = vld [vmem:[#allocation2 + $0x20] sm:$0xff]
      %v1694 = vld [vmem:[#allocation2 + $0x28] sm:$0xff]
      %v1695 = vld [vmem:[#allocation2 + $0x30] sm:$0xff]
      %v1696 = vld [vmem:[#allocation2 + $0x38] sm:$0xff]
      %v1697 = vld [vmem:[#allocation2 + $0x40] sm:$0xff]
      %v1698 = vld [vmem:[#allocation2 + $0x48] sm:$0xff]
      %v1699 = vld [vmem:[#allocation2 + $0x50] sm:$0xff]
      %v1700 = vld [vmem:[#allocation2 + $0x58] sm:$0xff]
      %v1701 = vld [vmem:[#allocation2 + $0x60] sm:$0xff]
      %v1702 = vld [vmem:[#allocation2 + $0x68] sm:$0xff]
      %v1703 = vld [vmem:[#allocation2 + $0x70] sm:$0xff]
      %v1704 = vld [vmem:[#allocation2 + $0x78] sm:$0xff]
      %v1705 = vld [vmem:[#allocation2 + $0x80] sm:$0xff]
      %v1706 = vld [vmem:[#allocation2 + $0x88] sm:$0xff]
      %v1707 = vld [vmem:[#allocation2 + $0x90] sm:$0xff]
      %v1708 = vld [vmem:[#allocation2 + $0x98] sm:$0xff]
      %v1709 = vld [vmem:[#allocation2 + $0xa0] sm:$0xff]
      %v1710 = vld [vmem:[#allocation2 + $0xa8] sm:$0xff]
      %v1711 = vld [vmem:[#allocation2 + $0xb0] sm:$0xff]
      %v1712 = vld [vmem:[#allocation2 + $0xb8] sm:$0xff]
      %v1713 = vld [vmem:[#allocation2 + $0xc0] sm:$0xff]
      %v1714 = vld [vmem:[#allocation2 + $0xc8] sm:$0xff]
      %v1715 = vld [vmem:[#allocation2 + $0xd0] sm:$0xff]
      %v1716 = vld [vmem:[#allocation2 + $0xd8] sm:$0xff]
      %v1717 = vld [vmem:[#allocation2 + $0xe0] sm:$0xff]
      %v1718 = vld [vmem:[#allocation2 + $0xe8] sm:$0xff]
      %v1719 = vadd.f32 %v1689, %v1571
      %v1720 = vadd.f32 %v1690, %v1574
      %v1721 = vadd.f32 %v1691, %v1579
      %v1722 = vadd.f32 %v1692, %v1582
      %v1723 = vadd.f32 %v1693, %v1587
      %v1724 = vadd.f32 %v1694, %v1590
      %v1725 = vadd.f32 %v1695, %v1595
      %v1726 = vadd.f32 %v1696, %v1598
      %v1727 = vadd.f32 %v1697, %v1603
      %v1728 = vadd.f32 %v1698, %v1606
      %v1729 = vadd.f32 %v1699, %v1611
      %v1730 = vadd.f32 %v1700, %v1614
      %v1731 = vadd.f32 %v1701, %v1619
      %v1732 = vadd.f32 %v1702, %v1622
      %v1733 = vadd.f32 %v1703, %v1627
      %v1734 = vadd.f32 %v1704, %v1630
      %v1735 = vadd.f32 %v1705, %v1635
      %v1736 = vadd.f32 %v1706, %v1638
      %v1737 = vadd.f32 %v1707, %v1643
      %v1738 = vadd.f32 %v1708, %v1646
      %v1739 = vadd.f32 %v1709, %v1651
      %v1740 = vadd.f32 %v1710, %v1654
      %v1741 = vadd.f32 %v1711, %v1659
      %v1742 = vadd.f32 %v1712, %v1662
      %v1743 = vadd.f32 %v1713, %v1667
      %v1744 = vadd.f32 %v1714, %v1670
      %v1745 = vadd.f32 %v1715, %v1675
      %v1746 = vadd.f32 %v1716, %v1678
      %v1747 = vadd.f32 %v1717, %v1683
      %v1748 = vadd.f32 %v1718, %v1686
      %1749 = vst.msk [vmem:[#allocation2] sm:$0xff] %vm1031, %v1719
      %1750 = vst.msk [vmem:[#allocation2 + $0x8] sm:$0xff] %vm1031, %v1720
      %1751 = vst.msk [vmem:[#allocation2 + $0x10] sm:$0xff] %vm1031, %v1721
      %1752 = vst.msk [vmem:[#allocation2 + $0x18] sm:$0xff] %vm1031, %v1722
      %1753 = vst.msk [vmem:[#allocation2 + $0x20] sm:$0xff] %vm1031, %v1723
      %1754 = vst.msk [vmem:[#allocation2 + $0x28] sm:$0xff] %vm1031, %v1724
      %1755 = vst.msk [vmem:[#allocation2 + $0x30] sm:$0xff] %vm1031, %v1725
      %1756 = vst.msk [vmem:[#allocation2 + $0x38] sm:$0xff] %vm1031, %v1726
      %1757 = vst.msk [vmem:[#allocation2 + $0x40] sm:$0xff] %vm1031, %v1727
      %1758 = vst.msk [vmem:[#allocation2 + $0x48] sm:$0xff] %vm1031, %v1728
      %1759 = vst.msk [vmem:[#allocation2 + $0x50] sm:$0xff] %vm1031, %v1729
      %1760 = vst.msk [vmem:[#allocation2 + $0x58] sm:$0xff] %vm1031, %v1730
      %1761 = vst.msk [vmem:[#allocation2 + $0x60] sm:$0xff] %vm1031, %v1731
      %1762 = vst.msk [vmem:[#allocation2 + $0x68] sm:$0xff] %vm1031, %v1732
      %1763 = vst.msk [vmem:[#allocation2 + $0x70] sm:$0xff] %vm1031, %v1733
      %1764 = vst.msk [vmem:[#allocation2 + $0x78] sm:$0xff] %vm1031, %v1734
      %1765 = vst.msk [vmem:[#allocation2 + $0x80] sm:$0xff] %vm1031, %v1735
      %1766 = vst.msk [vmem:[#allocation2 + $0x88] sm:$0xff] %vm1031, %v1736
      %1767 = vst.msk [vmem:[#allocation2 + $0x90] sm:$0xff] %vm1031, %v1737
      %1768 = vst.msk [vmem:[#allocation2 + $0x98] sm:$0xff] %vm1031, %v1738
      %1769 = vst.msk [vmem:[#allocation2 + $0xa0] sm:$0xff] %vm1031, %v1739
      %1770 = vst.msk [vmem:[#allocation2 + $0xa8] sm:$0xff] %vm1031, %v1740
      %1771 = vst.msk [vmem:[#allocation2 + $0xb0] sm:$0xff] %vm1031, %v1741
      %1772 = vst.msk [vmem:[#allocation2 + $0xb8] sm:$0xff] %vm1031, %v1742
      %1773 = vst.msk [vmem:[#allocation2 + $0xc0] sm:$0xff] %vm1031, %v1743
      %1774 = vst.msk [vmem:[#allocation2 + $0xc8] sm:$0xff] %vm1031, %v1744
      %1775 = vst.msk [vmem:[#allocation2 + $0xd0] sm:$0xff] %vm1031, %v1745
      %1776 = vst.msk [vmem:[#allocation2 + $0xd8] sm:$0xff] %vm1031, %v1746
      %1777 = vst.msk [vmem:[#allocation2 + $0xe0] sm:$0xff] %vm1031, %v1747
      %1778 = vst.msk [vmem:[#allocation2 + $0xe8] sm:$0xff] %vm1031, %v1748
      %s1779 = scalar_lea.vmem %s2, 24
      %v1780 = vld [vmem:[%s1779] sm:$0xf]
      %v1781 = vld [vmem:[%s1779 + $0x4] sm:$0xf]
      %v1782 = vld [vmem:[%s1779 + $0x8] sm:$0xf]
      %v1786 = vunpack.c.l.b16 %v1780
      %v1787 = vunpack.c.l.b16 %v1781
      %v1788 = vunpack.c.l.b16 %v1782
      %v1789 = vpack.c.b16 %v1787, %v1786
      %v1790 = vpack.c.b16 %v1788, %v1788
      %v1793 = vsel %vm416, %v1790, 0
      %1795 = vmatprep.subr.bf16.mxu0 0
      %1796 = vmatpush1.bf16.msra.mxu0 0
      %1797 = vmatprep.subr.bf16.mxu0 0
      %1798 = vmatpush1.bf16.msra.mxu0 0
      %1799 = vmatprep.subr.bf16.mxu0 0
      %1800 = vmatpush1.bf16.msra.mxu0 0
      %1801 = vmatprep.subr.bf16.mxu0 0
      %1802 = vmatpush1.bf16.msra.mxu0 0
      %1803 = vmatprep.subr.bf16.mxu0 0
      %1804 = vmatpush1.bf16.msra.mxu0 0
      %1805 = vmatprep.subr.bf16.mxu0 0
      %1806 = vmatpush1.bf16.msra.mxu0 0
      %1807 = vmatprep.subr.bf16.mxu0 0
      %1808 = vmatpush1.bf16.msra.mxu0 %v1793
      %1809 = vmatprep.subr.bf16.mxu0 0
      %1810 = vmatpush1.bf16.msra.mxu0 %v1789
      %1811 = vmatprep.subr.bf16.mxu0 0
      %1812 = vmatpush2.bf16.msra.mxu0 0
      %1813 = vmatprep.subr.bf16.mxu0 0
      %1814 = vmatpush2.bf16.msra.mxu0 0
      %1815 = vmatprep.subr.bf16.mxu0 0
      %1816 = vmatpush2.bf16.msra.mxu0 0
      %1817 = vmatprep.subr.bf16.mxu0 0
      %1818 = vmatpush2.bf16.msra.mxu0 0
      %1819 = vmatprep.subr.bf16.mxu0 0
      %1820 = vmatpush2.bf16.msra.mxu0 0
      %1821 = vmatprep.subr.bf16.mxu0 0
      %1822 = vmatpush2.bf16.msra.mxu0 0
      %1823 = vmatprep.subr.bf16.mxu0 0
      %1824 = vmatpush2.bf16.msra.mxu0 0
      %1825 = vmatprep.subr.bf16.mxu0 0
      %1826 = vmatpush2.bf16.msra.mxu0 0
      %1827 = vmatprep.mubr.bf16.mxu0 0
      %1828 = vmatmul.mubr.bf16.gmra.mxu0 %v402
      %v1829 = vpop.f32.mrf.mxu0
      %v1830 = vadd.f32 0.0, %v1829
      %v1831 = vpop.f32.mrf.mxu0
      %v1832 = vpop.f32.mrf.mxu0
      %v1833 = vadd.f32 0.0, %v1832
      %v1834 = vpop.f32.mrf.mxu0
      %1835 = vmatprep.mubr.bf16.mxu0 0
      %1836 = vmatmul.mubr.bf16.gmra.mxu0 %v405
      %v1837 = vpop.f32.mrf.mxu0
      %v1838 = vadd.f32 0.0, %v1837
      %v1839 = vpop.f32.mrf.mxu0
      %v1840 = vpop.f32.mrf.mxu0
      %v1841 = vadd.f32 0.0, %v1840
      %v1842 = vpop.f32.mrf.mxu0
      %1843 = vmatprep.mubr.bf16.mxu0 0
      %1844 = vmatmul.mubr.bf16.gmra.mxu0 %v408
      %v1845 = vpop.f32.mrf.mxu0
      %v1846 = vadd.f32 0.0, %v1845
      %v1847 = vpop.f32.mrf.mxu0
      %v1848 = vpop.f32.mrf.mxu0
      %v1849 = vadd.f32 0.0, %v1848
      %v1850 = vpop.f32.mrf.mxu0
      %1851 = vmatprep.mubr.bf16.mxu0 0
      %1852 = vmatmul.mubr.bf16.gmra.mxu0 %v411
      %v1853 = vpop.f32.mrf.mxu0
      %v1854 = vadd.f32 0.0, %v1853
      %v1855 = vpop.f32.mrf.mxu0
      %v1856 = vpop.f32.mrf.mxu0
      %v1857 = vadd.f32 0.0, %v1856
      %v1858 = vpop.f32.mrf.mxu0
      %1859 = vmatprep.mubr.bf16.mxu0 0
      %1860 = vmatmul.mubr.bf16.gmra.mxu0 %v414
      %v1861 = vpop.f32.mrf.mxu0
      %v1862 = vadd.f32 0.0, %v1861
      %v1863 = vpop.f32.mrf.mxu0
      %v1864 = vpop.f32.mrf.mxu0
      %v1865 = vadd.f32 0.0, %v1864
      %v1866 = vpop.f32.mrf.mxu0
      %1867 = vdwg.mxu0
      %1868 = vxpose.xlu0.b32.start [1/16] %v1830, 128
      %1869 = vxpose.xlu0.b32.cont [2/16] 0.0, 128
      %1870 = vxpose.xlu0.b32.cont [3/16] 0.0, 128
      %1871 = vxpose.xlu0.b32.cont [4/16] 0.0, 128
      %1872 = vxpose.xlu0.b32.cont [5/16] 0.0, 128
      %1873 = vxpose.xlu0.b32.cont [6/16] 0.0, 128
      %1874 = vxpose.xlu0.b32.cont [7/16] 0.0, 128
      %1875 = vxpose.xlu0.b32.cont [8/16] 0.0, 128
      %1876 = vxpose.xlu0.b32.cont [9/16] 0.0, 128
      %1877 = vxpose.xlu0.b32.cont [10/16] 0.0, 128
      %1878 = vxpose.xlu0.b32.cont [11/16] 0.0, 128
      %1879 = vxpose.xlu0.b32.cont [12/16] 0.0, 128
      %1880 = vxpose.xlu0.b32.cont [13/16] 0.0, 128
      %1881 = vxpose.xlu0.b32.cont [14/16] 0.0, 128
      %1882 = vxpose.xlu0.b32.cont [15/16] 0.0, 128
      %1883 = vxpose.xlu0.b32.end [16/16] 0.0, 128
      %v1884 = vpop.trf.xlu0
      %v1885 = vpop.trf.xlu0
      %v1886 = vpop.trf.xlu0
      %v1887 = vpop.trf.xlu0
      %v1888 = vpop.trf.xlu0
      %v1889 = vpop.trf.xlu0
      %v1890 = vpop.trf.xlu0
      %v1891 = vpop.trf.xlu0
      %v1892 = vpop.trf.xlu0
      %v1893 = vpop.trf.xlu0
      %v1894 = vpop.trf.xlu0
      %v1895 = vpop.trf.xlu0
      %v1896 = vpop.trf.xlu0
      %v1897 = vpop.trf.xlu0
      %v1898 = vpop.trf.xlu0
      %v1899 = vpop.trf.xlu0
      %1900 = vxpose.xlu0.b32.start [1/16] %v1833, 128
      %1901 = vxpose.xlu0.b32.cont [2/16] 0.0, 128
      %1902 = vxpose.xlu0.b32.cont [3/16] 0.0, 128
      %1903 = vxpose.xlu0.b32.cont [4/16] 0.0, 128
      %1904 = vxpose.xlu0.b32.cont [5/16] 0.0, 128
      %1905 = vxpose.xlu0.b32.cont [6/16] 0.0, 128
      %1906 = vxpose.xlu0.b32.cont [7/16] 0.0, 128
      %1907 = vxpose.xlu0.b32.cont [8/16] 0.0, 128
      %1908 = vxpose.xlu0.b32.cont [9/16] 0.0, 128
      %1909 = vxpose.xlu0.b32.cont [10/16] 0.0, 128
      %1910 = vxpose.xlu0.b32.cont [11/16] 0.0, 128
      %1911 = vxpose.xlu0.b32.cont [12/16] 0.0, 128
      %1912 = vxpose.xlu0.b32.cont [13/16] 0.0, 128
      %1913 = vxpose.xlu0.b32.cont [14/16] 0.0, 128
      %1914 = vxpose.xlu0.b32.cont [15/16] 0.0, 128
      %1915 = vxpose.xlu0.b32.end [16/16] 0.0, 128
      %v1916 = vpop.trf.xlu0
      %v1917 = vpop.trf.xlu0
      %v1918 = vpop.trf.xlu0
      %v1919 = vpop.trf.xlu0
      %v1920 = vpop.trf.xlu0
      %v1921 = vpop.trf.xlu0
      %v1922 = vpop.trf.xlu0
      %v1923 = vpop.trf.xlu0
      %v1924 = vpop.trf.xlu0
      %v1925 = vpop.trf.xlu0
      %v1926 = vpop.trf.xlu0
      %v1927 = vpop.trf.xlu0
      %v1928 = vpop.trf.xlu0
      %v1929 = vpop.trf.xlu0
      %v1930 = vpop.trf.xlu0
      %v1931 = vpop.trf.xlu0
      %1932 = vxpose.xlu0.b32.start [1/16] %v1838, 128
      %1933 = vxpose.xlu0.b32.cont [2/16] 0.0, 128
      %1934 = vxpose.xlu0.b32.cont [3/16] 0.0, 128
      %1935 = vxpose.xlu0.b32.cont [4/16] 0.0, 128
      %1936 = vxpose.xlu0.b32.cont [5/16] 0.0, 128
      %1937 = vxpose.xlu0.b32.cont [6/16] 0.0, 128
      %1938 = vxpose.xlu0.b32.cont [7/16] 0.0, 128
      %1939 = vxpose.xlu0.b32.cont [8/16] 0.0, 128
      %1940 = vxpose.xlu0.b32.cont [9/16] 0.0, 128
      %1941 = vxpose.xlu0.b32.cont [10/16] 0.0, 128
      %1942 = vxpose.xlu0.b32.cont [11/16] 0.0, 128
      %1943 = vxpose.xlu0.b32.cont [12/16] 0.0, 128
      %1944 = vxpose.xlu0.b32.cont [13/16] 0.0, 128
      %1945 = vxpose.xlu0.b32.cont [14/16] 0.0, 128
      %1946 = vxpose.xlu0.b32.cont [15/16] 0.0, 128
      %1947 = vxpose.xlu0.b32.end [16/16] 0.0, 128
      %v1948 = vpop.trf.xlu0
      %v1949 = vpop.trf.xlu0
      %v1950 = vpop.trf.xlu0
      %v1951 = vpop.trf.xlu0
      %v1952 = vpop.trf.xlu0
      %v1953 = vpop.trf.xlu0
      %v1954 = vpop.trf.xlu0
      %v1955 = vpop.trf.xlu0
      %v1956 = vpop.trf.xlu0
      %v1957 = vpop.trf.xlu0
      %v1958 = vpop.trf.xlu0
      %v1959 = vpop.trf.xlu0
      %v1960 = vpop.trf.xlu0
      %v1961 = vpop.trf.xlu0
      %v1962 = vpop.trf.xlu0
      %v1963 = vpop.trf.xlu0
      %1964 = vxpose.xlu0.b32.start [1/16] %v1841, 128
      %1965 = vxpose.xlu0.b32.cont [2/16] 0.0, 128
      %1966 = vxpose.xlu0.b32.cont [3/16] 0.0, 128
      %1967 = vxpose.xlu0.b32.cont [4/16] 0.0, 128
      %1968 = vxpose.xlu0.b32.cont [5/16] 0.0, 128
      %1969 = vxpose.xlu0.b32.cont [6/16] 0.0, 128
      %1970 = vxpose.xlu0.b32.cont [7/16] 0.0, 128
      %1971 = vxpose.xlu0.b32.cont [8/16] 0.0, 128
      %1972 = vxpose.xlu0.b32.cont [9/16] 0.0, 128
      %1973 = vxpose.xlu0.b32.cont [10/16] 0.0, 128
      %1974 = vxpose.xlu0.b32.cont [11/16] 0.0, 128
      %1975 = vxpose.xlu0.b32.cont [12/16] 0.0, 128
      %1976 = vxpose.xlu0.b32.cont [13/16] 0.0, 128
      %1977 = vxpose.xlu0.b32.cont [14/16] 0.0, 128
      %1978 = vxpose.xlu0.b32.cont [15/16] 0.0, 128
      %1979 = vxpose.xlu0.b32.end [16/16] 0.0, 128
      %v1980 = vpop.trf.xlu0
      %v1981 = vpop.trf.xlu0
      %v1982 = vpop.trf.xlu0
      %v1983 = vpop.trf.xlu0
      %v1984 = vpop.trf.xlu0
      %v1985 = vpop.trf.xlu0
      %v1986 = vpop.trf.xlu0
      %v1987 = vpop.trf.xlu0
      %v1988 = vpop.trf.xlu0
      %v1989 = vpop.trf.xlu0
      %v1990 = vpop.trf.xlu0
      %v1991 = vpop.trf.xlu0
      %v1992 = vpop.trf.xlu0
      %v1993 = vpop.trf.xlu0
      %v1994 = vpop.trf.xlu0
      %v1995 = vpop.trf.xlu0
      %1996 = vxpose.xlu0.b32.start [1/16] %v1846, 128
      %1997 = vxpose.xlu0.b32.cont [2/16] 0.0, 128
      %1998 = vxpose.xlu0.b32.cont [3/16] 0.0, 128
      %1999 = vxpose.xlu0.b32.cont [4/16] 0.0, 128
      %2000 = vxpose.xlu0.b32.cont [5/16] 0.0, 128
      %2001 = vxpose.xlu0.b32.cont [6/16] 0.0, 128
      %2002 = vxpose.xlu0.b32.cont [7/16] 0.0, 128
      %2003 = vxpose.xlu0.b32.cont [8/16] 0.0, 128
      %2004 = vxpose.xlu0.b32.cont [9/16] 0.0, 128
      %2005 = vxpose.xlu0.b32.cont [10/16] 0.0, 128
      %2006 = vxpose.xlu0.b32.cont [11/16] 0.0, 128
      %2007 = vxpose.xlu0.b32.cont [12/16] 0.0, 128
      %2008 = vxpose.xlu0.b32.cont [13/16] 0.0, 128
      %2009 = vxpose.xlu0.b32.cont [14/16] 0.0, 128
      %2010 = vxpose.xlu0.b32.cont [15/16] 0.0, 128
      %2011 = vxpose.xlu0.b32.end [16/16] 0.0, 128
      %v2012 = vpop.trf.xlu0
      %v2013 = vpop.trf.xlu0
      %v2014 = vpop.trf.xlu0
      %v2015 = vpop.trf.xlu0
      %v2016 = vpop.trf.xlu0
      %v2017 = vpop.trf.xlu0
      %v2018 = vpop.trf.xlu0
      %v2019 = vpop.trf.xlu0
      %v2020 = vpop.trf.xlu0
      %v2021 = vpop.trf.xlu0
      %v2022 = vpop.trf.xlu0
      %v2023 = vpop.trf.xlu0
      %v2024 = vpop.trf.xlu0
      %v2025 = vpop.trf.xlu0
      %v2026 = vpop.trf.xlu0
      %v2027 = vpop.trf.xlu0
      %2028 = vxpose.xlu0.b32.start [1/16] %v1849, 128
      %2029 = vxpose.xlu0.b32.cont [2/16] 0.0, 128
      %2030 = vxpose.xlu0.b32.cont [3/16] 0.0, 128
      %2031 = vxpose.xlu0.b32.cont [4/16] 0.0, 128
      %2032 = vxpose.xlu0.b32.cont [5/16] 0.0, 128
      %2033 = vxpose.xlu0.b32.cont [6/16] 0.0, 128
      %2034 = vxpose.xlu0.b32.cont [7/16] 0.0, 128
      %2035 = vxpose.xlu0.b32.cont [8/16] 0.0, 128
      %2036 = vxpose.xlu0.b32.cont [9/16] 0.0, 128
      %2037 = vxpose.xlu0.b32.cont [10/16] 0.0, 128
      %2038 = vxpose.xlu0.b32.cont [11/16] 0.0, 128
      %2039 = vxpose.xlu0.b32.cont [12/16] 0.0, 128
      %2040 = vxpose.xlu0.b32.cont [13/16] 0.0, 128
      %2041 = vxpose.xlu0.b32.cont [14/16] 0.0, 128
      %2042 = vxpose.xlu0.b32.cont [15/16] 0.0, 128
      %2043 = vxpose.xlu0.b32.end [16/16] 0.0, 128
      %v2044 = vpop.trf.xlu0
      %v2045 = vpop.trf.xlu0
      %v2046 = vpop.trf.xlu0
      %v2047 = vpop.trf.xlu0
      %v2048 = vpop.trf.xlu0
      %v2049 = vpop.trf.xlu0
      %v2050 = vpop.trf.xlu0
      %v2051 = vpop.trf.xlu0
      %v2052 = vpop.trf.xlu0
      %v2053 = vpop.trf.xlu0
      %v2054 = vpop.trf.xlu0
      %v2055 = vpop.trf.xlu0
      %v2056 = vpop.trf.xlu0
      %v2057 = vpop.trf.xlu0
      %v2058 = vpop.trf.xlu0
      %v2059 = vpop.trf.xlu0
      %2060 = vxpose.xlu0.b32.start [1/16] %v1854, 128
      %2061 = vxpose.xlu0.b32.cont [2/16] 0.0, 128
      %2062 = vxpose.xlu0.b32.cont [3/16] 0.0, 128
      %2063 = vxpose.xlu0.b32.cont [4/16] 0.0, 128
      %2064 = vxpose.xlu0.b32.cont [5/16] 0.0, 128
      %2065 = vxpose.xlu0.b32.cont [6/16] 0.0, 128
      %2066 = vxpose.xlu0.b32.cont [7/16] 0.0, 128
      %2067 = vxpose.xlu0.b32.cont [8/16] 0.0, 128
      %2068 = vxpose.xlu0.b32.cont [9/16] 0.0, 128
      %2069 = vxpose.xlu0.b32.cont [10/16] 0.0, 128
      %2070 = vxpose.xlu0.b32.cont [11/16] 0.0, 128
      %2071 = vxpose.xlu0.b32.cont [12/16] 0.0, 128
      %2072 = vxpose.xlu0.b32.cont [13/16] 0.0, 128
      %2073 = vxpose.xlu0.b32.cont [14/16] 0.0, 128
      %2074 = vxpose.xlu0.b32.cont [15/16] 0.0, 128
      %2075 = vxpose.xlu0.b32.end [16/16] 0.0, 128
      %v2076 = vpop.trf.xlu0
      %v2077 = vpop.trf.xlu0
      %v2078 = vpop.trf.xlu0
      %v2079 = vpop.trf.xlu0
      %v2080 = vpop.trf.xlu0
      %v2081 = vpop.trf.xlu0
      %v2082 = vpop.trf.xlu0
      %v2083 = vpop.trf.xlu0
      %v2084 = vpop.trf.xlu0
      %v2085 = vpop.trf.xlu0
      %v2086 = vpop.trf.xlu0
      %v2087 = vpop.trf.xlu0
      %v2088 = vpop.trf.xlu0
      %v2089 = vpop.trf.xlu0
      %v2090 = vpop.trf.xlu0
      %v2091 = vpop.trf.xlu0
      %2092 = vxpose.xlu0.b32.start [1/16] %v1857, 128
      %2093 = vxpose.xlu0.b32.cont [2/16] 0.0, 128
      %2094 = vxpose.xlu0.b32.cont [3/16] 0.0, 128
      %2095 = vxpose.xlu0.b32.cont [4/16] 0.0, 128
      %2096 = vxpose.xlu0.b32.cont [5/16] 0.0, 128
      %2097 = vxpose.xlu0.b32.cont [6/16] 0.0, 128
      %2098 = vxpose.xlu0.b32.cont [7/16] 0.0, 128
      %2099 = vxpose.xlu0.b32.cont [8/16] 0.0, 128
      %2100 = vxpose.xlu0.b32.cont [9/16] 0.0, 128
      %2101 = vxpose.xlu0.b32.cont [10/16] 0.0, 128
      %2102 = vxpose.xlu0.b32.cont [11/16] 0.0, 128
      %2103 = vxpose.xlu0.b32.cont [12/16] 0.0, 128
      %2104 = vxpose.xlu0.b32.cont [13/16] 0.0, 128
      %2105 = vxpose.xlu0.b32.cont [14/16] 0.0, 128
      %2106 = vxpose.xlu0.b32.cont [15/16] 0.0, 128
      %2107 = vxpose.xlu0.b32.end [16/16] 0.0, 128
      %v2108 = vpop.trf.xlu0
      %v2109 = vpop.trf.xlu0
      %v2110 = vpop.trf.xlu0
      %v2111 = vpop.trf.xlu0
      %v2112 = vpop.trf.xlu0
      %v2113 = vpop.trf.xlu0
      %v2114 = vpop.trf.xlu0
      %v2115 = vpop.trf.xlu0
      %v2116 = vpop.trf.xlu0
      %v2117 = vpop.trf.xlu0
      %v2118 = vpop.trf.xlu0
      %v2119 = vpop.trf.xlu0
      %v2120 = vpop.trf.xlu0
      %v2121 = vpop.trf.xlu0
      %v2122 = vpop.trf.xlu0
      %v2123 = vpop.trf.xlu0
      %2124 = vxpose.xlu0.b32.start [1/16] %v1862, 128
      %2125 = vxpose.xlu0.b32.cont [2/16] 0.0, 128
      %2126 = vxpose.xlu0.b32.cont [3/16] 0.0, 128
      %2127 = vxpose.xlu0.b32.cont [4/16] 0.0, 128
      %2128 = vxpose.xlu0.b32.cont [5/16] 0.0, 128
      %2129 = vxpose.xlu0.b32.cont [6/16] 0.0, 128
      %2130 = vxpose.xlu0.b32.cont [7/16] 0.0, 128
      %2131 = vxpose.xlu0.b32.cont [8/16] 0.0, 128
      %2132 = vxpose.xlu0.b32.cont [9/16] 0.0, 128
      %2133 = vxpose.xlu0.b32.cont [10/16] 0.0, 128
      %2134 = vxpose.xlu0.b32.cont [11/16] 0.0, 128
      %2135 = vxpose.xlu0.b32.cont [12/16] 0.0, 128
      %2136 = vxpose.xlu0.b32.cont [13/16] 0.0, 128
      %2137 = vxpose.xlu0.b32.cont [14/16] 0.0, 128
      %2138 = vxpose.xlu0.b32.cont [15/16] 0.0, 128
      %2139 = vxpose.xlu0.b32.end [16/16] 0.0, 128
      %v2140 = vpop.trf.xlu0
      %v2141 = vpop.trf.xlu0
      %v2142 = vpop.trf.xlu0
      %v2143 = vpop.trf.xlu0
      %v2144 = vpop.trf.xlu0
      %v2145 = vpop.trf.xlu0
      %v2146 = vpop.trf.xlu0
      %v2147 = vpop.trf.xlu0
      %v2148 = vpop.trf.xlu0
      %v2149 = vpop.trf.xlu0
      %v2150 = vpop.trf.xlu0
      %v2151 = vpop.trf.xlu0
      %v2152 = vpop.trf.xlu0
      %v2153 = vpop.trf.xlu0
      %v2154 = vpop.trf.xlu0
      %v2155 = vpop.trf.xlu0
      %2156 = vxpose.xlu0.b32.start [1/16] %v1865, 128
      %2157 = vxpose.xlu0.b32.cont [2/16] 0.0, 128
      %2158 = vxpose.xlu0.b32.cont [3/16] 0.0, 128
      %2159 = vxpose.xlu0.b32.cont [4/16] 0.0, 128
      %2160 = vxpose.xlu0.b32.cont [5/16] 0.0, 128
      %2161 = vxpose.xlu0.b32.cont [6/16] 0.0, 128
      %2162 = vxpose.xlu0.b32.cont [7/16] 0.0, 128
      %2163 = vxpose.xlu0.b32.cont [8/16] 0.0, 128
      %2164 = vxpose.xlu0.b32.cont [9/16] 0.0, 128
      %2165 = vxpose.xlu0.b32.cont [10/16] 0.0, 128
      %2166 = vxpose.xlu0.b32.cont [11/16] 0.0, 128
      %2167 = vxpose.xlu0.b32.cont [12/16] 0.0, 128
      %2168 = vxpose.xlu0.b32.cont [13/16] 0.0, 128
      %2169 = vxpose.xlu0.b32.cont [14/16] 0.0, 128
      %2170 = vxpose.xlu0.b32.cont [15/16] 0.0, 128
      %2171 = vxpose.xlu0.b32.end [16/16] 0.0, 128
      %v2172 = vpop.trf.xlu0
      %v2173 = vpop.trf.xlu0
      %v2174 = vpop.trf.xlu0
      %v2175 = vpop.trf.xlu0
      %v2176 = vpop.trf.xlu0
      %v2177 = vpop.trf.xlu0
      %v2178 = vpop.trf.xlu0
      %v2179 = vpop.trf.xlu0
      %v2180 = vpop.trf.xlu0
      %v2181 = vpop.trf.xlu0
      %v2182 = vpop.trf.xlu0
      %v2183 = vpop.trf.xlu0
      %v2184 = vpop.trf.xlu0
      %v2185 = vpop.trf.xlu0
      %v2186 = vpop.trf.xlu0
      %v2187 = vpop.trf.xlu0
      %v2188 = vpack.c.bf16 %v1885, %v1884
      %v2189 = vpack.c.bf16 %v1916, %v1886
      %v2190 = vpack.c.bf16 %v1918, %v1917
      %v2191 = vpack.c.bf16 %v1949, %v1948
      %v2192 = vpack.c.bf16 %v1980, %v1950
      %v2193 = vpack.c.bf16 %v1982, %v1981
      %v2194 = vpack.c.bf16 %v2013, %v2012
      %v2195 = vpack.c.bf16 %v2044, %v2014
      %v2196 = vpack.c.bf16 %v2046, %v2045
      %v2197 = vpack.c.bf16 %v2077, %v2076
      %v2198 = vpack.c.bf16 %v2108, %v2078
      %v2199 = vpack.c.bf16 %v2110, %v2109
      %v2200 = vpack.c.bf16 %v2141, %v2140
      %v2201 = vpack.c.bf16 %v2172, %v2142
      %v2202 = vpack.c.bf16 %v2174, %v2173
      %s2203 = scalar_lea.vmem %s3, 8
      %v2204 = vld [vmem:[%s2203] sm:$0xf]
      %v2206 = vsel %vm829, %v2188, 0
      %v2209 = vsel %vm829, %v2189, 0
      %v2212 = vsel %vm829, %v2190, 0
      %v2215 = vsel %vm829, %v2191, 0
      %v2218 = vsel %vm829, %v2192, 0
      %v2221 = vsel %vm829, %v2193, 0
      %v2224 = vsel %vm829, %v2194, 0
      %v2227 = vsel %vm829, %v2195, 0
      %v2230 = vsel %vm829, %v2196, 0
      %v2233 = vsel %vm829, %v2197, 0
      %v2236 = vsel %vm829, %v2198, 0
      %v2239 = vsel %vm829, %v2199, 0
      %v2242 = vsel %vm829, %v2200, 0
      %v2245 = vsel %vm829, %v2201, 0
      %v2248 = vsel %vm829, %v2202, 0
      %v2251 = vsel %vm416, %v2204, 0
      %2253 = vmatprep.subr.bf16.mxu0 0
      %2254 = vmatpush1.bf16.msra.mxu0 0
      %2255 = vmatprep.subr.bf16.mxu0 0
      %2256 = vmatpush1.bf16.msra.mxu0 0
      %2257 = vmatprep.subr.bf16.mxu0 0
      %2258 = vmatpush1.bf16.msra.mxu0 0
      %2259 = vmatprep.subr.bf16.mxu0 0
      %2260 = vmatpush1.bf16.msra.mxu0 0
      %2261 = vmatprep.subr.bf16.mxu0 0
      %2262 = vmatpush1.bf16.msra.mxu0 0
      %2263 = vmatprep.subr.bf16.mxu0 0
      %2264 = vmatpush1.bf16.msra.mxu0 0
      %2265 = vmatprep.subr.bf16.mxu0 0
      %2266 = vmatpush1.bf16.msra.mxu0 0
      %2267 = vmatprep.subr.bf16.mxu0 0
      %2268 = vmatpush1.bf16.msra.mxu0 %v2251
      %2269 = vmatprep.subr.bf16.mxu0 0
      %2270 = vmatpush2.bf16.msra.mxu0 0
      %2271 = vmatprep.subr.bf16.mxu0 0
      %2272 = vmatpush2.bf16.msra.mxu0 0
      %2273 = vmatprep.subr.bf16.mxu0 0
      %2274 = vmatpush2.bf16.msra.mxu0 0
      %2275 = vmatprep.subr.bf16.mxu0 0
      %2276 = vmatpush2.bf16.msra.mxu0 0
      %2277 = vmatprep.subr.bf16.mxu0 0
      %2278 = vmatpush2.bf16.msra.mxu0 0
      %2279 = vmatprep.subr.bf16.mxu0 0
      %2280 = vmatpush2.bf16.msra.mxu0 0
      %2281 = vmatprep.subr.bf16.mxu0 0
      %2282 = vmatpush2.bf16.msra.mxu0 0
      %2283 = vmatprep.subr.bf16.mxu0 0
      %2284 = vmatpush2.bf16.msra.mxu0 0
      %2285 = vmatprep.mubr.bf16.mxu0 0
      %2286 = vmatmul.mubr.bf16.gmra.mxu0 %v2206
      %v2287 = vpop.f32.mrf.mxu0
      %v2288 = vadd.f32 0.0, %v2287
      %v2289 = vpop.f32.mrf.mxu0
      %v2290 = vpop.f32.mrf.mxu0
      %v2291 = vadd.f32 0.0, %v2290
      %v2292 = vpop.f32.mrf.mxu0
      %2293 = vmatprep.mubr.bf16.mxu0 0
      %2294 = vmatmul.mubr.bf16.gmra.mxu0 %v2209
      %v2295 = vpop.f32.mrf.mxu0
      %v2296 = vadd.f32 0.0, %v2295
      %v2297 = vpop.f32.mrf.mxu0
      %v2298 = vpop.f32.mrf.mxu0
      %v2299 = vadd.f32 0.0, %v2298
      %v2300 = vpop.f32.mrf.mxu0
      %2301 = vmatprep.mubr.bf16.mxu0 0
      %2302 = vmatmul.mubr.bf16.gmra.mxu0 %v2212
      %v2303 = vpop.f32.mrf.mxu0
      %v2304 = vadd.f32 0.0, %v2303
      %v2305 = vpop.f32.mrf.mxu0
      %v2306 = vpop.f32.mrf.mxu0
      %v2307 = vadd.f32 0.0, %v2306
      %v2308 = vpop.f32.mrf.mxu0
      %2309 = vmatprep.mubr.bf16.mxu0 0
      %2310 = vmatmul.mubr.bf16.gmra.mxu0 %v2215
      %v2311 = vpop.f32.mrf.mxu0
      %v2312 = vadd.f32 0.0, %v2311
      %v2313 = vpop.f32.mrf.mxu0
      %v2314 = vpop.f32.mrf.mxu0
      %v2315 = vadd.f32 0.0, %v2314
      %v2316 = vpop.f32.mrf.mxu0
      %2317 = vmatprep.mubr.bf16.mxu0 0
      %2318 = vmatmul.mubr.bf16.gmra.mxu0 %v2218
      %v2319 = vpop.f32.mrf.mxu0
      %v2320 = vadd.f32 0.0, %v2319
      %v2321 = vpop.f32.mrf.mxu0
      %v2322 = vpop.f32.mrf.mxu0
      %v2323 = vadd.f32 0.0, %v2322
      %v2324 = vpop.f32.mrf.mxu0
      %2325 = vmatprep.mubr.bf16.mxu0 0
      %2326 = vmatmul.mubr.bf16.gmra.mxu0 %v2221
      %v2327 = vpop.f32.mrf.mxu0
      %v2328 = vadd.f32 0.0, %v2327
      %v2329 = vpop.f32.mrf.mxu0
      %v2330 = vpop.f32.mrf.mxu0
      %v2331 = vadd.f32 0.0, %v2330
      %v2332 = vpop.f32.mrf.mxu0
      %2333 = vmatprep.mubr.bf16.mxu0 0
      %2334 = vmatmul.mubr.bf16.gmra.mxu0 %v2224
      %v2335 = vpop.f32.mrf.mxu0
      %v2336 = vadd.f32 0.0, %v2335
      %v2337 = vpop.f32.mrf.mxu0
      %v2338 = vpop.f32.mrf.mxu0
      %v2339 = vadd.f32 0.0, %v2338
      %v2340 = vpop.f32.mrf.mxu0
      %2341 = vmatprep.mubr.bf16.mxu0 0
      %2342 = vmatmul.mubr.bf16.gmra.mxu0 %v2227
      %v2343 = vpop.f32.mrf.mxu0
      %v2344 = vadd.f32 0.0, %v2343
      %v2345 = vpop.f32.mrf.mxu0
      %v2346 = vpop.f32.mrf.mxu0
      %v2347 = vadd.f32 0.0, %v2346
      %v2348 = vpop.f32.mrf.mxu0
      %2349 = vmatprep.mubr.bf16.mxu0 0
      %2350 = vmatmul.mubr.bf16.gmra.mxu0 %v2230
      %v2351 = vpop.f32.mrf.mxu0
      %v2352 = vadd.f32 0.0, %v2351
      %v2353 = vpop.f32.mrf.mxu0
      %v2354 = vpop.f32.mrf.mxu0
      %v2355 = vadd.f32 0.0, %v2354
      %v2356 = vpop.f32.mrf.mxu0
      %2357 = vmatprep.mubr.bf16.mxu0 0
      %2358 = vmatmul.mubr.bf16.gmra.mxu0 %v2233
      %v2359 = vpop.f32.mrf.mxu0
      %v2360 = vadd.f32 0.0, %v2359
      %v2361 = vpop.f32.mrf.mxu0
      %v2362 = vpop.f32.mrf.mxu0
      %v2363 = vadd.f32 0.0, %v2362
      %v2364 = vpop.f32.mrf.mxu0
      %2365 = vmatprep.mubr.bf16.mxu0 0
      %2366 = vmatmul.mubr.bf16.gmra.mxu0 %v2236
      %v2367 = vpop.f32.mrf.mxu0
      %v2368 = vadd.f32 0.0, %v2367
      %v2369 = vpop.f32.mrf.mxu0
      %v2370 = vpop.f32.mrf.mxu0
      %v2371 = vadd.f32 0.0, %v2370
      %v2372 = vpop.f32.mrf.mxu0
      %2373 = vmatprep.mubr.bf16.mxu0 0
      %2374 = vmatmul.mubr.bf16.gmra.mxu0 %v2239
      %v2375 = vpop.f32.mrf.mxu0
      %v2376 = vadd.f32 0.0, %v2375
      %v2377 = vpop.f32.mrf.mxu0
      %v2378 = vpop.f32.mrf.mxu0
      %v2379 = vadd.f32 0.0, %v2378
      %v2380 = vpop.f32.mrf.mxu0
      %2381 = vmatprep.mubr.bf16.mxu0 0
      %2382 = vmatmul.mubr.bf16.gmra.mxu0 %v2242
      %v2383 = vpop.f32.mrf.mxu0
      %v2384 = vadd.f32 0.0, %v2383
      %v2385 = vpop.f32.mrf.mxu0
      %v2386 = vpop.f32.mrf.mxu0
      %v2387 = vadd.f32 0.0, %v2386
      %v2388 = vpop.f32.mrf.mxu0
      %2389 = vmatprep.mubr.bf16.mxu0 0
      %2390 = vmatmul.mubr.bf16.gmra.mxu0 %v2245
      %v2391 = vpop.f32.mrf.mxu0
      %v2392 = vadd.f32 0.0, %v2391
      %v2393 = vpop.f32.mrf.mxu0
      %v2394 = vpop.f32.mrf.mxu0
      %v2395 = vadd.f32 0.0, %v2394
      %v2396 = vpop.f32.mrf.mxu0
      %2397 = vmatprep.mubr.bf16.mxu0 0
      %2398 = vmatmul.mubr.bf16.gmra.mxu0 %v2248
      %v2399 = vpop.f32.mrf.mxu0
      %v2400 = vadd.f32 0.0, %v2399
      %v2401 = vpop.f32.mrf.mxu0
      %v2402 = vpop.f32.mrf.mxu0
      %v2403 = vadd.f32 0.0, %v2402
      %v2404 = vpop.f32.mrf.mxu0
      %2405 = vdwg.mxu0
      %v2406 = vld [vmem:[#allocation2] sm:$0xff]
      %v2407 = vld [vmem:[#allocation2 + $0x8] sm:$0xff]
      %v2408 = vld [vmem:[#allocation2 + $0x10] sm:$0xff]
      %v2409 = vld [vmem:[#allocation2 + $0x18] sm:$0xff]
      %v2410 = vld [vmem:[#allocation2 + $0x20] sm:$0xff]
      %v2411 = vld [vmem:[#allocation2 + $0x28] sm:$0xff]
      %v2412 = vld [vmem:[#allocation2 + $0x30] sm:$0xff]
      %v2413 = vld [vmem:[#allocation2 + $0x38] sm:$0xff]
      %v2414 = vld [vmem:[#allocation2 + $0x40] sm:$0xff]
      %v2415 = vld [vmem:[#allocation2 + $0x48] sm:$0xff]
      %v2416 = vld [vmem:[#allocation2 + $0x50] sm:$0xff]
      %v2417 = vld [vmem:[#allocation2 + $0x58] sm:$0xff]
      %v2418 = vld [vmem:[#allocation2 + $0x60] sm:$0xff]
      %v2419 = vld [vmem:[#allocation2 + $0x68] sm:$0xff]
      %v2420 = vld [vmem:[#allocation2 + $0x70] sm:$0xff]
      %v2421 = vld [vmem:[#allocation2 + $0x78] sm:$0xff]
      %v2422 = vld [vmem:[#allocation2 + $0x80] sm:$0xff]
      %v2423 = vld [vmem:[#allocation2 + $0x88] sm:$0xff]
      %v2424 = vld [vmem:[#allocation2 + $0x90] sm:$0xff]
      %v2425 = vld [vmem:[#allocation2 + $0x98] sm:$0xff]
      %v2426 = vld [vmem:[#allocation2 + $0xa0] sm:$0xff]
      %v2427 = vld [vmem:[#allocation2 + $0xa8] sm:$0xff]
      %v2428 = vld [vmem:[#allocation2 + $0xb0] sm:$0xff]
      %v2429 = vld [vmem:[#allocation2 + $0xb8] sm:$0xff]
      %v2430 = vld [vmem:[#allocation2 + $0xc0] sm:$0xff]
      %v2431 = vld [vmem:[#allocation2 + $0xc8] sm:$0xff]
      %v2432 = vld [vmem:[#allocation2 + $0xd0] sm:$0xff]
      %v2433 = vld [vmem:[#allocation2 + $0xd8] sm:$0xff]
      %v2434 = vld [vmem:[#allocation2 + $0xe0] sm:$0xff]
      %v2435 = vld [vmem:[#allocation2 + $0xe8] sm:$0xff]
      %v2436 = vadd.f32 %v2406, %v2288
      %v2437 = vadd.f32 %v2407, %v2291
      %v2438 = vadd.f32 %v2408, %v2296
      %v2439 = vadd.f32 %v2409, %v2299
      %v2440 = vadd.f32 %v2410, %v2304
      %v2441 = vadd.f32 %v2411, %v2307
      %v2442 = vadd.f32 %v2412, %v2312
      %v2443 = vadd.f32 %v2413, %v2315
      %v2444 = vadd.f32 %v2414, %v2320
      %v2445 = vadd.f32 %v2415, %v2323
      %v2446 = vadd.f32 %v2416, %v2328
      %v2447 = vadd.f32 %v2417, %v2331
      %v2448 = vadd.f32 %v2418, %v2336
      %v2449 = vadd.f32 %v2419, %v2339
      %v2450 = vadd.f32 %v2420, %v2344
      %v2451 = vadd.f32 %v2421, %v2347
      %v2452 = vadd.f32 %v2422, %v2352
      %v2453 = vadd.f32 %v2423, %v2355
      %v2454 = vadd.f32 %v2424, %v2360
      %v2455 = vadd.f32 %v2425, %v2363
      %v2456 = vadd.f32 %v2426, %v2368
      %v2457 = vadd.f32 %v2427, %v2371
      %v2458 = vadd.f32 %v2428, %v2376
      %v2459 = vadd.f32 %v2429, %v2379
      %v2460 = vadd.f32 %v2430, %v2384
      %v2461 = vadd.f32 %v2431, %v2387
      %v2462 = vadd.f32 %v2432, %v2392
      %v2463 = vadd.f32 %v2433, %v2395
      %v2464 = vadd.f32 %v2434, %v2400
      %v2465 = vadd.f32 %v2435, %v2403
      %2466 = vst.msk [vmem:[#allocation2] sm:$0xff] %vm1031, %v2436
      %2467 = vst.msk [vmem:[#allocation2 + $0x8] sm:$0xff] %vm1031, %v2437
      %2468 = vst.msk [vmem:[#allocation2 + $0x10] sm:$0xff] %vm1031, %v2438
      %2469 = vst.msk [vmem:[#allocation2 + $0x18] sm:$0xff] %vm1031, %v2439
      %2470 = vst.msk [vmem:[#allocation2 + $0x20] sm:$0xff] %vm1031, %v2440
      %2471 = vst.msk [vmem:[#allocation2 + $0x28] sm:$0xff] %vm1031, %v2441
      %2472 = vst.msk [vmem:[#allocation2 + $0x30] sm:$0xff] %vm1031, %v2442
      %2473 = vst.msk [vmem:[#allocation2 + $0x38] sm:$0xff] %vm1031, %v2443
      %2474 = vst.msk [vmem:[#allocation2 + $0x40] sm:$0xff] %vm1031, %v2444
      %2475 = vst.msk [vmem:[#allocation2 + $0x48] sm:$0xff] %vm1031, %v2445
      %2476 = vst.msk [vmem:[#allocation2 + $0x50] sm:$0xff] %vm1031, %v2446
      %2477 = vst.msk [vmem:[#allocation2 + $0x58] sm:$0xff] %vm1031, %v2447
      %2478 = vst.msk [vmem:[#allocation2 + $0x60] sm:$0xff] %vm1031, %v2448
      %2479 = vst.msk [vmem:[#allocation2 + $0x68] sm:$0xff] %vm1031, %v2449
      %2480 = vst.msk [vmem:[#allocation2 + $0x70] sm:$0xff] %vm1031, %v2450
      %2481 = vst.msk [vmem:[#allocation2 + $0x78] sm:$0xff] %vm1031, %v2451
      %2482 = vst.msk [vmem:[#allocation2 + $0x80] sm:$0xff] %vm1031, %v2452
      %2483 = vst.msk [vmem:[#allocation2 + $0x88] sm:$0xff] %vm1031, %v2453
      %2484 = vst.msk [vmem:[#allocation2 + $0x90] sm:$0xff] %vm1031, %v2454
      %2485 = vst.msk [vmem:[#allocation2 + $0x98] sm:$0xff] %vm1031, %v2455
      %2486 = vst.msk [vmem:[#allocation2 + $0xa0] sm:$0xff] %vm1031, %v2456
      %2487 = vst.msk [vmem:[#allocation2 + $0xa8] sm:$0xff] %vm1031, %v2457
      %2488 = vst.msk [vmem:[#allocation2 + $0xb0] sm:$0xff] %vm1031, %v2458
      %2489 = vst.msk [vmem:[#allocation2 + $0xb8] sm:$0xff] %vm1031, %v2459
      %2490 = vst.msk [vmem:[#allocation2 + $0xc0] sm:$0xff] %vm1031, %v2460
      %2491 = vst.msk [vmem:[#allocation2 + $0xc8] sm:$0xff] %vm1031, %v2461
      %2492 = vst.msk [vmem:[#allocation2 + $0xd0] sm:$0xff] %vm1031, %v2462
      %2493 = vst.msk [vmem:[#allocation2 + $0xd8] sm:$0xff] %vm1031, %v2463
      %2494 = vst.msk [vmem:[#allocation2 + $0xe0] sm:$0xff] %vm1031, %v2464
      %2495 = vst.msk [vmem:[#allocation2 + $0xe8] sm:$0xff] %vm1031, %v2465
      %v2496 = vld [vmem:[#allocation2] sm:$0xff]
      %v2497 = vld [vmem:[#allocation2 + $0x8] sm:$0xff]
      %v2498 = vld [vmem:[#allocation2 + $0x10] sm:$0xff]
      %v2499 = vld [vmem:[#allocation2 + $0x18] sm:$0xff]
      %v2500 = vld [vmem:[#allocation2 + $0x20] sm:$0xff]
      %v2501 = vld [vmem:[#allocation2 + $0x28] sm:$0xff]
      %v2502 = vld [vmem:[#allocation2 + $0x30] sm:$0xff]
      %v2503 = vld [vmem:[#allocation2 + $0x38] sm:$0xff]
      %v2504 = vld [vmem:[#allocation2 + $0x40] sm:$0xff]
      %v2505 = vld [vmem:[#allocation2 + $0x48] sm:$0xff]
      %v2506 = vld [vmem:[#allocation2 + $0x50] sm:$0xff]
      %v2507 = vld [vmem:[#allocation2 + $0x58] sm:$0xff]
      %v2508 = vld [vmem:[#allocation2 + $0x60] sm:$0xff]
      %v2509 = vld [vmem:[#allocation2 + $0x68] sm:$0xff]
      %v2510 = vld [vmem:[#allocation2 + $0x70] sm:$0xff]
      %v2511 = vld [vmem:[#allocation2 + $0x78] sm:$0xff]
      %v2512 = vld [vmem:[#allocation2 + $0x80] sm:$0xff]
      %v2513 = vld [vmem:[#allocation2 + $0x88] sm:$0xff]
      %v2514 = vld [vmem:[#allocation2 + $0x90] sm:$0xff]
      %v2515 = vld [vmem:[#allocation2 + $0x98] sm:$0xff]
      %v2516 = vld [vmem:[#allocation2 + $0xa0] sm:$0xff]
      %v2517 = vld [vmem:[#allocation2 + $0xa8] sm:$0xff]
      %v2518 = vld [vmem:[#allocation2 + $0xb0] sm:$0xff]
      %v2519 = vld [vmem:[#allocation2 + $0xb8] sm:$0xff]
      %v2520 = vld [vmem:[#allocation2 + $0xc0] sm:$0xff]
      %v2521 = vld [vmem:[#allocation2 + $0xc8] sm:$0xff]
      %v2522 = vld [vmem:[#allocation2 + $0xd0] sm:$0xff]
      %v2523 = vld [vmem:[#allocation2 + $0xd8] sm:$0xff]
      %v2524 = vld [vmem:[#allocation2 + $0xe0] sm:$0xff]
      %v2525 = vld [vmem:[#allocation2 + $0xe8] sm:$0xff]
      %v2526 = vld [vmem:[%s4] sm:$0xff]
      %v2527 = vld [vmem:[%s4 + $0x8] sm:$0xff]
      %v2528 = vld [vmem:[%s4 + $0x10] sm:$0xff]
      %v2529 = vadd.f32 %v2496, %v2526
      %v2530 = vadd.f32 %v2497, %v2527
      %v2531 = vadd.f32 %v2498, %v2528
      %v2532 = vadd.f32 %v2499, %v2526
      %v2533 = vadd.f32 %v2500, %v2527
      %v2534 = vadd.f32 %v2501, %v2528
      %v2535 = vadd.f32 %v2502, %v2526
      %v2536 = vadd.f32 %v2503, %v2527
      %v2537 = vadd.f32 %v2504, %v2528
      %v2538 = vadd.f32 %v2505, %v2526
      %v2539 = vadd.f32 %v2506, %v2527
      %v2540 = vadd.f32 %v2507, %v2528
      %v2541 = vadd.f32 %v2508, %v2526
      %v2542 = vadd.f32 %v2509, %v2527
      %v2543 = vadd.f32 %v2510, %v2528
      %v2544 = vadd.f32 %v2511, %v2526
      %v2545 = vadd.f32 %v2512, %v2527
      %v2546 = vadd.f32 %v2513, %v2528
      %v2547 = vadd.f32 %v2514, %v2526
      %v2548 = vadd.f32 %v2515, %v2527
      %v2549 = vadd.f32 %v2516, %v2528
      %v2550 = vadd.f32 %v2517, %v2526
      %v2551 = vadd.f32 %v2518, %v2527
      %v2552 = vadd.f32 %v2519, %v2528
      %v2553 = vadd.f32 %v2520, %v2526
      %v2554 = vadd.f32 %v2521, %v2527
      %v2555 = vadd.f32 %v2522, %v2528
      %v2556 = vadd.f32 %v2523, %v2526
      %v2557 = vadd.f32 %v2524, %v2527
      %v2558 = vadd.f32 %v2525, %v2528
      %v2559 = vmax.f32 %v2529, 0.0
      %v2560 = vmax.f32 %v2530, 0.0
      %v2561 = vmax.f32 %v2531, 0.0
      %v2562 = vmax.f32 %v2532, 0.0
      %v2563 = vmax.f32 %v2533, 0.0
      %v2564 = vmax.f32 %v2534, 0.0
      %v2565 = vmax.f32 %v2535, 0.0
      %v2566 = vmax.f32 %v2536, 0.0
      %v2567 = vmax.f32 %v2537, 0.0
      %v2568 = vmax.f32 %v2538, 0.0
      %v2569 = vmax.f32 %v2539, 0.0
      %v2570 = vmax.f32 %v2540, 0.0
      %v2571 = vmax.f32 %v2541, 0.0
      %v2572 = vmax.f32 %v2542, 0.0
      %v2573 = vmax.f32 %v2543, 0.0
      %v2574 = vmax.f32 %v2544, 0.0
      %v2575 = vmax.f32 %v2545, 0.0
      %v2576 = vmax.f32 %v2546, 0.0
      %v2577 = vmax.f32 %v2547, 0.0
      %v2578 = vmax.f32 %v2548, 0.0
      %v2579 = vmax.f32 %v2549, 0.0
      %v2580 = vmax.f32 %v2550, 0.0
      %v2581 = vmax.f32 %v2551, 0.0
      %v2582 = vmax.f32 %v2552, 0.0
      %v2583 = vmax.f32 %v2553, 0.0
      %v2584 = vmax.f32 %v2554, 0.0
      %v2585 = vmax.f32 %v2555, 0.0
      %v2586 = vmax.f32 %v2556, 0.0
      %v2587 = vmax.f32 %v2557, 0.0
      %v2588 = vmax.f32 %v2558, 0.0
      %v2589 = vpack.c.bf16 %v2560, %v2559
      %v2590 = vpack.c.bf16 %v2561, %v2561
      %v2591 = vpack.c.bf16 %v2563, %v2562
      %v2592 = vpack.c.bf16 %v2564, %v2564
      %v2593 = vpack.c.bf16 %v2566, %v2565
      %v2594 = vpack.c.bf16 %v2567, %v2567
      %v2595 = vpack.c.bf16 %v2569, %v2568
      %v2596 = vpack.c.bf16 %v2570, %v2570
      %v2597 = vpack.c.bf16 %v2572, %v2571
      %v2598 = vpack.c.bf16 %v2573, %v2573
      %v2599 = vpack.c.bf16 %v2575, %v2574
      %v2600 = vpack.c.bf16 %v2576, %v2576
      %v2601 = vpack.c.bf16 %v2578, %v2577
      %v2602 = vpack.c.bf16 %v2579, %v2579
      %v2603 = vpack.c.bf16 %v2581, %v2580
      %v2604 = vpack.c.bf16 %v2582, %v2582
      %v2605 = vpack.c.bf16 %v2584, %v2583
      %v2606 = vpack.c.bf16 %v2585, %v2585
      %v2607 = vpack.c.bf16 %v2587, %v2586
      %v2608 = vpack.c.bf16 %v2588, %v2588
      %v2629 = vunpack.c.l.b16 %v2589
      %v2630 = vunpack.c.h.b16 %v2589
      %v2631 = vunpack.c.l.b16 %v2590
      %v2632 = vunpack.c.l.b16 %v2591
      %v2633 = vunpack.c.h.b16 %v2591
      %v2634 = vunpack.c.l.b16 %v2592
      %v2635 = vunpack.c.l.b16 %v2593
      %v2636 = vunpack.c.h.b16 %v2593
      %v2637 = vunpack.c.l.b16 %v2594
      %v2638 = vunpack.c.l.b16 %v2595
      %v2639 = vunpack.c.h.b16 %v2595
      %v2640 = vunpack.c.l.b16 %v2596
      %v2641 = vunpack.c.l.b16 %v2597
      %v2642 = vunpack.c.h.b16 %v2597
      %v2643 = vunpack.c.l.b16 %v2598
      %v2644 = vunpack.c.l.b16 %v2599
      %v2645 = vunpack.c.h.b16 %v2599
      %v2646 = vunpack.c.l.b16 %v2600
      %v2647 = vunpack.c.l.b16 %v2601
      %v2648 = vunpack.c.h.b16 %v2601
      %v2649 = vunpack.c.l.b16 %v2602
      %v2650 = vunpack.c.l.b16 %v2603
      %v2651 = vunpack.c.h.b16 %v2603
      %v2652 = vunpack.c.l.b16 %v2604
      %v2653 = vunpack.c.l.b16 %v2605
      %v2654 = vunpack.c.h.b16 %v2605
      %v2655 = vunpack.c.l.b16 %v2606
      %v2656 = vunpack.c.l.b16 %v2607
      %v2657 = vunpack.c.h.b16 %v2607
      %v2658 = vunpack.c.l.b16 %v2608
      %v2659 = vpack.c.b16 %v2629, %v2629
      %v2660 = vpack.c.b16 %v2630, %v2630
      %v2661 = vpack.c.b16 %v2631, %v2631
      %v2662 = vpack.c.b16 %v2632, %v2632
      %v2663 = vpack.c.b16 %v2633, %v2633
      %v2664 = vpack.c.b16 %v2634, %v2634
      %v2665 = vpack.c.b16 %v2635, %v2635
      %v2666 = vpack.c.b16 %v2636, %v2636
      %v2667 = vpack.c.b16 %v2637, %v2637
      %v2668 = vpack.c.b16 %v2638, %v2638
      %v2669 = vpack.c.b16 %v2639, %v2639
      %v2670 = vpack.c.b16 %v2640, %v2640
      %v2671 = vpack.c.b16 %v2641, %v2641
      %v2672 = vpack.c.b16 %v2642, %v2642
      %v2673 = vpack.c.b16 %v2643, %v2643
      %v2674 = vpack.c.b16 %v2644, %v2644
      %v2675 = vpack.c.b16 %v2645, %v2645
      %v2676 = vpack.c.b16 %v2646, %v2646
      %v2677 = vpack.c.b16 %v2647, %v2647
      %v2678 = vpack.c.b16 %v2648, %v2648
      %v2679 = vpack.c.b16 %v2649, %v2649
      %v2680 = vpack.c.b16 %v2650, %v2650
      %v2681 = vpack.c.b16 %v2651, %v2651
      %v2682 = vpack.c.b16 %v2652, %v2652
      %v2683 = vpack.c.b16 %v2653, %v2653
      %v2684 = vpack.c.b16 %v2654, %v2654
      %v2685 = vpack.c.b16 %v2655, %v2655
      %v2686 = vpack.c.b16 %v2656, %v2656
      %v2687 = vpack.c.b16 %v2657, %v2657
      %v2688 = vpack.c.b16 %v2658, %v2658
      %vm2719 = vcmask 125952
      %2720 = vst.msk [vmem:[#allocation3] sm:$0xf] %vm2719, %v2659
      %2721 = vst.msk [vmem:[#allocation3 + $0x4] sm:$0xf] %vm2719, %v2660
      %2722 = vst.msk [vmem:[#allocation3 + $0x8] sm:$0xf] %vm2719, %v2661
      %2723 = vst.msk [vmem:[#allocation3 + $0xc] sm:$0xf] %vm2719, %v2662
      %2724 = vst.msk [vmem:[#allocation3 + $0x10] sm:$0xf] %vm2719, %v2663
      %2725 = vst.msk [vmem:[#allocation3 + $0x14] sm:$0xf] %vm2719, %v2664
      %2726 = vst.msk [vmem:[#allocation3 + $0x18] sm:$0xf] %vm2719, %v2665
      %2727 = vst.msk [vmem:[#allocation3 + $0x1c] sm:$0xf] %vm2719, %v2666
      %2728 = vst.msk [vmem:[#allocation3 + $0x20] sm:$0xf] %vm2719, %v2667
      %2729 = vst.msk [vmem:[#allocation3 + $0x24] sm:$0xf] %vm2719, %v2668
      %2730 = vst.msk [vmem:[#allocation3 + $0x28] sm:$0xf] %vm2719, %v2669
      %2731 = vst.msk [vmem:[#allocation3 + $0x2c] sm:$0xf] %vm2719, %v2670
      %2732 = vst.msk [vmem:[#allocation3 + $0x30] sm:$0xf] %vm2719, %v2671
      %2733 = vst.msk [vmem:[#allocation3 + $0x34] sm:$0xf] %vm2719, %v2672
      %2734 = vst.msk [vmem:[#allocation3 + $0x38] sm:$0xf] %vm2719, %v2673
      %2735 = vst.msk [vmem:[#allocation3 + $0x3c] sm:$0xf] %vm2719, %v2674
      %2736 = vst.msk [vmem:[#allocation3 + $0x40] sm:$0xf] %vm2719, %v2675
      %2737 = vst.msk [vmem:[#allocation3 + $0x44] sm:$0xf] %vm2719, %v2676
      %2738 = vst.msk [vmem:[#allocation3 + $0x48] sm:$0xf] %vm2719, %v2677
      %2739 = vst.msk [vmem:[#allocation3 + $0x4c] sm:$0xf] %vm2719, %v2678
      %2740 = vst.msk [vmem:[#allocation3 + $0x50] sm:$0xf] %vm2719, %v2679
      %2741 = vst.msk [vmem:[#allocation3 + $0x54] sm:$0xf] %vm2719, %v2680
      %2742 = vst.msk [vmem:[#allocation3 + $0x58] sm:$0xf] %vm2719, %v2681
      %2743 = vst.msk [vmem:[#allocation3 + $0x5c] sm:$0xf] %vm2719, %v2682
      %2744 = vst.msk [vmem:[#allocation3 + $0x60] sm:$0xf] %vm2719, %v2683
      %2745 = vst.msk [vmem:[#allocation3 + $0x64] sm:$0xf] %vm2719, %v2684
      %2746 = vst.msk [vmem:[#allocation3 + $0x68] sm:$0xf] %vm2719, %v2685
      %2747 = vst.msk [vmem:[#allocation3 + $0x6c] sm:$0xf] %vm2719, %v2686
      %2748 = vst.msk [vmem:[#allocation3 + $0x70] sm:$0xf] %vm2719, %v2687
      %2749 = vst.msk [vmem:[#allocation3 + $0x74] sm:$0xf] %vm2719, %v2688
      %p2750 = scmp.eq.s32.totalorder %s24, 0
      // Predicated region
      $region53: #{tpu_custom_call.1} parent=51 // pred_check
        %p2751 = pneg %p2750
      $region54: #{tpu_custom_call.1} parent=51 // pred_check_branch
        %2753 = sbr.rel (%p2751) target = $region56
      $region55: #{tpu_custom_call.1} parent=51 // pred_region
        %2754 = vst.msk [vmem:[#allocation3] sm:$0xf] %vm2719, 0
        %2755 = vst.msk [vmem:[#allocation3 + $0x4] sm:$0xf] %vm2719, 0
        %2756 = vst.msk [vmem:[#allocation3 + $0x8] sm:$0xf] %vm2719, 0
      $region56: #{tpu_custom_call.1} parent=51 // pred_fallthru
        _
      %p2757 = scmp.eq.s32.totalorder %s24, 3
      // Predicated region
      $region57: #{tpu_custom_call.1} parent=51 // pred_check
        %p2758 = pneg %p2757
      $region58: #{tpu_custom_call.1} parent=51 // pred_check_branch
        %2760 = sbr.rel (%p2758) target = $region60
      $region59: #{tpu_custom_call.1} parent=51 // pred_region
        %s2761 = scalar_lea.vmem [#allocation3], 108
        %2762 = vst.msk [vmem:[%s2761] sm:$0xf] %vm2719, 0
        %2763 = vst.msk [vmem:[%s2761 + $0x4] sm:$0xf] %vm2719, 0
        %2764 = vst.msk [vmem:[%s2761 + $0x8] sm:$0xf] %vm2719, 0
      $region60: #{tpu_custom_call.1} parent=51 // pred_fallthru
        _
      %s2765 = sadd.s32 %s350, 1
      %s2766 = smul.u32 %s2765, 3
      %s2767 = smul.addr %s2766, 4
      %s2768 = scalar_lea.vmem %s333, %s2767
      %v2769 = vld [vmem:[%s2768] sm:$0xf]
      %v2770 = vld [vmem:[%s2768 + $0x4] sm:$0xf]
      %v2771 = vld [vmem:[%s2768 + $0x8] sm:$0xf]
      %v2772 = vld [vmem:[%s2768 + $0xc] sm:$0xf]
      %v2773 = vld [vmem:[%s2768 + $0x10] sm:$0xf]
      %v2774 = vld [vmem:[%s2768 + $0x14] sm:$0xf]
      %v2775 = vld [vmem:[%s2768 + $0x18] sm:$0xf]
      %v2776 = vld [vmem:[%s2768 + $0x1c] sm:$0xf]
      %v2777 = vld [vmem:[%s2768 + $0x20] sm:$0xf]
      %v2778 = vld [vmem:[%s2768 + $0x24] sm:$0xf]
      %v2779 = vld [vmem:[%s2768 + $0x28] sm:$0xf]
      %v2780 = vld [vmem:[%s2768 + $0x2c] sm:$0xf]
      %v2781 = vld [vmem:[%s2768 + $0x30] sm:$0xf]
      %v2782 = vld [vmem:[%s2768 + $0x34] sm:$0xf]
      %v2783 = vld [vmem:[%s2768 + $0x38] sm:$0xf]
      %v2784 = vld [vmem:[%s2768 + $0x3c] sm:$0xf]
      %v2785 = vld [vmem:[%s2768 + $0x40] sm:$0xf]
      %v2786 = vld [vmem:[%s2768 + $0x44] sm:$0xf]
      %v2787 = vld [vmem:[%s2768 + $0x48] sm:$0xf]
      %v2788 = vld [vmem:[%s2768 + $0x4c] sm:$0xf]
      %v2789 = vld [vmem:[%s2768 + $0x50] sm:$0xf]
      %v2790 = vld [vmem:[%s2768 + $0x54] sm:$0xf]
      %v2791 = vld [vmem:[%s2768 + $0x58] sm:$0xf]
      %v2792 = vld [vmem:[%s2768 + $0x5c] sm:$0xf]
      %v2793 = vld [vmem:[%s6] sm:$0xf]
      %v2794 = vld [vmem:[%s7] sm:$0x1]
      %v2796 = vlaneseq
      %v2797 = vshrl.u32 %v2796, 7
      %v2798 = vsub.s32 0, %v2797
      %v2799 = vrot.slane %v2794, %v2798
      %v2825 = vunpack.c.l.b16 %v2769
      %v2826 = vunpack.c.l.b16 %v2770
      %v2827 = vunpack.c.l.b16 %v2771
      %v2828 = vunpack.c.l.b16 %v2772
      %v2829 = vunpack.c.l.b16 %v2773
      %v2830 = vunpack.c.l.b16 %v2774
      %v2831 = vunpack.c.l.b16 %v2775
      %v2832 = vunpack.c.l.b16 %v2776
      %v2833 = vunpack.c.l.b16 %v2777
      %v2834 = vunpack.c.l.b16 %v2778
      %v2835 = vunpack.c.l.b16 %v2779
      %v2836 = vunpack.c.l.b16 %v2780
      %v2837 = vunpack.c.l.b16 %v2781
      %v2838 = vunpack.c.l.b16 %v2782
      %v2839 = vunpack.c.l.b16 %v2783
      %v2840 = vunpack.c.l.b16 %v2784
      %v2841 = vunpack.c.l.b16 %v2785
      %v2842 = vunpack.c.l.b16 %v2786
      %v2843 = vunpack.c.l.b16 %v2787
      %v2844 = vunpack.c.l.b16 %v2788
      %v2845 = vunpack.c.l.b16 %v2789
      %v2846 = vunpack.c.l.b16 %v2790
      %v2847 = vunpack.c.l.b16 %v2791
      %v2848 = vunpack.c.l.b16 %v2792
      %v2849 = vpack.c.b16 %v2826, %v2825
      %v2850 = vpack.c.b16 %v2828, %v2827
      %v2851 = vpack.c.b16 %v2830, %v2829
      %v2852 = vpack.c.b16 %v2832, %v2831
      %v2853 = vpack.c.b16 %v2834, %v2833
      %v2854 = vpack.c.b16 %v2836, %v2835
      %v2855 = vpack.c.b16 %v2838, %v2837
      %v2856 = vpack.c.b16 %v2840, %v2839
      %v2857 = vpack.c.b16 %v2842, %v2841
      %v2858 = vpack.c.b16 %v2844, %v2843
      %v2859 = vpack.c.b16 %v2846, %v2845
      %v2860 = vpack.c.b16 %v2848, %v2847
      %v2862 = vsel %vm829, %v2849, 0
      %v2865 = vsel %vm829, %v2850, 0
      %v2868 = vsel %vm829, %v2851, 0
      %v2871 = vsel %vm829, %v2852, 0
      %v2874 = vsel %vm829, %v2853, 0
      %v2877 = vsel %vm829, %v2854, 0
      %v2880 = vsel %vm829, %v2855, 0
      %v2883 = vsel %vm829, %v2856, 0
      %v2886 = vsel %vm829, %v2857, 0
      %v2889 = vsel %vm829, %v2858, 0
      %v2892 = vsel %vm829, %v2859, 0
      %v2895 = vsel %vm829, %v2860, 0
      %v2898 = vsel %vm416, %v2793, 0
      %2900 = vmatprep.subr.bf16.mxu0 0
      %2901 = vmatpush1.bf16.msra.mxu0 0
      %2902 = vmatprep.subr.bf16.mxu0 0
      %2903 = vmatpush1.bf16.msra.mxu0 0
      %2904 = vmatprep.subr.bf16.mxu0 0
      %2905 = vmatpush1.bf16.msra.mxu0 0
      %2906 = vmatprep.subr.bf16.mxu0 0
      %2907 = vmatpush1.bf16.msra.mxu0 0
      %2908 = vmatprep.subr.bf16.mxu0 0
      %2909 = vmatpush1.bf16.msra.mxu0 0
      %2910 = vmatprep.subr.bf16.mxu0 0
      %2911 = vmatpush1.bf16.msra.mxu0 0
      %2912 = vmatprep.subr.bf16.mxu0 0
      %2913 = vmatpush1.bf16.msra.mxu0 0
      %2914 = vmatprep.subr.bf16.mxu0 0
      %2915 = vmatpush1.bf16.msra.mxu0 %v2898
      %2916 = vmatprep.subr.bf16.mxu0 0
      %2917 = vmatpush2.bf16.msra.mxu0 0
      %2918 = vmatprep.subr.bf16.mxu0 0
      %2919 = vmatpush2.bf16.msra.mxu0 0
      %2920 = vmatprep.subr.bf16.mxu0 0
      %2921 = vmatpush2.bf16.msra.mxu0 0
      %2922 = vmatprep.subr.bf16.mxu0 0
      %2923 = vmatpush2.bf16.msra.mxu0 0
      %2924 = vmatprep.subr.bf16.mxu0 0
      %2925 = vmatpush2.bf16.msra.mxu0 0
      %2926 = vmatprep.subr.bf16.mxu0 0
      %2927 = vmatpush2.bf16.msra.mxu0 0
      %2928 = vmatprep.subr.bf16.mxu0 0
      %2929 = vmatpush2.bf16.msra.mxu0 0
      %2930 = vmatprep.subr.bf16.mxu0 0
      %2931 = vmatpush2.bf16.msra.mxu0 0
      %2932 = vmatprep.mubr.bf16.mxu0 0
      %2933 = vmatmul.mubr.bf16.gmra.mxu0 %v2862
      %v2934 = vpop.f32.mrf.mxu0
      %v2935 = vadd.f32 %v2799, %v2934
      %v2936 = vpop.f32.mrf.mxu0
      %v2937 = vpop.f32.mrf.mxu0
      %v2938 = vadd.f32 %v2799, %v2937
      %v2939 = vpop.f32.mrf.mxu0
      %2940 = vmatprep.mubr.bf16.mxu0 0
      %2941 = vmatmul.mubr.bf16.gmra.mxu0 %v2865
      %v2942 = vpop.f32.mrf.mxu0
      %v2943 = vadd.f32 %v2799, %v2942
      %v2944 = vpop.f32.mrf.mxu0
      %v2945 = vpop.f32.mrf.mxu0
      %v2946 = vadd.f32 %v2799, %v2945
      %v2947 = vpop.f32.mrf.mxu0
      %2948 = vmatprep.mubr.bf16.mxu0 0
      %2949 = vmatmul.mubr.bf16.gmra.mxu0 %v2868
      %v2950 = vpop.f32.mrf.mxu0
      %v2951 = vadd.f32 %v2799, %v2950
      %v2952 = vpop.f32.mrf.mxu0
      %v2953 = vpop.f32.mrf.mxu0
      %v2954 = vadd.f32 %v2799, %v2953
      %v2955 = vpop.f32.mrf.mxu0
      %2956 = vmatprep.mubr.bf16.mxu0 0
      %2957 = vmatmul.mubr.bf16.gmra.mxu0 %v2871
      %v2958 = vpop.f32.mrf.mxu0
      %v2959 = vadd.f32 %v2799, %v2958
      %v2960 = vpop.f32.mrf.mxu0
      %v2961 = vpop.f32.mrf.mxu0
      %v2962 = vadd.f32 %v2799, %v2961
      %v2963 = vpop.f32.mrf.mxu0
      %2964 = vmatprep.mubr.bf16.mxu0 0
      %2965 = vmatmul.mubr.bf16.gmra.mxu0 %v2874
      %v2966 = vpop.f32.mrf.mxu0
      %v2967 = vadd.f32 %v2799, %v2966
      %v2968 = vpop.f32.mrf.mxu0
      %v2969 = vpop.f32.mrf.mxu0
      %v2970 = vadd.f32 %v2799, %v2969
      %v2971 = vpop.f32.mrf.mxu0
      %2972 = vmatprep.mubr.bf16.mxu0 0
      %2973 = vmatmul.mubr.bf16.gmra.mxu0 %v2877
      %v2974 = vpop.f32.mrf.mxu0
      %v2975 = vadd.f32 %v2799, %v2974
      %v2976 = vpop.f32.mrf.mxu0
      %v2977 = vpop.f32.mrf.mxu0
      %v2978 = vadd.f32 %v2799, %v2977
      %v2979 = vpop.f32.mrf.mxu0
      %2980 = vmatprep.mubr.bf16.mxu0 0
      %2981 = vmatmul.mubr.bf16.gmra.mxu0 %v2880
      %v2982 = vpop.f32.mrf.mxu0
      %v2983 = vadd.f32 %v2799, %v2982
      %v2984 = vpop.f32.mrf.mxu0
      %v2985 = vpop.f32.mrf.mxu0
      %v2986 = vadd.f32 %v2799, %v2985
      %v2987 = vpop.f32.mrf.mxu0
      %2988 = vmatprep.mubr.bf16.mxu0 0
      %2989 = vmatmul.mubr.bf16.gmra.mxu0 %v2883
      %v2990 = vpop.f32.mrf.mxu0
      %v2991 = vadd.f32 %v2799, %v2990
      %v2992 = vpop.f32.mrf.mxu0
      %v2993 = vpop.f32.mrf.mxu0
      %v2994 = vadd.f32 %v2799, %v2993
      %v2995 = vpop.f32.mrf.mxu0
      %2996 = vmatprep.mubr.bf16.mxu0 0
      %2997 = vmatmul.mubr.bf16.gmra.mxu0 %v2886
      %v2998 = vpop.f32.mrf.mxu0
      %v2999 = vadd.f32 %v2799, %v2998
      %v3000 = vpop.f32.mrf.mxu0
      %v3001 = vpop.f32.mrf.mxu0
      %v3002 = vadd.f32 %v2799, %v3001
      %v3003 = vpop.f32.mrf.mxu0
      %3004 = vmatprep.mubr.bf16.mxu0 0
      %3005 = vmatmul.mubr.bf16.gmra.mxu0 %v2889
      %v3006 = vpop.f32.mrf.mxu0
      %v3007 = vadd.f32 %v2799, %v3006
      %v3008 = vpop.f32.mrf.mxu0
      %v3009 = vpop.f32.mrf.mxu0
      %v3010 = vadd.f32 %v2799, %v3009
      %v3011 = vpop.f32.mrf.mxu0
      %3012 = vmatprep.mubr.bf16.mxu0 0
      %3013 = vmatmul.mubr.bf16.gmra.mxu0 %v2892
      %v3014 = vpop.f32.mrf.mxu0
      %v3015 = vadd.f32 %v2799, %v3014
      %v3016 = vpop.f32.mrf.mxu0
      %v3017 = vpop.f32.mrf.mxu0
      %v3018 = vadd.f32 %v2799, %v3017
      %v3019 = vpop.f32.mrf.mxu0
      %3020 = vmatprep.mubr.bf16.mxu0 0
      %3021 = vmatmul.mubr.bf16.gmra.mxu0 %v2895
      %v3022 = vpop.f32.mrf.mxu0
      %v3023 = vadd.f32 %v2799, %v3022
      %v3024 = vpop.f32.mrf.mxu0
      %v3025 = vpop.f32.mrf.mxu0
      %v3026 = vadd.f32 %v2799, %v3025
      %v3027 = vpop.f32.mrf.mxu0
      %3028 = vdwg.mxu0
      %3029 = vst.msk [vmem:[%s347] sm:$0xff] %vm1031, %v2935
      %3030 = vst.msk [vmem:[%s347 + $0x8] sm:$0xff] %vm1031, %v2938
      %3031 = vst.msk [vmem:[%s347 + $0x10] sm:$0xff] %vm1031, %v2943
      %3032 = vst.msk [vmem:[%s347 + $0x18] sm:$0xff] %vm1031, %v2946
      %3033 = vst.msk [vmem:[%s347 + $0x20] sm:$0xff] %vm1031, %v2951
      %3034 = vst.msk [vmem:[%s347 + $0x28] sm:$0xff] %vm1031, %v2954
      %3035 = vst.msk [vmem:[%s347 + $0x30] sm:$0xff] %vm1031, %v2959
      %3036 = vst.msk [vmem:[%s347 + $0x38] sm:$0xff] %vm1031, %v2962
      %3037 = vst.msk [vmem:[%s347 + $0x40] sm:$0xff] %vm1031, %v2967
      %3038 = vst.msk [vmem:[%s347 + $0x48] sm:$0xff] %vm1031, %v2970
      %3039 = vst.msk [vmem:[%s347 + $0x50] sm:$0xff] %vm1031, %v2975
      %3040 = vst.msk [vmem:[%s347 + $0x58] sm:$0xff] %vm1031, %v2978
      %3041 = vst.msk [vmem:[%s347 + $0x60] sm:$0xff] %vm1031, %v2983
      %3042 = vst.msk [vmem:[%s347 + $0x68] sm:$0xff] %vm1031, %v2986
      %3043 = vst.msk [vmem:[%s347 + $0x70] sm:$0xff] %vm1031, %v2991
      %3044 = vst.msk [vmem:[%s347 + $0x78] sm:$0xff] %vm1031, %v2994
      %3045 = vst.msk [vmem:[%s347 + $0x80] sm:$0xff] %vm1031, %v2999
      %3046 = vst.msk [vmem:[%s347 + $0x88] sm:$0xff] %vm1031, %v3002
      %3047 = vst.msk [vmem:[%s347 + $0x90] sm:$0xff] %vm1031, %v3007
      %3048 = vst.msk [vmem:[%s347 + $0x98] sm:$0xff] %vm1031, %v3010
      %3049 = vst.msk [vmem:[%s347 + $0xa0] sm:$0xff] %vm1031, %v3015
      %3050 = vst.msk [vmem:[%s347 + $0xa8] sm:$0xff] %vm1031, %v3018
      %3051 = vst.msk [vmem:[%s347 + $0xb0] sm:$0xff] %vm1031, %v3023
      %3052 = vst.msk [vmem:[%s347 + $0xb8] sm:$0xff] %vm1031, %v3026
      %v3053 = vld [vmem:[#allocation3] sm:$0xf]
      %v3054 = vld [vmem:[#allocation3 + $0x4] sm:$0xf]
      %v3055 = vld [vmem:[#allocation3 + $0x8] sm:$0xf]
      %v3056 = vld [vmem:[#allocation3 + $0xc] sm:$0xf]
      %v3057 = vld [vmem:[#allocation3 + $0x10] sm:$0xf]
      %v3058 = vld [vmem:[#allocation3 + $0x14] sm:$0xf]
      %v3059 = vld [vmem:[#allocation3 + $0x18] sm:$0xf]
      %v3060 = vld [vmem:[#allocation3 + $0x1c] sm:$0xf]
      %v3061 = vld [vmem:[#allocation3 + $0x20] sm:$0xf]
      %v3062 = vld [vmem:[#allocation3 + $0x24] sm:$0xf]
      %v3063 = vld [vmem:[#allocation3 + $0x28] sm:$0xf]
      %v3064 = vld [vmem:[#allocation3 + $0x2c] sm:$0xf]
      %v3065 = vld [vmem:[#allocation3 + $0x30] sm:$0xf]
      %v3066 = vld [vmem:[#allocation3 + $0x34] sm:$0xf]
      %v3067 = vld [vmem:[#allocation3 + $0x38] sm:$0xf]
      %v3068 = vld [vmem:[#allocation3 + $0x3c] sm:$0xf]
      %v3069 = vld [vmem:[#allocation3 + $0x40] sm:$0xf]
      %v3070 = vld [vmem:[#allocation3 + $0x44] sm:$0xf]
      %v3071 = vld [vmem:[#allocation3 + $0x48] sm:$0xf]
      %v3072 = vld [vmem:[#allocation3 + $0x4c] sm:$0xf]
      %v3073 = vld [vmem:[#allocation3 + $0x50] sm:$0xf]
      %v3074 = vld [vmem:[#allocation3 + $0x54] sm:$0xf]
      %v3075 = vld [vmem:[#allocation3 + $0x58] sm:$0xf]
      %v3076 = vld [vmem:[#allocation3 + $0x5c] sm:$0xf]
      %v3077 = vld [vmem:[%s347] sm:$0xff]
      %v3078 = vld [vmem:[%s347 + $0x8] sm:$0xff]
      %v3079 = vld [vmem:[%s347 + $0x10] sm:$0xff]
      %v3080 = vld [vmem:[%s347 + $0x18] sm:$0xff]
      %v3081 = vld [vmem:[%s347 + $0x20] sm:$0xff]
      %v3082 = vld [vmem:[%s347 + $0x28] sm:$0xff]
      %v3083 = vld [vmem:[%s347 + $0x30] sm:$0xff]
      %v3084 = vld [vmem:[%s347 + $0x38] sm:$0xff]
      %v3085 = vld [vmem:[%s347 + $0x40] sm:$0xff]
      %v3086 = vld [vmem:[%s347 + $0x48] sm:$0xff]
      %v3087 = vld [vmem:[%s347 + $0x50] sm:$0xff]
      %v3088 = vld [vmem:[%s347 + $0x58] sm:$0xff]
      %v3089 = vld [vmem:[%s347 + $0x60] sm:$0xff]
      %v3090 = vld [vmem:[%s347 + $0x68] sm:$0xff]
      %v3091 = vld [vmem:[%s347 + $0x70] sm:$0xff]
      %v3092 = vld [vmem:[%s347 + $0x78] sm:$0xff]
      %v3093 = vld [vmem:[%s347 + $0x80] sm:$0xff]
      %v3094 = vld [vmem:[%s347 + $0x88] sm:$0xff]
      %v3095 = vld [vmem:[%s347 + $0x90] sm:$0xff]
      %v3096 = vld [vmem:[%s347 + $0x98] sm:$0xff]
      %v3097 = vld [vmem:[%s347 + $0xa0] sm:$0xff]
      %v3098 = vld [vmem:[%s347 + $0xa8] sm:$0xff]
      %v3099 = vld [vmem:[%s347 + $0xb0] sm:$0xff]
      %v3100 = vld [vmem:[%s347 + $0xb8] sm:$0xff]
      %v3101 = vld [vmem:[%s5] sm:$0xf]
      %v3102 = vld [vmem:[%s5 + $0x4] sm:$0xf]
      %v3127 = vunpack.c.l.b16 %v3053
      %v3128 = vunpack.c.l.b16 %v3054
      %v3129 = vunpack.c.l.b16 %v3055
      %v3130 = vunpack.c.l.b16 %v3056
      %v3131 = vunpack.c.l.b16 %v3057
      %v3132 = vunpack.c.l.b16 %v3058
      %v3133 = vunpack.c.l.b16 %v3059
      %v3134 = vunpack.c.l.b16 %v3060
      %v3135 = vunpack.c.l.b16 %v3061
      %v3136 = vunpack.c.l.b16 %v3062
      %v3137 = vunpack.c.l.b16 %v3063
      %v3138 = vunpack.c.l.b16 %v3064
      %v3139 = vunpack.c.l.b16 %v3065
      %v3140 = vunpack.c.l.b16 %v3066
      %v3141 = vunpack.c.l.b16 %v3067
      %v3142 = vunpack.c.l.b16 %v3068
      %v3143 = vunpack.c.l.b16 %v3069
      %v3144 = vunpack.c.l.b16 %v3070
      %v3145 = vunpack.c.l.b16 %v3071
      %v3146 = vunpack.c.l.b16 %v3072
      %v3147 = vunpack.c.l.b16 %v3073
      %v3148 = vunpack.c.l.b16 %v3074
      %v3149 = vunpack.c.l.b16 %v3075
      %v3150 = vunpack.c.l.b16 %v3076
      %v3151 = vpack.c.b16 %v3128, %v3127
      %v3152 = vpack.c.b16 %v3130, %v3129
      %v3153 = vpack.c.b16 %v3132, %v3131
      %v3154 = vpack.c.b16 %v3134, %v3133
      %v3155 = vpack.c.b16 %v3136, %v3135
      %v3156 = vpack.c.b16 %v3138, %v3137
      %v3157 = vpack.c.b16 %v3140, %v3139
      %v3158 = vpack.c.b16 %v3142, %v3141
      %v3159 = vpack.c.b16 %v3144, %v3143
      %v3160 = vpack.c.b16 %v3146, %v3145
      %v3161 = vpack.c.b16 %v3148, %v3147
      %v3162 = vpack.c.b16 %v3150, %v3149
      %v3165 = vunpack.c.l.b16 %v3101
      %v3166 = vunpack.c.l.b16 %v3102
      %v3167 = vpack.c.b16 %v3166, %v3165
      %v3170 = vsel %vm1031, %v3151, 0
      %v3173 = vsel %vm1031, %v3152, 0
      %v3176 = vsel %vm1031, %v3153, 0
      %v3179 = vsel %vm1031, %v3154, 0
      %v3182 = vsel %vm1031, %v3155, 0
      %v3185 = vsel %vm1031, %v3156, 0
      %v3188 = vsel %vm1031, %v3157, 0
      %v3191 = vsel %vm1031, %v3158, 0
      %v3194 = vsel %vm1031, %v3159, 0
      %v3197 = vsel %vm1031, %v3160, 0
      %v3200 = vsel %vm1031, %v3161, 0
      %v3203 = vsel %vm1031, %v3162, 0
      %3205 = vmatprep.subr.bf16.mxu0 0
      %3206 = vmatpush1.bf16.msra.mxu0 0
      %3207 = vmatprep.subr.bf16.mxu0 0
      %3208 = vmatpush1.bf16.msra.mxu0 0
      %3209 = vmatprep.subr.bf16.mxu0 0
      %3210 = vmatpush1.bf16.msra.mxu0 0
      %3211 = vmatprep.subr.bf16.mxu0 0
      %3212 = vmatpush1.bf16.msra.mxu0 0
      %3213 = vmatprep.subr.bf16.mxu0 0
      %3214 = vmatpush1.bf16.msra.mxu0 0
      %3215 = vmatprep.subr.bf16.mxu0 0
      %3216 = vmatpush1.bf16.msra.mxu0 0
      %3217 = vmatprep.subr.bf16.mxu0 0
      %3218 = vmatpush1.bf16.msra.mxu0 0
      %3219 = vmatprep.subr.bf16.mxu0 0
      %3220 = vmatpush1.bf16.msra.mxu0 %v3167
      %3221 = vmatprep.subr.bf16.mxu0 0
      %3222 = vmatpush2.bf16.msra.mxu0 0
      %3223 = vmatprep.subr.bf16.mxu0 0
      %3224 = vmatpush2.bf16.msra.mxu0 0
      %3225 = vmatprep.subr.bf16.mxu0 0
      %3226 = vmatpush2.bf16.msra.mxu0 0
      %3227 = vmatprep.subr.bf16.mxu0 0
      %3228 = vmatpush2.bf16.msra.mxu0 0
      %3229 = vmatprep.subr.bf16.mxu0 0
      %3230 = vmatpush2.bf16.msra.mxu0 0
      %3231 = vmatprep.subr.bf16.mxu0 0
      %3232 = vmatpush2.bf16.msra.mxu0 0
      %3233 = vmatprep.subr.bf16.mxu0 0
      %3234 = vmatpush2.bf16.msra.mxu0 0
      %3235 = vmatprep.subr.bf16.mxu0 0
      %3236 = vmatpush2.bf16.msra.mxu0 0
      %3237 = vmatprep.mubr.bf16.mxu0 0
      %3238 = vmatmul.mubr.bf16.gmra.mxu0 %v3170
      %v3239 = vpop.f32.mrf.mxu0
      %v3240 = vadd.f32 0.0, %v3239
      %v3241 = vpop.f32.mrf.mxu0
      %v3242 = vpop.f32.mrf.mxu0
      %v3243 = vadd.f32 0.0, %v3242
      %v3244 = vpop.f32.mrf.mxu0
      %3245 = vmatprep.mubr.bf16.mxu0 0
      %3246 = vmatmul.mubr.bf16.gmra.mxu0 %v3173
      %v3247 = vpop.f32.mrf.mxu0
      %v3248 = vadd.f32 0.0, %v3247
      %v3249 = vpop.f32.mrf.mxu0
      %v3250 = vpop.f32.mrf.mxu0
      %v3251 = vadd.f32 0.0, %v3250
      %v3252 = vpop.f32.mrf.mxu0
      %3253 = vmatprep.mubr.bf16.mxu0 0
      %3254 = vmatmul.mubr.bf16.gmra.mxu0 %v3176
      %v3255 = vpop.f32.mrf.mxu0
      %v3256 = vadd.f32 0.0, %v3255
      %v3257 = vpop.f32.mrf.mxu0
      %v3258 = vpop.f32.mrf.mxu0
      %v3259 = vadd.f32 0.0, %v3258
      %v3260 = vpop.f32.mrf.mxu0
      %3261 = vmatprep.mubr.bf16.mxu0 0
      %3262 = vmatmul.mubr.bf16.gmra.mxu0 %v3179
      %v3263 = vpop.f32.mrf.mxu0
      %v3264 = vadd.f32 0.0, %v3263
      %v3265 = vpop.f32.mrf.mxu0
      %v3266 = vpop.f32.mrf.mxu0
      %v3267 = vadd.f32 0.0, %v3266
      %v3268 = vpop.f32.mrf.mxu0
      %3269 = vmatprep.mubr.bf16.mxu0 0
      %3270 = vmatmul.mubr.bf16.gmra.mxu0 %v3182
      %v3271 = vpop.f32.mrf.mxu0
      %v3272 = vadd.f32 0.0, %v3271
      %v3273 = vpop.f32.mrf.mxu0
      %v3274 = vpop.f32.mrf.mxu0
      %v3275 = vadd.f32 0.0, %v3274
      %v3276 = vpop.f32.mrf.mxu0
      %3277 = vmatprep.mubr.bf16.mxu0 0
      %3278 = vmatmul.mubr.bf16.gmra.mxu0 %v3185
      %v3279 = vpop.f32.mrf.mxu0
      %v3280 = vadd.f32 0.0, %v3279
      %v3281 = vpop.f32.mrf.mxu0
      %v3282 = vpop.f32.mrf.mxu0
      %v3283 = vadd.f32 0.0, %v3282
      %v3284 = vpop.f32.mrf.mxu0
      %3285 = vmatprep.mubr.bf16.mxu0 0
      %3286 = vmatmul.mubr.bf16.gmra.mxu0 %v3188
      %v3287 = vpop.f32.mrf.mxu0
      %v3288 = vadd.f32 0.0, %v3287
      %v3289 = vpop.f32.mrf.mxu0
      %v3290 = vpop.f32.mrf.mxu0
      %v3291 = vadd.f32 0.0, %v3290
      %v3292 = vpop.f32.mrf.mxu0
      %3293 = vmatprep.mubr.bf16.mxu0 0
      %3294 = vmatmul.mubr.bf16.gmra.mxu0 %v3191
      %v3295 = vpop.f32.mrf.mxu0
      %v3296 = vadd.f32 0.0, %v3295
      %v3297 = vpop.f32.mrf.mxu0
      %v3298 = vpop.f32.mrf.mxu0
      %v3299 = vadd.f32 0.0, %v3298
      %v3300 = vpop.f32.mrf.mxu0
      %3301 = vmatprep.mubr.bf16.mxu0 0
      %3302 = vmatmul.mubr.bf16.gmra.mxu0 %v3194
      %v3303 = vpop.f32.mrf.mxu0
      %v3304 = vadd.f32 0.0, %v3303
      %v3305 = vpop.f32.mrf.mxu0
      %v3306 = vpop.f32.mrf.mxu0
      %v3307 = vadd.f32 0.0, %v3306
      %v3308 = vpop.f32.mrf.mxu0
      %3309 = vmatprep.mubr.bf16.mxu0 0
      %3310 = vmatmul.mubr.bf16.gmra.mxu0 %v3197
      %v3311 = vpop.f32.mrf.mxu0
      %v3312 = vadd.f32 0.0, %v3311
      %v3313 = vpop.f32.mrf.mxu0
      %v3314 = vpop.f32.mrf.mxu0
      %v3315 = vadd.f32 0.0, %v3314
      %v3316 = vpop.f32.mrf.mxu0
      %3317 = vmatprep.mubr.bf16.mxu0 0
      %3318 = vmatmul.mubr.bf16.gmra.mxu0 %v3200
      %v3319 = vpop.f32.mrf.mxu0
      %v3320 = vadd.f32 0.0, %v3319
      %v3321 = vpop.f32.mrf.mxu0
      %v3322 = vpop.f32.mrf.mxu0
      %v3323 = vadd.f32 0.0, %v3322
      %v3324 = vpop.f32.mrf.mxu0
      %3325 = vmatprep.mubr.bf16.mxu0 0
      %3326 = vmatmul.mubr.bf16.gmra.mxu0 %v3203
      %v3327 = vpop.f32.mrf.mxu0
      %v3328 = vadd.f32 0.0, %v3327
      %v3329 = vpop.f32.mrf.mxu0
      %v3330 = vpop.f32.mrf.mxu0
      %v3331 = vadd.f32 0.0, %v3330
      %v3332 = vpop.f32.mrf.mxu0
      %3333 = vdwg.mxu0
      %v3334 = vadd.f32 %v3077, %v3240
      %v3335 = vadd.f32 %v3078, %v3243
      %v3336 = vadd.f32 %v3079, %v3248
      %v3337 = vadd.f32 %v3080, %v3251
      %v3338 = vadd.f32 %v3081, %v3256
      %v3339 = vadd.f32 %v3082, %v3259
      %v3340 = vadd.f32 %v3083, %v3264
      %v3341 = vadd.f32 %v3084, %v3267
      %v3342 = vadd.f32 %v3085, %v3272
      %v3343 = vadd.f32 %v3086, %v3275
      %v3344 = vadd.f32 %v3087, %v3280
      %v3345 = vadd.f32 %v3088, %v3283
      %v3346 = vadd.f32 %v3089, %v3288
      %v3347 = vadd.f32 %v3090, %v3291
      %v3348 = vadd.f32 %v3091, %v3296
      %v3349 = vadd.f32 %v3092, %v3299
      %v3350 = vadd.f32 %v3093, %v3304
      %v3351 = vadd.f32 %v3094, %v3307
      %v3352 = vadd.f32 %v3095, %v3312
      %v3353 = vadd.f32 %v3096, %v3315
      %v3354 = vadd.f32 %v3097, %v3320
      %v3355 = vadd.f32 %v3098, %v3323
      %v3356 = vadd.f32 %v3099, %v3328
      %v3357 = vadd.f32 %v3100, %v3331
      %3358 = vst.msk [vmem:[%s347] sm:$0xff] %vm1031, %v3334
      %3359 = vst.msk [vmem:[%s347 + $0x8] sm:$0xff] %vm1031, %v3335
      %3360 = vst.msk [vmem:[%s347 + $0x10] sm:$0xff] %vm1031, %v3336
      %3361 = vst.msk [vmem:[%s347 + $0x18] sm:$0xff] %vm1031, %v3337
      %3362 = vst.msk [vmem:[%s347 + $0x20] sm:$0xff] %vm1031, %v3338
      %3363 = vst.msk [vmem:[%s347 + $0x28] sm:$0xff] %vm1031, %v3339
      %3364 = vst.msk [vmem:[%s347 + $0x30] sm:$0xff] %vm1031, %v3340
      %3365 = vst.msk [vmem:[%s347 + $0x38] sm:$0xff] %vm1031, %v3341
      %3366 = vst.msk [vmem:[%s347 + $0x40] sm:$0xff] %vm1031, %v3342
      %3367 = vst.msk [vmem:[%s347 + $0x48] sm:$0xff] %vm1031, %v3343
      %3368 = vst.msk [vmem:[%s347 + $0x50] sm:$0xff] %vm1031, %v3344
      %3369 = vst.msk [vmem:[%s347 + $0x58] sm:$0xff] %vm1031, %v3345
      %3370 = vst.msk [vmem:[%s347 + $0x60] sm:$0xff] %vm1031, %v3346
      %3371 = vst.msk [vmem:[%s347 + $0x68] sm:$0xff] %vm1031, %v3347
      %3372 = vst.msk [vmem:[%s347 + $0x70] sm:$0xff] %vm1031, %v3348
      %3373 = vst.msk [vmem:[%s347 + $0x78] sm:$0xff] %vm1031, %v3349
      %3374 = vst.msk [vmem:[%s347 + $0x80] sm:$0xff] %vm1031, %v3350
      %3375 = vst.msk [vmem:[%s347 + $0x88] sm:$0xff] %vm1031, %v3351
      %3376 = vst.msk [vmem:[%s347 + $0x90] sm:$0xff] %vm1031, %v3352
      %3377 = vst.msk [vmem:[%s347 + $0x98] sm:$0xff] %vm1031, %v3353
      %3378 = vst.msk [vmem:[%s347 + $0xa0] sm:$0xff] %vm1031, %v3354
      %3379 = vst.msk [vmem:[%s347 + $0xa8] sm:$0xff] %vm1031, %v3355
      %3380 = vst.msk [vmem:[%s347 + $0xb0] sm:$0xff] %vm1031, %v3356
      %3381 = vst.msk [vmem:[%s347 + $0xb8] sm:$0xff] %vm1031, %v3357
      %s3382 = scalar_lea.vmem [#allocation3], 12
      %v3383 = vld [vmem:[%s3382] sm:$0xf]
      %v3384 = vld [vmem:[%s3382 + $0x4] sm:$0xf]
      %v3385 = vld [vmem:[%s3382 + $0x8] sm:$0xf]
      %v3386 = vld [vmem:[%s3382 + $0xc] sm:$0xf]
      %v3387 = vld [vmem:[%s3382 + $0x10] sm:$0xf]
      %v3388 = vld [vmem:[%s3382 + $0x14] sm:$0xf]
      %v3389 = vld [vmem:[%s3382 + $0x18] sm:$0xf]
      %v3390 = vld [vmem:[%s3382 + $0x1c] sm:$0xf]
      %v3391 = vld [vmem:[%s3382 + $0x20] sm:$0xf]
      %v3392 = vld [vmem:[%s3382 + $0x24] sm:$0xf]
      %v3393 = vld [vmem:[%s3382 + $0x28] sm:$0xf]
      %v3394 = vld [vmem:[%s3382 + $0x2c] sm:$0xf]
      %v3395 = vld [vmem:[%s3382 + $0x30] sm:$0xf]
      %v3396 = vld [vmem:[%s3382 + $0x34] sm:$0xf]
      %v3397 = vld [vmem:[%s3382 + $0x38] sm:$0xf]
      %v3398 = vld [vmem:[%s3382 + $0x3c] sm:$0xf]
      %v3399 = vld [vmem:[%s3382 + $0x40] sm:$0xf]
      %v3400 = vld [vmem:[%s3382 + $0x44] sm:$0xf]
      %v3401 = vld [vmem:[%s3382 + $0x48] sm:$0xf]
      %v3402 = vld [vmem:[%s3382 + $0x4c] sm:$0xf]
      %v3403 = vld [vmem:[%s3382 + $0x50] sm:$0xf]
      %v3404 = vld [vmem:[%s3382 + $0x54] sm:$0xf]
      %v3405 = vld [vmem:[%s3382 + $0x58] sm:$0xf]
      %v3406 = vld [vmem:[%s3382 + $0x5c] sm:$0xf]
      %v3407 = vld [vmem:[%s347] sm:$0xff]
      %v3408 = vld [vmem:[%s347 + $0x8] sm:$0xff]
      %v3409 = vld [vmem:[%s347 + $0x10] sm:$0xff]
      %v3410 = vld [vmem:[%s347 + $0x18] sm:$0xff]
      %v3411 = vld [vmem:[%s347 + $0x20] sm:$0xff]
      %v3412 = vld [vmem:[%s347 + $0x28] sm:$0xff]
      %v3413 = vld [vmem:[%s347 + $0x30] sm:$0xff]
      %v3414 = vld [vmem:[%s347 + $0x38] sm:$0xff]
      %v3415 = vld [vmem:[%s347 + $0x40] sm:$0xff]
      %v3416 = vld [vmem:[%s347 + $0x48] sm:$0xff]
      %v3417 = vld [vmem:[%s347 + $0x50] sm:$0xff]
      %v3418 = vld [vmem:[%s347 + $0x58] sm:$0xff]
      %v3419 = vld [vmem:[%s347 + $0x60] sm:$0xff]
      %v3420 = vld [vmem:[%s347 + $0x68] sm:$0xff]
      %v3421 = vld [vmem:[%s347 + $0x70] sm:$0xff]
      %v3422 = vld [vmem:[%s347 + $0x78] sm:$0xff]
      %v3423 = vld [vmem:[%s347 + $0x80] sm:$0xff]
      %v3424 = vld [vmem:[%s347 + $0x88] sm:$0xff]
      %v3425 = vld [vmem:[%s347 + $0x90] sm:$0xff]
      %v3426 = vld [vmem:[%s347 + $0x98] sm:$0xff]
      %v3427 = vld [vmem:[%s347 + $0xa0] sm:$0xff]
      %v3428 = vld [vmem:[%s347 + $0xa8] sm:$0xff]
      %v3429 = vld [vmem:[%s347 + $0xb0] sm:$0xff]
      %v3430 = vld [vmem:[%s347 + $0xb8] sm:$0xff]
      %s3431 = scalar_lea.vmem %s5, 8
      %v3432 = vld [vmem:[%s3431] sm:$0xf]
      %v3433 = vld [vmem:[%s3431 + $0x4] sm:$0xf]
      %v3458 = vunpack.c.l.b16 %v3383
      %v3459 = vunpack.c.l.b16 %v3384
      %v3460 = vunpack.c.l.b16 %v3385
      %v3461 = vunpack.c.l.b16 %v3386
      %v3462 = vunpack.c.l.b16 %v3387
      %v3463 = vunpack.c.l.b16 %v3388
      %v3464 = vunpack.c.l.b16 %v3389
      %v3465 = vunpack.c.l.b16 %v3390
      %v3466 = vunpack.c.l.b16 %v3391
      %v3467 = vunpack.c.l.b16 %v3392
      %v3468 = vunpack.c.l.b16 %v3393
      %v3469 = vunpack.c.l.b16 %v3394
      %v3470 = vunpack.c.l.b16 %v3395
      %v3471 = vunpack.c.l.b16 %v3396
      %v3472 = vunpack.c.l.b16 %v3397
      %v3473 = vunpack.c.l.b16 %v3398
      %v3474 = vunpack.c.l.b16 %v3399
      %v3475 = vunpack.c.l.b16 %v3400
      %v3476 = vunpack.c.l.b16 %v3401
      %v3477 = vunpack.c.l.b16 %v3402
      %v3478 = vunpack.c.l.b16 %v3403
      %v3479 = vunpack.c.l.b16 %v3404
      %v3480 = vunpack.c.l.b16 %v3405
      %v3481 = vunpack.c.l.b16 %v3406
      %v3482 = vpack.c.b16 %v3459, %v3458
      %v3483 = vpack.c.b16 %v3461, %v3460
      %v3484 = vpack.c.b16 %v3463, %v3462
      %v3485 = vpack.c.b16 %v3465, %v3464
      %v3486 = vpack.c.b16 %v3467, %v3466
      %v3487 = vpack.c.b16 %v3469, %v3468
      %v3488 = vpack.c.b16 %v3471, %v3470
      %v3489 = vpack.c.b16 %v3473, %v3472
      %v3490 = vpack.c.b16 %v3475, %v3474
      %v3491 = vpack.c.b16 %v3477, %v3476
      %v3492 = vpack.c.b16 %v3479, %v3478
      %v3493 = vpack.c.b16 %v3481, %v3480
      %v3496 = vunpack.c.l.b16 %v3432
      %v3497 = vunpack.c.l.b16 %v3433
      %v3498 = vpack.c.b16 %v3497, %v3496
      %v3501 = vsel %vm1031, %v3482, 0
      %v3504 = vsel %vm1031, %v3483, 0
      %v3507 = vsel %vm1031, %v3484, 0
      %v3510 = vsel %vm1031, %v3485, 0
      %v3513 = vsel %vm1031, %v3486, 0
      %v3516 = vsel %vm1031, %v3487, 0
      %v3519 = vsel %vm1031, %v3488, 0
      %v3522 = vsel %vm1031, %v3489, 0
      %v3525 = vsel %vm1031, %v3490, 0
      %v3528 = vsel %vm1031, %v3491, 0
      %v3531 = vsel %vm1031, %v3492, 0
      %v3534 = vsel %vm1031, %v3493, 0
      %3536 = vmatprep.subr.bf16.mxu0 0
      %3537 = vmatpush1.bf16.msra.mxu0 0
      %3538 = vmatprep.subr.bf16.mxu0 0
      %3539 = vmatpush1.bf16.msra.mxu0 0
      %3540 = vmatprep.subr.bf16.mxu0 0
      %3541 = vmatpush1.bf16.msra.mxu0 0
      %3542 = vmatprep.subr.bf16.mxu0 0
      %3543 = vmatpush1.bf16.msra.mxu0 0
      %3544 = vmatprep.subr.bf16.mxu0 0
      %3545 = vmatpush1.bf16.msra.mxu0 0
      %3546 = vmatprep.subr.bf16.mxu0 0
      %3547 = vmatpush1.bf16.msra.mxu0 0
      %3548 = vmatprep.subr.bf16.mxu0 0
      %3549 = vmatpush1.bf16.msra.mxu0 0
      %3550 = vmatprep.subr.bf16.mxu0 0
      %3551 = vmatpush1.bf16.msra.mxu0 %v3498
      %3552 = vmatprep.subr.bf16.mxu0 0
      %3553 = vmatpush2.bf16.msra.mxu0 0
      %3554 = vmatprep.subr.bf16.mxu0 0
      %3555 = vmatpush2.bf16.msra.mxu0 0
      %3556 = vmatprep.subr.bf16.mxu0 0
      %3557 = vmatpush2.bf16.msra.mxu0 0
      %3558 = vmatprep.subr.bf16.mxu0 0
      %3559 = vmatpush2.bf16.msra.mxu0 0
      %3560 = vmatprep.subr.bf16.mxu0 0
      %3561 = vmatpush2.bf16.msra.mxu0 0
      %3562 = vmatprep.subr.bf16.mxu0 0
      %3563 = vmatpush2.bf16.msra.mxu0 0
      %3564 = vmatprep.subr.bf16.mxu0 0
      %3565 = vmatpush2.bf16.msra.mxu0 0
      %3566 = vmatprep.subr.bf16.mxu0 0
      %3567 = vmatpush2.bf16.msra.mxu0 0
      %3568 = vmatprep.mubr.bf16.mxu0 0
      %3569 = vmatmul.mubr.bf16.gmra.mxu0 %v3501
      %v3570 = vpop.f32.mrf.mxu0
      %v3571 = vadd.f32 0.0, %v3570
      %v3572 = vpop.f32.mrf.mxu0
      %v3573 = vpop.f32.mrf.mxu0
      %v3574 = vadd.f32 0.0, %v3573
      %v3575 = vpop.f32.mrf.mxu0
      %3576 = vmatprep.mubr.bf16.mxu0 0
      %3577 = vmatmul.mubr.bf16.gmra.mxu0 %v3504
      %v3578 = vpop.f32.mrf.mxu0
      %v3579 = vadd.f32 0.0, %v3578
      %v3580 = vpop.f32.mrf.mxu0
      %v3581 = vpop.f32.mrf.mxu0
      %v3582 = vadd.f32 0.0, %v3581
      %v3583 = vpop.f32.mrf.mxu0
      %3584 = vmatprep.mubr.bf16.mxu0 0
      %3585 = vmatmul.mubr.bf16.gmra.mxu0 %v3507
      %v3586 = vpop.f32.mrf.mxu0
      %v3587 = vadd.f32 0.0, %v3586
      %v3588 = vpop.f32.mrf.mxu0
      %v3589 = vpop.f32.mrf.mxu0
      %v3590 = vadd.f32 0.0, %v3589
      %v3591 = vpop.f32.mrf.mxu0
      %3592 = vmatprep.mubr.bf16.mxu0 0
      %3593 = vmatmul.mubr.bf16.gmra.mxu0 %v3510
      %v3594 = vpop.f32.mrf.mxu0
      %v3595 = vadd.f32 0.0, %v3594
      %v3596 = vpop.f32.mrf.mxu0
      %v3597 = vpop.f32.mrf.mxu0
      %v3598 = vadd.f32 0.0, %v3597
      %v3599 = vpop.f32.mrf.mxu0
      %3600 = vmatprep.mubr.bf16.mxu0 0
      %3601 = vmatmul.mubr.bf16.gmra.mxu0 %v3513
      %v3602 = vpop.f32.mrf.mxu0
      %v3603 = vadd.f32 0.0, %v3602
      %v3604 = vpop.f32.mrf.mxu0
      %v3605 = vpop.f32.mrf.mxu0
      %v3606 = vadd.f32 0.0, %v3605
      %v3607 = vpop.f32.mrf.mxu0
      %3608 = vmatprep.mubr.bf16.mxu0 0
      %3609 = vmatmul.mubr.bf16.gmra.mxu0 %v3516
      %v3610 = vpop.f32.mrf.mxu0
      %v3611 = vadd.f32 0.0, %v3610
      %v3612 = vpop.f32.mrf.mxu0
      %v3613 = vpop.f32.mrf.mxu0
      %v3614 = vadd.f32 0.0, %v3613
      %v3615 = vpop.f32.mrf.mxu0
      %3616 = vmatprep.mubr.bf16.mxu0 0
      %3617 = vmatmul.mubr.bf16.gmra.mxu0 %v3519
      %v3618 = vpop.f32.mrf.mxu0
      %v3619 = vadd.f32 0.0, %v3618
      %v3620 = vpop.f32.mrf.mxu0
      %v3621 = vpop.f32.mrf.mxu0
      %v3622 = vadd.f32 0.0, %v3621
      %v3623 = vpop.f32.mrf.mxu0
      %3624 = vmatprep.mubr.bf16.mxu0 0
      %3625 = vmatmul.mubr.bf16.gmra.mxu0 %v3522
      %v3626 = vpop.f32.mrf.mxu0
      %v3627 = vadd.f32 0.0, %v3626
      %v3628 = vpop.f32.mrf.mxu0
      %v3629 = vpop.f32.mrf.mxu0
      %v3630 = vadd.f32 0.0, %v3629
      %v3631 = vpop.f32.mrf.mxu0
      %3632 = vmatprep.mubr.bf16.mxu0 0
      %3633 = vmatmul.mubr.bf16.gmra.mxu0 %v3525
      %v3634 = vpop.f32.mrf.mxu0
      %v3635 = vadd.f32 0.0, %v3634
      %v3636 = vpop.f32.mrf.mxu0
      %v3637 = vpop.f32.mrf.mxu0
      %v3638 = vadd.f32 0.0, %v3637
      %v3639 = vpop.f32.mrf.mxu0
      %3640 = vmatprep.mubr.bf16.mxu0 0
      %3641 = vmatmul.mubr.bf16.gmra.mxu0 %v3528
      %v3642 = vpop.f32.mrf.mxu0
      %v3643 = vadd.f32 0.0, %v3642
      %v3644 = vpop.f32.mrf.mxu0
      %v3645 = vpop.f32.mrf.mxu0
      %v3646 = vadd.f32 0.0, %v3645
      %v3647 = vpop.f32.mrf.mxu0
      %3648 = vmatprep.mubr.bf16.mxu0 0
      %3649 = vmatmul.mubr.bf16.gmra.mxu0 %v3531
      %v3650 = vpop.f32.mrf.mxu0
      %v3651 = vadd.f32 0.0, %v3650
      %v3652 = vpop.f32.mrf.mxu0
      %v3653 = vpop.f32.mrf.mxu0
      %v3654 = vadd.f32 0.0, %v3653
      %v3655 = vpop.f32.mrf.mxu0
      %3656 = vmatprep.mubr.bf16.mxu0 0
      %3657 = vmatmul.mubr.bf16.gmra.mxu0 %v3534
      %v3658 = vpop.f32.mrf.mxu0
      %v3659 = vadd.f32 0.0, %v3658
      %v3660 = vpop.f32.mrf.mxu0
      %v3661 = vpop.f32.mrf.mxu0
      %v3662 = vadd.f32 0.0, %v3661
      %v3663 = vpop.f32.mrf.mxu0
      %3664 = vdwg.mxu0
      %v3665 = vadd.f32 %v3407, %v3571
      %v3666 = vadd.f32 %v3408, %v3574
      %v3667 = vadd.f32 %v3409, %v3579
      %v3668 = vadd.f32 %v3410, %v3582
      %v3669 = vadd.f32 %v3411, %v3587
      %v3670 = vadd.f32 %v3412, %v3590
      %v3671 = vadd.f32 %v3413, %v3595
      %v3672 = vadd.f32 %v3414, %v3598
      %v3673 = vadd.f32 %v3415, %v3603
      %v3674 = vadd.f32 %v3416, %v3606
      %v3675 = vadd.f32 %v3417, %v3611
      %v3676 = vadd.f32 %v3418, %v3614
      %v3677 = vadd.f32 %v3419, %v3619
      %v3678 = vadd.f32 %v3420, %v3622
      %v3679 = vadd.f32 %v3421, %v3627
      %v3680 = vadd.f32 %v3422, %v3630
      %v3681 = vadd.f32 %v3423, %v3635
      %v3682 = vadd.f32 %v3424, %v3638
      %v3683 = vadd.f32 %v3425, %v3643
      %v3684 = vadd.f32 %v3426, %v3646
      %v3685 = vadd.f32 %v3427, %v3651
      %v3686 = vadd.f32 %v3428, %v3654
      %v3687 = vadd.f32 %v3429, %v3659
      %v3688 = vadd.f32 %v3430, %v3662
      %3689 = vst.msk [vmem:[%s347] sm:$0xff] %vm1031, %v3665
      %3690 = vst.msk [vmem:[%s347 + $0x8] sm:$0xff] %vm1031, %v3666
      %3691 = vst.msk [vmem:[%s347 + $0x10] sm:$0xff] %vm1031, %v3667
      %3692 = vst.msk [vmem:[%s347 + $0x18] sm:$0xff] %vm1031, %v3668
      %3693 = vst.msk [vmem:[%s347 + $0x20] sm:$0xff] %vm1031, %v3669
      %3694 = vst.msk [vmem:[%s347 + $0x28] sm:$0xff] %vm1031, %v3670
      %3695 = vst.msk [vmem:[%s347 + $0x30] sm:$0xff] %vm1031, %v3671
      %3696 = vst.msk [vmem:[%s347 + $0x38] sm:$0xff] %vm1031, %v3672
      %3697 = vst.msk [vmem:[%s347 + $0x40] sm:$0xff] %vm1031, %v3673
      %3698 = vst.msk [vmem:[%s347 + $0x48] sm:$0xff] %vm1031, %v3674
      %3699 = vst.msk [vmem:[%s347 + $0x50] sm:$0xff] %vm1031, %v3675
      %3700 = vst.msk [vmem:[%s347 + $0x58] sm:$0xff] %vm1031, %v3676
      %3701 = vst.msk [vmem:[%s347 + $0x60] sm:$0xff] %vm1031, %v3677
      %3702 = vst.msk [vmem:[%s347 + $0x68] sm:$0xff] %vm1031, %v3678
      %3703 = vst.msk [vmem:[%s347 + $0x70] sm:$0xff] %vm1031, %v3679
      %3704 = vst.msk [vmem:[%s347 + $0x78] sm:$0xff] %vm1031, %v3680
      %3705 = vst.msk [vmem:[%s347 + $0x80] sm:$0xff] %vm1031, %v3681
      %3706 = vst.msk [vmem:[%s347 + $0x88] sm:$0xff] %vm1031, %v3682
      %3707 = vst.msk [vmem:[%s347 + $0x90] sm:$0xff] %vm1031, %v3683
      %3708 = vst.msk [vmem:[%s347 + $0x98] sm:$0xff] %vm1031, %v3684
      %3709 = vst.msk [vmem:[%s347 + $0xa0] sm:$0xff] %vm1031, %v3685
      %3710 = vst.msk [vmem:[%s347 + $0xa8] sm:$0xff] %vm1031, %v3686
      %3711 = vst.msk [vmem:[%s347 + $0xb0] sm:$0xff] %vm1031, %v3687
      %3712 = vst.msk [vmem:[%s347 + $0xb8] sm:$0xff] %vm1031, %v3688
      %s3713 = scalar_lea.vmem [#allocation3], 24
      %v3714 = vld [vmem:[%s3713] sm:$0xf]
      %v3715 = vld [vmem:[%s3713 + $0x4] sm:$0xf]
      %v3716 = vld [vmem:[%s3713 + $0x8] sm:$0xf]
      %v3717 = vld [vmem:[%s3713 + $0xc] sm:$0xf]
      %v3718 = vld [vmem:[%s3713 + $0x10] sm:$0xf]
      %v3719 = vld [vmem:[%s3713 + $0x14] sm:$0xf]
      %v3720 = vld [vmem:[%s3713 + $0x18] sm:$0xf]
      %v3721 = vld [vmem:[%s3713 + $0x1c] sm:$0xf]
      %v3722 = vld [vmem:[%s3713 + $0x20] sm:$0xf]
      %v3723 = vld [vmem:[%s3713 + $0x24] sm:$0xf]
      %v3724 = vld [vmem:[%s3713 + $0x28] sm:$0xf]
      %v3725 = vld [vmem:[%s3713 + $0x2c] sm:$0xf]
      %v3726 = vld [vmem:[%s3713 + $0x30] sm:$0xf]
      %v3727 = vld [vmem:[%s3713 + $0x34] sm:$0xf]
      %v3728 = vld [vmem:[%s3713 + $0x38] sm:$0xf]
      %v3729 = vld [vmem:[%s3713 + $0x3c] sm:$0xf]
      %v3730 = vld [vmem:[%s3713 + $0x40] sm:$0xf]
      %v3731 = vld [vmem:[%s3713 + $0x44] sm:$0xf]
      %v3732 = vld [vmem:[%s3713 + $0x48] sm:$0xf]
      %v3733 = vld [vmem:[%s3713 + $0x4c] sm:$0xf]
      %v3734 = vld [vmem:[%s3713 + $0x50] sm:$0xf]
      %v3735 = vld [vmem:[%s3713 + $0x54] sm:$0xf]
      %v3736 = vld [vmem:[%s3713 + $0x58] sm:$0xf]
      %v3737 = vld [vmem:[%s3713 + $0x5c] sm:$0xf]
      %v3738 = vld [vmem:[%s347] sm:$0xff]
      %v3739 = vld [vmem:[%s347 + $0x8] sm:$0xff]
      %v3740 = vld [vmem:[%s347 + $0x10] sm:$0xff]
      %v3741 = vld [vmem:[%s347 + $0x18] sm:$0xff]
      %v3742 = vld [vmem:[%s347 + $0x20] sm:$0xff]
      %v3743 = vld [vmem:[%s347 + $0x28] sm:$0xff]
      %v3744 = vld [vmem:[%s347 + $0x30] sm:$0xff]
      %v3745 = vld [vmem:[%s347 + $0x38] sm:$0xff]
      %v3746 = vld [vmem:[%s347 + $0x40] sm:$0xff]
      %v3747 = vld [vmem:[%s347 + $0x48] sm:$0xff]
      %v3748 = vld [vmem:[%s347 + $0x50] sm:$0xff]
      %v3749 = vld [vmem:[%s347 + $0x58] sm:$0xff]
      %v3750 = vld [vmem:[%s347 + $0x60] sm:$0xff]
      %v3751 = vld [vmem:[%s347 + $0x68] sm:$0xff]
      %v3752 = vld [vmem:[%s347 + $0x70] sm:$0xff]
      %v3753 = vld [vmem:[%s347 + $0x78] sm:$0xff]
      %v3754 = vld [vmem:[%s347 + $0x80] sm:$0xff]
      %v3755 = vld [vmem:[%s347 + $0x88] sm:$0xff]
      %v3756 = vld [vmem:[%s347 + $0x90] sm:$0xff]
      %v3757 = vld [vmem:[%s347 + $0x98] sm:$0xff]
      %v3758 = vld [vmem:[%s347 + $0xa0] sm:$0xff]
      %v3759 = vld [vmem:[%s347 + $0xa8] sm:$0xff]
      %v3760 = vld [vmem:[%s347 + $0xb0] sm:$0xff]
      %v3761 = vld [vmem:[%s347 + $0xb8] sm:$0xff]
      %s3762 = scalar_lea.vmem %s5, 16
      %v3763 = vld [vmem:[%s3762] sm:$0xf]
      %v3764 = vld [vmem:[%s3762 + $0x4] sm:$0xf]
      %v3789 = vunpack.c.l.b16 %v3714
      %v3790 = vunpack.c.l.b16 %v3715
      %v3791 = vunpack.c.l.b16 %v3716
      %v3792 = vunpack.c.l.b16 %v3717
      %v3793 = vunpack.c.l.b16 %v3718
      %v3794 = vunpack.c.l.b16 %v3719
      %v3795 = vunpack.c.l.b16 %v3720
      %v3796 = vunpack.c.l.b16 %v3721
      %v3797 = vunpack.c.l.b16 %v3722
      %v3798 = vunpack.c.l.b16 %v3723
      %v3799 = vunpack.c.l.b16 %v3724
      %v3800 = vunpack.c.l.b16 %v3725
      %v3801 = vunpack.c.l.b16 %v3726
      %v3802 = vunpack.c.l.b16 %v3727
      %v3803 = vunpack.c.l.b16 %v3728
      %v3804 = vunpack.c.l.b16 %v3729
      %v3805 = vunpack.c.l.b16 %v3730
      %v3806 = vunpack.c.l.b16 %v3731
      %v3807 = vunpack.c.l.b16 %v3732
      %v3808 = vunpack.c.l.b16 %v3733
      %v3809 = vunpack.c.l.b16 %v3734
      %v3810 = vunpack.c.l.b16 %v3735
      %v3811 = vunpack.c.l.b16 %v3736
      %v3812 = vunpack.c.l.b16 %v3737
      %v3813 = vpack.c.b16 %v3790, %v3789
      %v3814 = vpack.c.b16 %v3792, %v3791
      %v3815 = vpack.c.b16 %v3794, %v3793
      %v3816 = vpack.c.b16 %v3796, %v3795
      %v3817 = vpack.c.b16 %v3798, %v3797
      %v3818 = vpack.c.b16 %v3800, %v3799
      %v3819 = vpack.c.b16 %v3802, %v3801
      %v3820 = vpack.c.b16 %v3804, %v3803
      %v3821 = vpack.c.b16 %v3806, %v3805
      %v3822 = vpack.c.b16 %v3808, %v3807
      %v3823 = vpack.c.b16 %v3810, %v3809
      %v3824 = vpack.c.b16 %v3812, %v3811
      %v3827 = vunpack.c.l.b16 %v3763
      %v3828 = vunpack.c.l.b16 %v3764
      %v3829 = vpack.c.b16 %v3828, %v3827
      %v3832 = vsel %vm1031, %v3813, 0
      %v3835 = vsel %vm1031, %v3814, 0
      %v3838 = vsel %vm1031, %v3815, 0
      %v3841 = vsel %vm1031, %v3816, 0
      %v3844 = vsel %vm1031, %v3817, 0
      %v3847 = vsel %vm1031, %v3818, 0
      %v3850 = vsel %vm1031, %v3819, 0
      %v3853 = vsel %vm1031, %v3820, 0
      %v3856 = vsel %vm1031, %v3821, 0
      %v3859 = vsel %vm1031, %v3822, 0
      %v3862 = vsel %vm1031, %v3823, 0
      %v3865 = vsel %vm1031, %v3824, 0
      %3867 = vmatprep.subr.bf16.mxu0 0
      %3868 = vmatpush1.bf16.msra.mxu0 0
      %3869 = vmatprep.subr.bf16.mxu0 0
      %3870 = vmatpush1.bf16.msra.mxu0 0
      %3871 = vmatprep.subr.bf16.mxu0 0
      %3872 = vmatpush1.bf16.msra.mxu0 0
      %3873 = vmatprep.subr.bf16.mxu0 0
      %3874 = vmatpush1.bf16.msra.mxu0 0
      %3875 = vmatprep.subr.bf16.mxu0 0
      %3876 = vmatpush1.bf16.msra.mxu0 0
      %3877 = vmatprep.subr.bf16.mxu0 0
      %3878 = vmatpush1.bf16.msra.mxu0 0
      %3879 = vmatprep.subr.bf16.mxu0 0
      %3880 = vmatpush1.bf16.msra.mxu0 0
      %3881 = vmatprep.subr.bf16.mxu0 0
      %3882 = vmatpush1.bf16.msra.mxu0 %v3829
      %3883 = vmatprep.subr.bf16.mxu0 0
      %3884 = vmatpush2.bf16.msra.mxu0 0
      %3885 = vmatprep.subr.bf16.mxu0 0
      %3886 = vmatpush2.bf16.msra.mxu0 0
      %3887 = vmatprep.subr.bf16.mxu0 0
      %3888 = vmatpush2.bf16.msra.mxu0 0
      %3889 = vmatprep.subr.bf16.mxu0 0
      %3890 = vmatpush2.bf16.msra.mxu0 0
      %3891 = vmatprep.subr.bf16.mxu0 0
      %3892 = vmatpush2.bf16.msra.mxu0 0
      %3893 = vmatprep.subr.bf16.mxu0 0
      %3894 = vmatpush2.bf16.msra.mxu0 0
      %3895 = vmatprep.subr.bf16.mxu0 0
      %3896 = vmatpush2.bf16.msra.mxu0 0
      %3897 = vmatprep.subr.bf16.mxu0 0
      %3898 = vmatpush2.bf16.msra.mxu0 0
      %3899 = vmatprep.mubr.bf16.mxu0 0
      %3900 = vmatmul.mubr.bf16.gmra.mxu0 %v3832
      %v3901 = vpop.f32.mrf.mxu0
      %v3902 = vadd.f32 0.0, %v3901
      %v3903 = vpop.f32.mrf.mxu0
      %v3904 = vpop.f32.mrf.mxu0
      %v3905 = vadd.f32 0.0, %v3904
      %v3906 = vpop.f32.mrf.mxu0
      %3907 = vmatprep.mubr.bf16.mxu0 0
      %3908 = vmatmul.mubr.bf16.gmra.mxu0 %v3835
      %v3909 = vpop.f32.mrf.mxu0
      %v3910 = vadd.f32 0.0, %v3909
      %v3911 = vpop.f32.mrf.mxu0
      %v3912 = vpop.f32.mrf.mxu0
      %v3913 = vadd.f32 0.0, %v3912
      %v3914 = vpop.f32.mrf.mxu0
      %3915 = vmatprep.mubr.bf16.mxu0 0
      %3916 = vmatmul.mubr.bf16.gmra.mxu0 %v3838
      %v3917 = vpop.f32.mrf.mxu0
      %v3918 = vadd.f32 0.0, %v3917
      %v3919 = vpop.f32.mrf.mxu0
      %v3920 = vpop.f32.mrf.mxu0
      %v3921 = vadd.f32 0.0, %v3920
      %v3922 = vpop.f32.mrf.mxu0
      %3923 = vmatprep.mubr.bf16.mxu0 0
      %3924 = vmatmul.mubr.bf16.gmra.mxu0 %v3841
      %v3925 = vpop.f32.mrf.mxu0
      %v3926 = vadd.f32 0.0, %v3925
      %v3927 = vpop.f32.mrf.mxu0
      %v3928 = vpop.f32.mrf.mxu0
      %v3929 = vadd.f32 0.0, %v3928
      %v3930 = vpop.f32.mrf.mxu0
      %3931 = vmatprep.mubr.bf16.mxu0 0
      %3932 = vmatmul.mubr.bf16.gmra.mxu0 %v3844
      %v3933 = vpop.f32.mrf.mxu0
      %v3934 = vadd.f32 0.0, %v3933
      %v3935 = vpop.f32.mrf.mxu0
      %v3936 = vpop.f32.mrf.mxu0
      %v3937 = vadd.f32 0.0, %v3936
      %v3938 = vpop.f32.mrf.mxu0
      %3939 = vmatprep.mubr.bf16.mxu0 0
      %3940 = vmatmul.mubr.bf16.gmra.mxu0 %v3847
      %v3941 = vpop.f32.mrf.mxu0
      %v3942 = vadd.f32 0.0, %v3941
      %v3943 = vpop.f32.mrf.mxu0
      %v3944 = vpop.f32.mrf.mxu0
      %v3945 = vadd.f32 0.0, %v3944
      %v3946 = vpop.f32.mrf.mxu0
      %3947 = vmatprep.mubr.bf16.mxu0 0
      %3948 = vmatmul.mubr.bf16.gmra.mxu0 %v3850
      %v3949 = vpop.f32.mrf.mxu0
      %v3950 = vadd.f32 0.0, %v3949
      %v3951 = vpop.f32.mrf.mxu0
      %v3952 = vpop.f32.mrf.mxu0
      %v3953 = vadd.f32 0.0, %v3952
      %v3954 = vpop.f32.mrf.mxu0
      %3955 = vmatprep.mubr.bf16.mxu0 0
      %3956 = vmatmul.mubr.bf16.gmra.mxu0 %v3853
      %v3957 = vpop.f32.mrf.mxu0
      %v3958 = vadd.f32 0.0, %v3957
      %v3959 = vpop.f32.mrf.mxu0
      %v3960 = vpop.f32.mrf.mxu0
      %v3961 = vadd.f32 0.0, %v3960
      %v3962 = vpop.f32.mrf.mxu0
      %3963 = vmatprep.mubr.bf16.mxu0 0
      %3964 = vmatmul.mubr.bf16.gmra.mxu0 %v3856
      %v3965 = vpop.f32.mrf.mxu0
      %v3966 = vadd.f32 0.0, %v3965
      %v3967 = vpop.f32.mrf.mxu0
      %v3968 = vpop.f32.mrf.mxu0
      %v3969 = vadd.f32 0.0, %v3968
      %v3970 = vpop.f32.mrf.mxu0
      %3971 = vmatprep.mubr.bf16.mxu0 0
      %3972 = vmatmul.mubr.bf16.gmra.mxu0 %v3859
      %v3973 = vpop.f32.mrf.mxu0
      %v3974 = vadd.f32 0.0, %v3973
      %v3975 = vpop.f32.mrf.mxu0
      %v3976 = vpop.f32.mrf.mxu0
      %v3977 = vadd.f32 0.0, %v3976
      %v3978 = vpop.f32.mrf.mxu0
      %3979 = vmatprep.mubr.bf16.mxu0 0
      %3980 = vmatmul.mubr.bf16.gmra.mxu0 %v3862
      %v3981 = vpop.f32.mrf.mxu0
      %v3982 = vadd.f32 0.0, %v3981
      %v3983 = vpop.f32.mrf.mxu0
      %v3984 = vpop.f32.mrf.mxu0
      %v3985 = vadd.f32 0.0, %v3984
      %v3986 = vpop.f32.mrf.mxu0
      %3987 = vmatprep.mubr.bf16.mxu0 0
      %3988 = vmatmul.mubr.bf16.gmra.mxu0 %v3865
      %v3989 = vpop.f32.mrf.mxu0
      %v3990 = vadd.f32 0.0, %v3989
      %v3991 = vpop.f32.mrf.mxu0
      %v3992 = vpop.f32.mrf.mxu0
      %v3993 = vadd.f32 0.0, %v3992
      %v3994 = vpop.f32.mrf.mxu0
      %3995 = vdwg.mxu0
      %v3996 = vadd.f32 %v3738, %v3902
      %v3997 = vadd.f32 %v3739, %v3905
      %v3998 = vadd.f32 %v3740, %v3910
      %v3999 = vadd.f32 %v3741, %v3913
      %v4000 = vadd.f32 %v3742, %v3918
      %v4001 = vadd.f32 %v3743, %v3921
      %v4002 = vadd.f32 %v3744, %v3926
      %v4003 = vadd.f32 %v3745, %v3929
      %v4004 = vadd.f32 %v3746, %v3934
      %v4005 = vadd.f32 %v3747, %v3937
      %v4006 = vadd.f32 %v3748, %v3942
      %v4007 = vadd.f32 %v3749, %v3945
      %v4008 = vadd.f32 %v3750, %v3950
      %v4009 = vadd.f32 %v3751, %v3953
      %v4010 = vadd.f32 %v3752, %v3958
      %v4011 = vadd.f32 %v3753, %v3961
      %v4012 = vadd.f32 %v3754, %v3966
      %v4013 = vadd.f32 %v3755, %v3969
      %v4014 = vadd.f32 %v3756, %v3974
      %v4015 = vadd.f32 %v3757, %v3977
      %v4016 = vadd.f32 %v3758, %v3982
      %v4017 = vadd.f32 %v3759, %v3985
      %v4018 = vadd.f32 %v3760, %v3990
      %v4019 = vadd.f32 %v3761, %v3993
      %4020 = vst.msk [vmem:[%s347] sm:$0xff] %vm1031, %v3996
      %4021 = vst.msk [vmem:[%s347 + $0x8] sm:$0xff] %vm1031, %v3997
      %4022 = vst.msk [vmem:[%s347 + $0x10] sm:$0xff] %vm1031, %v3998
      %4023 = vst.msk [vmem:[%s347 + $0x18] sm:$0xff] %vm1031, %v3999
      %4024 = vst.msk [vmem:[%s347 + $0x20] sm:$0xff] %vm1031, %v4000
      %4025 = vst.msk [vmem:[%s347 + $0x28] sm:$0xff] %vm1031, %v4001
      %4026 = vst.msk [vmem:[%s347 + $0x30] sm:$0xff] %vm1031, %v4002
      %4027 = vst.msk [vmem:[%s347 + $0x38] sm:$0xff] %vm1031, %v4003
      %4028 = vst.msk [vmem:[%s347 + $0x40] sm:$0xff] %vm1031, %v4004
      %4029 = vst.msk [vmem:[%s347 + $0x48] sm:$0xff] %vm1031, %v4005
      %4030 = vst.msk [vmem:[%s347 + $0x50] sm:$0xff] %vm1031, %v4006
      %4031 = vst.msk [vmem:[%s347 + $0x58] sm:$0xff] %vm1031, %v4007
      %4032 = vst.msk [vmem:[%s347 + $0x60] sm:$0xff] %vm1031, %v4008
      %4033 = vst.msk [vmem:[%s347 + $0x68] sm:$0xff] %vm1031, %v4009
      %4034 = vst.msk [vmem:[%s347 + $0x70] sm:$0xff] %vm1031, %v4010
      %4035 = vst.msk [vmem:[%s347 + $0x78] sm:$0xff] %vm1031, %v4011
      %4036 = vst.msk [vmem:[%s347 + $0x80] sm:$0xff] %vm1031, %v4012
      %4037 = vst.msk [vmem:[%s347 + $0x88] sm:$0xff] %vm1031, %v4013
      %4038 = vst.msk [vmem:[%s347 + $0x90] sm:$0xff] %vm1031, %v4014
      %4039 = vst.msk [vmem:[%s347 + $0x98] sm:$0xff] %vm1031, %v4015
      %4040 = vst.msk [vmem:[%s347 + $0xa0] sm:$0xff] %vm1031, %v4016
      %4041 = vst.msk [vmem:[%s347 + $0xa8] sm:$0xff] %vm1031, %v4017
      %4042 = vst.msk [vmem:[%s347 + $0xb0] sm:$0xff] %vm1031, %v4018
      %4043 = vst.msk [vmem:[%s347 + $0xb8] sm:$0xff] %vm1031, %v4019
      %v4044 = vld [vmem:[%s347] sm:$0xff]
      %v4045 = vld [vmem:[%s347 + $0x8] sm:$0xff]
      %v4046 = vld [vmem:[%s347 + $0x10] sm:$0xff]
      %v4047 = vld [vmem:[%s347 + $0x18] sm:$0xff]
      %v4048 = vld [vmem:[%s347 + $0x20] sm:$0xff]
      %v4049 = vld [vmem:[%s347 + $0x28] sm:$0xff]
      %v4050 = vld [vmem:[%s347 + $0x30] sm:$0xff]
      %v4051 = vld [vmem:[%s347 + $0x38] sm:$0xff]
      %v4052 = vld [vmem:[%s347 + $0x40] sm:$0xff]
      %v4053 = vld [vmem:[%s347 + $0x48] sm:$0xff]
      %v4054 = vld [vmem:[%s347 + $0x50] sm:$0xff]
      %v4055 = vld [vmem:[%s347 + $0x58] sm:$0xff]
      %v4056 = vld [vmem:[%s347 + $0x60] sm:$0xff]
      %v4057 = vld [vmem:[%s347 + $0x68] sm:$0xff]
      %v4058 = vld [vmem:[%s347 + $0x70] sm:$0xff]
      %v4059 = vld [vmem:[%s347 + $0x78] sm:$0xff]
      %v4060 = vld [vmem:[%s347 + $0x80] sm:$0xff]
      %v4061 = vld [vmem:[%s347 + $0x88] sm:$0xff]
      %v4062 = vld [vmem:[%s347 + $0x90] sm:$0xff]
      %v4063 = vld [vmem:[%s347 + $0x98] sm:$0xff]
      %v4064 = vld [vmem:[%s347 + $0xa0] sm:$0xff]
      %v4065 = vld [vmem:[%s347 + $0xa8] sm:$0xff]
      %v4066 = vld [vmem:[%s347 + $0xb0] sm:$0xff]
      %v4067 = vld [vmem:[%s347 + $0xb8] sm:$0xff]
      %v4068 = vmax.f32 %v4044, 0.0
      %v4069 = vmax.f32 %v4045, 0.0
      %v4070 = vmax.f32 %v4046, 0.0
      %v4071 = vmax.f32 %v4047, 0.0
      %v4072 = vmax.f32 %v4048, 0.0
      %v4073 = vmax.f32 %v4049, 0.0
      %v4074 = vmax.f32 %v4050, 0.0
      %v4075 = vmax.f32 %v4051, 0.0
      %v4076 = vmax.f32 %v4052, 0.0
      %v4077 = vmax.f32 %v4053, 0.0
      %v4078 = vmax.f32 %v4054, 0.0
      %v4079 = vmax.f32 %v4055, 0.0
      %v4080 = vmax.f32 %v4056, 0.0
      %v4081 = vmax.f32 %v4057, 0.0
      %v4082 = vmax.f32 %v4058, 0.0
      %v4083 = vmax.f32 %v4059, 0.0
      %v4084 = vmax.f32 %v4060, 0.0
      %v4085 = vmax.f32 %v4061, 0.0
      %v4086 = vmax.f32 %v4062, 0.0
      %v4087 = vmax.f32 %v4063, 0.0
      %v4088 = vmax.f32 %v4064, 0.0
      %v4089 = vmax.f32 %v4065, 0.0
      %v4090 = vmax.f32 %v4066, 0.0
      %v4091 = vmax.f32 %v4067, 0.0
      %4092 = vst.msk [vmem:[%s347] sm:$0xff] %vm1031, %v4068
      %4093 = vst.msk [vmem:[%s347 + $0x8] sm:$0xff] %vm1031, %v4069
      %4094 = vst.msk [vmem:[%s347 + $0x10] sm:$0xff] %vm1031, %v4070
      %4095 = vst.msk [vmem:[%s347 + $0x18] sm:$0xff] %vm1031, %v4071
      %4096 = vst.msk [vmem:[%s347 + $0x20] sm:$0xff] %vm1031, %v4072
      %4097 = vst.msk [vmem:[%s347 + $0x28] sm:$0xff] %vm1031, %v4073
      %4098 = vst.msk [vmem:[%s347 + $0x30] sm:$0xff] %vm1031, %v4074
      %4099 = vst.msk [vmem:[%s347 + $0x38] sm:$0xff] %vm1031, %v4075
      %4100 = vst.msk [vmem:[%s347 + $0x40] sm:$0xff] %vm1031, %v4076
      %4101 = vst.msk [vmem:[%s347 + $0x48] sm:$0xff] %vm1031, %v4077
      %4102 = vst.msk [vmem:[%s347 + $0x50] sm:$0xff] %vm1031, %v4078
      %4103 = vst.msk [vmem:[%s347 + $0x58] sm:$0xff] %vm1031, %v4079
      %4104 = vst.msk [vmem:[%s347 + $0x60] sm:$0xff] %vm1031, %v4080
      %4105 = vst.msk [vmem:[%s347 + $0x68] sm:$0xff] %vm1031, %v4081
      %4106 = vst.msk [vmem:[%s347 + $0x70] sm:$0xff] %vm1031, %v4082
      %4107 = vst.msk [vmem:[%s347 + $0x78] sm:$0xff] %vm1031, %v4083
      %4108 = vst.msk [vmem:[%s347 + $0x80] sm:$0xff] %vm1031, %v4084
      %4109 = vst.msk [vmem:[%s347 + $0x88] sm:$0xff] %vm1031, %v4085
      %4110 = vst.msk [vmem:[%s347 + $0x90] sm:$0xff] %vm1031, %v4086
      %4111 = vst.msk [vmem:[%s347 + $0x98] sm:$0xff] %vm1031, %v4087
      %4112 = vst.msk [vmem:[%s347 + $0xa0] sm:$0xff] %vm1031, %v4088
      %4113 = vst.msk [vmem:[%s347 + $0xa8] sm:$0xff] %vm1031, %v4089
      %4114 = vst.msk [vmem:[%s347 + $0xb0] sm:$0xff] %vm1031, %v4090
      %4115 = vst.msk [vmem:[%s347 + $0xb8] sm:$0xff] %vm1031, %v4091
      %s4116 = smul.u32 24, %s24
      %p4117 = scmp.lt.s32.totalorder %s23, 1
      %s4118 = scalar_select %p4117, %s23, 1
      %p4119 = scmp.lt.s32.totalorder %s4116, 95
      %s4120 = scalar_select %p4119, %s4116, 95
      %s4121 = smul.addr %s4118, 96
      %s4122 = sadd.s32 %s4120, %s4121
      %s4123 = smul.addr %s4122, 8
      %s4124 = scalar_lea.vmem %s8, %s4123
      // Predicated region
      $region61: #{tpu_custom_call.1} parent=51 // pred_check
        %p4125 = pneg %p229
      $region62: #{tpu_custom_call.1} parent=51 // pred_check_branch
        %4127 = sbr.rel (%p4125) target = $region64
      $region63: #{tpu_custom_call.1} parent=51 // pred_region
        %s4128 = smul.u32 24, %s24
      $region64: #{tpu_custom_call.1} parent=51 // pred_fallthru
        _
    $region52: #{tpu_custom_call.1} parent=5 // pred_fallthru
      _
    %p4129 = scmp.le.s32.totalorder 2, %s14
    // Predicated region
    $region65: #{tpu_custom_call.1} parent=5 // pred_check
      %p4130 = pneg %p4129
    $region66: #{tpu_custom_call.1} parent=5 // pred_check_branch
      %4132 = sbr.rel (%p4130) target = $region68
    $region67: #{tpu_custom_call.1} parent=5 // pred_region
      %s4133 = ssub.s32 %s14, 2
      // Predicated region
      $region69: #{tpu_custom_call.1} parent=67 // pred_check
        %p4134 = pneg %p235
      $region70: #{tpu_custom_call.1} parent=67 // pred_check_branch
        %4136 = sbr.rel (%p4134) target = $region72
      $region71: #{tpu_custom_call.1} parent=67 // pred_region
        %s4137 = smul.u32 24, %s26
        %p4138 = scmp.lt.s32.totalorder %s25, 1
        %s4139 = scalar_select %p4138, %s25, 1
        %p4140 = scmp.lt.s32.totalorder %s4137, 95
        %s4141 = scalar_select %p4140, %s4137, 95
        %s4142 = smul.addr %s4139, 96
        %s4143 = sadd.s32 %s4141, %s4142
        %s4144 = smul.addr %s4143, 8
        %s4145 = scalar_lea.vmem %s8, %s4144
      $region72: #{tpu_custom_call.1} parent=67 // pred_fallthru
        _
    $region68: #{tpu_custom_call.1} parent=5 // pred_fallthru
      _
  $region6: #{tpu_custom_call.1} parent=0 // loop_footer
    %s18 = sadd.s32 1, %s14
  $region7: #{tpu_custom_call.1} parent=0 // loop_footer_branch
    %13 = sbr.rel target = $region3
  $region8: #{tpu_custom_call.1} parent=0 // loop_exit
    _

</llo_original>
